<compile_context>
chip_gen: v7x
topology: tpu7x:2x2x1
jax: 0.10.0
libtpu: 0.0.40
codegen_flags: <defaults>
</compile_context>

<pallas_src>
import numpy as np

import jax
import jax.numpy as jnp
from jax import lax
from jax.experimental import pallas as pl
from jax.experimental.pallas import tpu as pltpu

# Small, module-consistent demo config (original: img_size=(150,150), 9 classes).
IMG_H, IMG_W = 16, 16        # must be divisible by 4 (two 2x2 max-pools)
NUM_CLASSES = 9
BATCH = 2
HIDDEN = 128                 # fc1 width (matches the PyTorch module)
FC_K_TILE = 256              # K tile for the fused FC head (reduction grid axis)
FC_N_PAD = 128               # fc2 output padded to a lane-dense 128 columns


def _round_up(x, m):
    return ((x + m - 1) // m) * m


# -----------------------------------------------------------------------------
# Pallas kernels
# -----------------------------------------------------------------------------
def _conv_relu_pool_kernel(e_ref, o_ref, w_ref, bias_ref, out_ref):
    """Fused conv3x3(pad=1) + bias + ReLU + 2x2 max-pool for one image.

    e_ref, o_ref : (1, Ho+1, Wp*Cin) f32 — even / odd padded input rows,
                   each row flattened along (w, cin) (lane dim).
    w_ref        : (3, Wp*Cin, 2*Wo*Cout) bf16 — per-dh structured conv matrix
                   whose output columns are ordered (w%2, w//2, cout), so the
                   2x2-pool column reduction is a max over contiguous halves.
    bias_ref     : (1, 2*Wo*Cout) f32.
    out_ref      : (1, Ho, Wo*Cout) f32 — pooled NHWC activations, flattened
                   along (wo, cout) (lane-dense, >=256 lanes).
    """
    ho = out_ref.shape[1]
    woc = out_ref.shape[2]

    e = e_ref[0]                                   # (Ho+1, Wp*Cin) f32
    o = o_ref[0]
    e0 = e[0:ho, :].astype(jnp.bfloat16)           # padded rows 0,2,4,...
    e1 = e[1:ho + 1, :].astype(jnp.bfloat16)       # padded rows 2,4,6,...
    o0 = o[0:ho, :].astype(jnp.bfloat16)           # padded rows 1,3,5,...
    o1 = o[1:ho + 1, :].astype(jnp.bfloat16)       # padded rows 3,5,7,...

    f32 = jnp.float32
    # Even conv-output rows (h = 2*ho) read padded rows 2ho, 2ho+1, 2ho+2.
    acc_even = (jnp.dot(e0, w_ref[0], preferred_element_type=f32)
                + jnp.dot(o0, w_ref[1], preferred_element_type=f32)
                + jnp.dot(e1, w_ref[2], preferred_element_type=f32))
    # Odd conv-output rows (h = 2*ho+1) read padded rows 2ho+1, 2ho+2, 2ho+3.
    acc_odd = (jnp.dot(o0, w_ref[0], preferred_element_type=f32)
               + jnp.dot(e1, w_ref[1], preferred_element_type=f32)
               + jnp.dot(o1, w_ref[2], preferred_element_type=f32))

    y_even = jnp.maximum(acc_even + bias_ref[...], 0.0)   # (Ho, 2*Wo*Cout) f32
    y_odd = jnp.maximum(acc_odd + bias_ref[...], 0.0)

    # 2x2 max-pool: row parity comes from the even/odd accumulators, column
    # parity lives in the two contiguous halves of the column axis.
    pooled = jnp.maximum(
        jnp.maximum(y_even[:, :woc], y_even[:, woc:]),
        jnp.maximum(y_odd[:, :woc], y_odd[:, woc:]))
    out_ref[0] = pooled.astype(out_ref.dtype)


def _fc_head_kernel(x_ref, w1_ref, b1_ref, w2_ref, b2_ref, o_ref, acc_ref):
    """Fused FC head:  o = relu(x @ W1 + b1) @ W2 + b2.

    Grid = (M tiles, K tiles); K is the reduction axis (last, 'arbitrary').
    acc_ref : (tm, HIDDEN) f32 VMEM accumulator for x @ W1.
    """
    k = pl.program_id(1)

    @pl.when(k == 0)
    def _init():
        acc_ref[...] = jnp.zeros_like(acc_ref)

    acc_ref[...] += jnp.dot(x_ref[...].astype(jnp.bfloat16), w1_ref[...],
                            preferred_element_type=jnp.float32)

    @pl.when(k == pl.num_programs(1) - 1)
    def _finalize():
        h = jnp.maximum(acc_ref[...] + b1_ref[...], 0.0)         # f32
        logits = jnp.dot(h.astype(jnp.bfloat16), w2_ref[...],
                         preferred_element_type=jnp.float32) + b2_ref[...]
        o_ref[...] = logits.astype(o_ref.dtype)


# -----------------------------------------------------------------------------
# Wrappers
# -----------------------------------------------------------------------------
def conv_relu_pool(x_nhwc, w_mats, bias2):
    """x_nhwc: (N, H, W, Cin) f32 -> pooled (N, H//2, W//2, Cout) f32."""
    n, h, w, cin = x_nhwc.shape
    assert h % 2 == 0 and w % 2 == 0, (h, w)
    hp, ho, wo = h + 2, h // 2, w // 2
    wpc = (w + 2) * cin
    nc2 = w_mats.shape[2]
    woc = nc2 // 2
    cout = woc // wo

    # Only glue left in HBM: pad (+1 halo) and split padded rows by parity.
    xpad = jnp.pad(x_nhwc, ((0, 0), (1, 1), (1, 1), (0, 0)))
    xrow = xpad.reshape(n, hp, wpc)
    x_even = xrow[:, 0::2, :]                      # (N, Ho+1, Wp*Cin)
    x_odd = xrow[:, 1::2, :]                       # (N, Ho+1, Wp*Cin)

    out = pl.pallas_call(
        _conv_relu_pool_kernel,
        out_shape=jax.ShapeDtypeStruct((n, ho, woc), jnp.float32),
        grid=(n,),
        in_specs=[
            pl.BlockSpec((1, ho + 1, wpc), lambda i: (i, 0, 0)),
            pl.BlockSpec((1, ho + 1, wpc), lambda i: (i, 0, 0)),
            pl.BlockSpec((3, wpc, nc2), lambda i: (0, 0, 0)),
            pl.BlockSpec((1, nc2), lambda i: (0, 0)),
        ],
        out_specs=pl.BlockSpec((1, ho, woc), lambda i: (i, 0, 0)),
        compiler_params=pltpu.CompilerParams(
            dimension_semantics=("parallel",)),
    )(x_even, x_odd, w_mats, bias2)
    return out.reshape(n, ho, wo, cout)


def fc_head(xf, w1, b1, w2, b2, num_classes):
    """xf: (M, K) f32 -> logits (M, num_classes) f32, fused fc1+ReLU+fc2."""
    m, k = xf.shape
    kp, hidden = w1.shape            # K already padded to FC_K_TILE multiple at init
    n_pad = w2.shape[1]

    tm = min(128, _round_up(m, 8))
    mp = _round_up(m, tm)
    if (mp, kp) != (m, k):
        xf = jnp.pad(xf, ((0, mp - m), (0, kp - k)))
    tk = min(FC_K_TILE, kp)
    grid = (mp // tm, kp // tk)

    out = pl.pallas_call(
        _fc_head_kernel,
        out_shape=jax.ShapeDtypeStruct((mp, n_pad), jnp.float32),
        grid=grid,
        in_specs=[
            pl.BlockSpec((tm, tk), lambda i, kk: (i, kk)),
            pl.BlockSpec((tk, hidden), lambda i, kk: (kk, 0)),
            pl.BlockSpec((1, hidden), lambda i, kk: (0, 0)),
            pl.BlockSpec((hidden, n_pad), lambda i, kk: (0, 0)),
            pl.BlockSpec((1, n_pad), lambda i, kk: (0, 0)),
        ],
        out_specs=pl.BlockSpec((tm, n_pad), lambda i, kk: (i, 0)),
        scratch_shapes=[pltpu.VMEM((tm, hidden), jnp.float32)],
        compiler_params=pltpu.CompilerParams(
            dimension_semantics=("parallel", "arbitrary")),
    )(xf, w1, b1, w2, b2)
    return out[:m, :num_classes]


# -----------------------------------------------------------------------------
# Parameters: raw (PyTorch layout, for the reference) + packed (kernel layout)
# -----------------------------------------------------------------------------
def init_raw_params(key):
    k = jax.random.split(key, 8)
    flat_dim = 64 * (IMG_H // 4) * (IMG_W // 4)

    def u(key, shape, fan_in):
        bound = 1.0 / np.sqrt(fan_in)
        return jax.random.uniform(key, shape, jnp.float32, -bound, bound)

    return {
        "conv1_w": u(k[0], (32, 3, 3, 3), 3 * 9),
        "conv1_b": u(k[1], (32,), 3 * 9),
        "conv2_w": u(k[2], (64, 32, 3, 3), 32 * 9),
        "conv2_b": u(k[3], (64,), 32 * 9),
        "fc1_w": u(k[4], (HIDDEN, flat_dim), flat_dim),   # PyTorch (out, in)
        "fc1_b": u(k[5], (HIDDEN,), flat_dim),
        "fc2_w": u(k[6], (NUM_CLASSES, HIDDEN), HIDDEN),
        "fc2_b": u(k[7], (NUM_CLASSES,), HIDDEN),
    }


def _pack_conv(w_oihw, b, width):
    """Build the per-dh structured conv matrices with pool-parity column order.

    col(w, cout) = (w % 2) * (Wo*Cout) + (w // 2) * Cout + cout
    """
    w = np.asarray(w_oihw, np.float32)
    cout, cin = w.shape[0], w.shape[1]
    wp, wo = width + 2, width // 2
    woc = wo * cout
    mats = np.zeros((3, wp * cin, 2 * woc), np.float32)
    for dh in range(3):
        for dw in range(3):
            wk = w[:, :, dh, dw].T                         # (Cin, Cout)
            for ww in range(width):
                col = (ww % 2) * woc + (ww // 2) * cout
                row = (ww + dw) * cin
                mats[dh, row:row + cin, col:col + cout] = wk
    bias2 = np.tile(np.asarray(b, np.float32), 2 * wo).reshape(1, 2 * woc)
    return jnp.asarray(mats, jnp.bfloat16), jnp.asarray(bias2, jnp.float32)


def _pack_fc(raw, ho, wo, cin):
    """Pre-transpose / pad FC weights once at init for the fused FC kernel."""
    k = ho * wo * cin
    kp = _round_up(k, FC_K_TILE)
    w1 = np.asarray(raw["fc1_w"], np.float32)              # (HIDDEN, Cin*Ho*Wo)
    # PyTorch flattens NCHW (c,h,w); our pooled activations flatten NHWC
    # (h,w,c) — fold the permutation into the weight rows here (zero runtime).
    w1 = w1.reshape(HIDDEN, cin, ho, wo).transpose(2, 3, 1, 0).reshape(k, HIDDEN)
    w1p = np.zeros((kp, HIDDEN), np.float32)
    w1p[:k] = w1
    w2p = np.zeros((HIDDEN, FC_N_PAD), np.float32)
    w2p[:, :NUM_CLASSES] = np.asarray(raw["fc2_w"], np.float32).T
    b2p = np.zeros((1, FC_N_PAD), np.float32)
    b2p[0, :NUM_CLASSES] = np.asarray(raw["fc2_b"], np.float32)
    return {
        "fc1_w": jnp.asarray(w1p, jnp.bfloat16),
        "fc1_b": jnp.asarray(raw["fc1_b"], jnp.float32).reshape(1, HIDDEN),
        "fc2_w": jnp.asarray(w2p, jnp.bfloat16),
        "fc2_b": jnp.asarray(b2p, jnp.float32),
    }


def pack_params(raw):
    c1_w, c1_b = _pack_conv(raw["conv1_w"], raw["conv1_b"], IMG_W)
    c2_w, c2_b = _pack_conv(raw["conv2_w"], raw["conv2_b"], IMG_W // 2)
    packed = {"conv1_w": c1_w, "conv1_b": c1_b,
              "conv2_w": c2_w, "conv2_b": c2_b}
    packed.update(_pack_fc(raw, IMG_H // 4, IMG_W // 4, 64))
    return packed


# -----------------------------------------------------------------------------
# Forward pass (kernels) + pure-JAX reference (for validation)
# -----------------------------------------------------------------------------
@jax.jit
def simple_cnn_forward(params, x_nchw):
    x = jnp.transpose(x_nchw, (0, 2, 3, 1)).astype(jnp.float32)   # NCHW -> NHWC
    x = conv_relu_pool(x, params["conv1_w"], params["conv1_b"])   # relu(conv1)+pool
    x = conv_relu_pool(x, params["conv2_w"], params["conv2_b"])   # relu(conv2)+pool
    xf = x.reshape(x.shape[0], -1)     # NHWC flatten; NCHW permutation is in fc1_w
    return fc_head(xf, params["fc1_w"], params["fc1_b"],
                   params["fc2_w"], params["fc2_b"], NUM_CLASSES)


def reference_forward(raw, x_nchw):
    """Pure-JAX f32 reference matching the PyTorch module semantics."""
    x = jnp.transpose(x_nchw, (0, 2, 3, 1)).astype(jnp.float32)

    def conv_relu(x, w, b):
        y = lax.conv_general_dilated(
            x, jnp.transpose(w, (2, 3, 1, 0)), (1, 1), "SAME",
            dimension_numbers=("NHWC", "HWIO", "NHWC"),
            precision=lax.Precision.HIGHEST)
        return jnp.maximum(y + b, 0.0)

    def pool(x):
        return lax.reduce_window(x, -jnp.inf, lax.max,
                                 (1, 2, 2, 1), (1, 2, 2, 1), "VALID")

    x = pool(conv_relu(x, raw["conv1_w"], raw["conv1_b"]))
    x = pool(conv_relu(x, raw["conv2_w"], raw["conv2_b"]))
    xf = jnp.transpose(x, (0, 3, 1, 2)).reshape(x.shape[0], -1)   # NCHW flatten
    h = jnp.maximum(
        jnp.dot(xf, raw["fc1_w"].T, precision=lax.Precision.HIGHEST)
        + raw["fc1_b"], 0.0)
    return (jnp.dot(h, raw["fc2_w"].T, precision=lax.Precision.HIGHEST)
            + raw["fc2_b"])


if __name__ == "__main__":
    key = jax.random.PRNGKey(0)
    pkey, xkey = jax.random.split(key)
    raw = init_raw_params(pkey)
    params = pack_params(raw)
    x = jax.random.normal(xkey, (BATCH, 3, IMG_H, IMG_W), jnp.float32)  # NCHW

    logits = simple_cnn_forward(params, x)
    jax.block_until_ready(logits)
    assert logits.shape == (BATCH, NUM_CLASSES), logits.shape

    ref = reference_forward(raw, x)
    err = float(jnp.max(jnp.abs(logits - ref)))
    assert err < 0.1, f"kernel/reference mismatch: max abs err = {err}"
    print("KERNEL_OK")
</pallas_src>

<mosaic_0001>
module attributes {stable_mosaic.version = 11 : i64} {
  func.func @_conv_relu_pool_kernel(%arg0: i32, %arg1: memref<1x9x54xf32, #tpu.memory_space<vmem>>, %arg2: memref<1x9x54xf32, #tpu.memory_space<vmem>>, %arg3: memref<3x54x512xbf16, #tpu.memory_space<vmem>>, %arg4: memref<1x512xf32, #tpu.memory_space<vmem>>, %arg5: memref<1x8x256xf32, #tpu.memory_space<vmem>>) attributes {dimension_semantics = [#tpu.dimension_semantics<parallel>], iteration_bounds = array<i64: 2>, scalar_prefetch = 0 : i64, scratch_operands = 0 : i64, tpu.core_type = #tpu.core_type<tc>, window_params = [{transform_indices = @transform_0, window_bounds = array<i64: 1, 9, 54>}, {transform_indices = @transform_1, window_bounds = array<i64: 1, 9, 54>}, {pipeline_mode = #tpu.pipeline_mode<synchronous>, transform_indices = @transform_2, window_bounds = array<i64: 3, 54, 512>}, {pipeline_mode = #tpu.pipeline_mode<synchronous>, transform_indices = @transform_3, window_bounds = array<i64: 1, 512>}, {transform_indices = @transform_4, window_bounds = array<i64: 1, 8, 256>}]} {
    %c0 = arith.constant 0 : index
    %c0_0 = arith.constant 0 : index
    %c0_1 = arith.constant 0 : index
    %0 = vector.load %arg1[%c0, %c0_0, %c0_1] : memref<1x9x54xf32, #tpu.memory_space<vmem>>, vector<1x9x54xf32>
    %1 = vector.shape_cast %0 : vector<1x9x54xf32> to vector<9x54xf32>
    %c0_2 = arith.constant 0 : index
    %c0_3 = arith.constant 0 : index
    %c0_4 = arith.constant 0 : index
    %2 = vector.load %arg2[%c0_2, %c0_3, %c0_4] : memref<1x9x54xf32, #tpu.memory_space<vmem>>, vector<1x9x54xf32>
    %3 = vector.shape_cast %2 : vector<1x9x54xf32> to vector<9x54xf32>
    %4 = vector.extract_strided_slice %1 {offsets = [0, 0], sizes = [8, 54], strides = [1, 1]} : vector<9x54xf32> to vector<8x54xf32>
    %5 = arith.truncf %4 : vector<8x54xf32> to vector<8x54xbf16>
    %6 = vector.extract_strided_slice %1 {offsets = [1, 0], sizes = [8, 54], strides = [1, 1]} : vector<9x54xf32> to vector<8x54xf32>
    %7 = arith.truncf %6 : vector<8x54xf32> to vector<8x54xbf16>
    %8 = vector.extract_strided_slice %3 {offsets = [0, 0], sizes = [8, 54], strides = [1, 1]} : vector<9x54xf32> to vector<8x54xf32>
    %9 = arith.truncf %8 : vector<8x54xf32> to vector<8x54xbf16>
    %10 = vector.extract_strided_slice %3 {offsets = [1, 0], sizes = [8, 54], strides = [1, 1]} : vector<9x54xf32> to vector<8x54xf32>
    %11 = arith.truncf %10 : vector<8x54xf32> to vector<8x54xbf16>
    %c0_5 = arith.constant 0 : index
    %c0_6 = arith.constant 0 : index
    %c0_7 = arith.constant 0 : index
    %12 = vector.load %arg3[%c0_5, %c0_6, %c0_7] : memref<3x54x512xbf16, #tpu.memory_space<vmem>>, vector<1x54x512xbf16>
    %13 = vector.shape_cast %12 : vector<1x54x512xbf16> to vector<54x512xbf16>
    %cst = arith.constant dense<0.000000e+00> : vector<8x512xf32>
    %14 = tpu.matmul %5, %13, %cst {dimension_numbers = #tpu.dot_dimension_numbers<[1], [0], [0], [1], [0, 0, 1, 1], [], []>} : vector<8x54xbf16>, vector<54x512xbf16>, vector<8x512xf32> -> vector<8x512xf32>
    %c1 = arith.constant 1 : index
    %c0_8 = arith.constant 0 : index
    %c0_9 = arith.constant 0 : index
    %15 = vector.load %arg3[%c1, %c0_8, %c0_9] : memref<3x54x512xbf16, #tpu.memory_space<vmem>>, vector<1x54x512xbf16>
    %16 = vector.shape_cast %15 : vector<1x54x512xbf16> to vector<54x512xbf16>
    %cst_10 = arith.constant dense<0.000000e+00> : vector<8x512xf32>
    %17 = tpu.matmul %9, %16, %cst_10 {dimension_numbers = #tpu.dot_dimension_numbers<[1], [0], [0], [1], [0, 0, 1, 1], [], []>} : vector<8x54xbf16>, vector<54x512xbf16>, vector<8x512xf32> -> vector<8x512xf32>
    %18 = arith.addf %14, %17 : vector<8x512xf32>
    %c2 = arith.constant 2 : index
    %c0_11 = arith.constant 0 : index
    %c0_12 = arith.constant 0 : index
    %19 = vector.load %arg3[%c2, %c0_11, %c0_12] : memref<3x54x512xbf16, #tpu.memory_space<vmem>>, vector<1x54x512xbf16>
    %20 = vector.shape_cast %19 : vector<1x54x512xbf16> to vector<54x512xbf16>
    %cst_13 = arith.constant dense<0.000000e+00> : vector<8x512xf32>
    %21 = tpu.matmul %7, %20, %cst_13 {dimension_numbers = #tpu.dot_dimension_numbers<[1], [0], [0], [1], [0, 0, 1, 1], [], []>} : vector<8x54xbf16>, vector<54x512xbf16>, vector<8x512xf32> -> vector<8x512xf32>
    %22 = arith.addf %18, %21 : vector<8x512xf32>
    %c0_14 = arith.constant 0 : index
    %c0_15 = arith.constant 0 : index
    %c0_16 = arith.constant 0 : index
    %23 = vector.load %arg3[%c0_14, %c0_15, %c0_16] : memref<3x54x512xbf16, #tpu.memory_space<vmem>>, vector<1x54x512xbf16>
    %24 = vector.shape_cast %23 : vector<1x54x512xbf16> to vector<54x512xbf16>
    %cst_17 = arith.constant dense<0.000000e+00> : vector<8x512xf32>
    %25 = tpu.matmul %9, %24, %cst_17 {dimension_numbers = #tpu.dot_dimension_numbers<[1], [0], [0], [1], [0, 0, 1, 1], [], []>} : vector<8x54xbf16>, vector<54x512xbf16>, vector<8x512xf32> -> vector<8x512xf32>
    %c1_18 = arith.constant 1 : index
    %c0_19 = arith.constant 0 : index
    %c0_20 = arith.constant 0 : index
    %26 = vector.load %arg3[%c1_18, %c0_19, %c0_20] : memref<3x54x512xbf16, #tpu.memory_space<vmem>>, vector<1x54x512xbf16>
    %27 = vector.shape_cast %26 : vector<1x54x512xbf16> to vector<54x512xbf16>
    %cst_21 = arith.constant dense<0.000000e+00> : vector<8x512xf32>
    %28 = tpu.matmul %7, %27, %cst_21 {dimension_numbers = #tpu.dot_dimension_numbers<[1], [0], [0], [1], [0, 0, 1, 1], [], []>} : vector<8x54xbf16>, vector<54x512xbf16>, vector<8x512xf32> -> vector<8x512xf32>
    %29 = arith.addf %25, %28 : vector<8x512xf32>
    %c2_22 = arith.constant 2 : index
    %c0_23 = arith.constant 0 : index
    %c0_24 = arith.constant 0 : index
    %30 = vector.load %arg3[%c2_22, %c0_23, %c0_24] : memref<3x54x512xbf16, #tpu.memory_space<vmem>>, vector<1x54x512xbf16>
    %31 = vector.shape_cast %30 : vector<1x54x512xbf16> to vector<54x512xbf16>
    %cst_25 = arith.constant dense<0.000000e+00> : vector<8x512xf32>
    %32 = tpu.matmul %11, %31, %cst_25 {dimension_numbers = #tpu.dot_dimension_numbers<[1], [0], [0], [1], [0, 0, 1, 1], [], []>} : vector<8x54xbf16>, vector<54x512xbf16>, vector<8x512xf32> -> vector<8x512xf32>
    %33 = arith.addf %29, %32 : vector<8x512xf32>
    %c0_26 = arith.constant 0 : index
    %c0_27 = arith.constant 0 : index
    %34 = vector.load %arg4[%c0_26, %c0_27] : memref<1x512xf32, #tpu.memory_space<vmem>>, vector<1x512xf32>
    %35 = vector.broadcast %34 : vector<1x512xf32> to vector<8x512xf32>
    %36 = arith.addf %22, %35 : vector<8x512xf32>
    %cst_28 = arith.constant 0.000000e+00 : f32
    %37 = vector.broadcast %cst_28 : f32 to vector<8x512xf32>
    %38 = arith.maximumf %36, %37 : vector<8x512xf32>
    %c0_29 = arith.constant 0 : index
    %c0_30 = arith.constant 0 : index
    %39 = vector.load %arg4[%c0_29, %c0_30] : memref<1x512xf32, #tpu.memory_space<vmem>>, vector<1x512xf32>
    %40 = vector.broadcast %39 : vector<1x512xf32> to vector<8x512xf32>
    %41 = arith.addf %33, %40 : vector<8x512xf32>
    %cst_31 = arith.constant 0.000000e+00 : f32
    %42 = vector.broadcast %cst_31 : f32 to vector<8x512xf32>
    %43 = arith.maximumf %41, %42 : vector<8x512xf32>
    %44 = vector.extract_strided_slice %38 {offsets = [0, 0], sizes = [8, 256], strides = [1, 1]} : vector<8x512xf32> to vector<8x256xf32>
    %45 = vector.extract_strided_slice %38 {offsets = [0, 256], sizes = [8, 256], strides = [1, 1]} : vector<8x512xf32> to vector<8x256xf32>
    %46 = arith.maximumf %44, %45 : vector<8x256xf32>
    %47 = vector.extract_strided_slice %43 {offsets = [0, 0], sizes = [8, 256], strides = [1, 1]} : vector<8x512xf32> to vector<8x256xf32>
    %48 = vector.extract_strided_slice %43 {offsets = [0, 256], sizes = [8, 256], strides = [1, 1]} : vector<8x512xf32> to vector<8x256xf32>
    %49 = arith.maximumf %47, %48 : vector<8x256xf32>
    %50 = arith.maximumf %46, %49 : vector<8x256xf32>
    %c0_32 = arith.constant 0 : index
    %c0_33 = arith.constant 0 : index
    %c0_34 = arith.constant 0 : index
    %51 = vector.load %arg5[%c0_32, %c0_33, %c0_34] : memref<1x8x256xf32, #tpu.memory_space<vmem>>, vector<1x8x256xf32>
    %52 = vector.shape_cast %51 : vector<1x8x256xf32> to vector<8x256xf32>
    %53 = vector.shape_cast %50 : vector<8x256xf32> to vector<1x8x256xf32>
    tpu.vector_store %arg5[%c0_32, %c0_33, %c0_34], %53 {strides = array<i32>} : memref<1x8x256xf32, #tpu.memory_space<vmem>>, vector<1x8x256xf32>,
    return
  }
  func.func @transform_0(%arg0: i32) -> (i32, i32, i32) {
    %c0_i32 = arith.constant 0 : i32
    %c0_i32_0 = arith.constant 0 : i32
    %c0_i32_1 = arith.constant 0 : i32
    return %arg0, %c0_i32, %c0_i32_0 : i32, i32, i32
  }
  func.func @transform_1(%arg0: i32) -> (i32, i32, i32) {
    %c0_i32 = arith.constant 0 : i32
    %c0_i32_0 = arith.constant 0 : i32
    %c0_i32_1 = arith.constant 0 : i32
    return %arg0, %c0_i32, %c0_i32_0 : i32, i32, i32
  }
  func.func @transform_2(%arg0: i32) -> (i32, i32, i32) {
    %c0_i32 = arith.constant 0 : i32
    %c0_i32_0 = arith.constant 0 : i32
    %c0_i32_1 = arith.constant 0 : i32
    %c0_i32_2 = arith.constant 0 : i32
    return %c0_i32, %c0_i32_0, %c0_i32_1 : i32, i32, i32
  }
  func.func @transform_3(%arg0: i32) -> (i32, i32) {
    %c0_i32 = arith.constant 0 : i32
    %c0_i32_0 = arith.constant 0 : i32
    %c0_i32_1 = arith.constant 0 : i32
    return %c0_i32, %c0_i32_0 : i32, i32
  }
  func.func @transform_4(%arg0: i32) -> (i32, i32, i32) {
    %c0_i32 = arith.constant 0 : i32
    %c0_i32_0 = arith.constant 0 : i32
    %c0_i32_1 = arith.constant 0 : i32
    return %arg0, %c0_i32, %c0_i32_0 : i32, i32, i32
  }
}

module attributes {stable_mosaic.version = 11 : i64} {
  func.func @_conv_relu_pool_kernel(%arg0: i32, %arg1: memref<1x5x320xf32, #tpu.memory_space<vmem>>, %arg2: memref<1x5x320xf32, #tpu.memory_space<vmem>>, %arg3: memref<3x320x512xbf16, #tpu.memory_space<vmem>>, %arg4: memref<1x512xf32, #tpu.memory_space<vmem>>, %arg5: memref<1x4x256xf32, #tpu.memory_space<vmem>>) attributes {dimension_semantics = [#tpu.dimension_semantics<parallel>], iteration_bounds = array<i64: 2>, scalar_prefetch = 0 : i64, scratch_operands = 0 : i64, tpu.core_type = #tpu.core_type<tc>, window_params = [{transform_indices = @transform_0, window_bounds = array<i64: 1, 5, 320>}, {transform_indices = @transform_1, window_bounds = array<i64: 1, 5, 320>}, {pipeline_mode = #tpu.pipeline_mode<synchronous>, transform_indices = @transform_2, window_bounds = array<i64: 3, 320, 512>}, {pipeline_mode = #tpu.pipeline_mode<synchronous>, transform_indices = @transform_3, window_bounds = array<i64: 1, 512>}, {transform_indices = @transform_4, window_bounds = array<i64: 1, 4, 256>}]} {
    %c0 = arith.constant 0 : index
    %c0_0 = arith.constant 0 : index
    %c0_1 = arith.constant 0 : index
    %0 = vector.load %arg1[%c0, %c0_0, %c0_1] : memref<1x5x320xf32, #tpu.memory_space<vmem>>, vector<1x5x320xf32>
    %1 = vector.shape_cast %0 : vector<1x5x320xf32> to vector<5x320xf32>
    %c0_2 = arith.constant 0 : index
    %c0_3 = arith.constant 0 : index
    %c0_4 = arith.constant 0 : index
    %2 = vector.load %arg2[%c0_2, %c0_3, %c0_4] : memref<1x5x320xf32, #tpu.memory_space<vmem>>, vector<1x5x320xf32>
    %3 = vector.shape_cast %2 : vector<1x5x320xf32> to vector<5x320xf32>
    %4 = vector.extract_strided_slice %1 {offsets = [0, 0], sizes = [4, 320], strides = [1, 1]} : vector<5x320xf32> to vector<4x320xf32>
    %5 = arith.truncf %4 : vector<4x320xf32> to vector<4x320xbf16>
    %6 = vector.extract_strided_slice %1 {offsets = [1, 0], sizes = [4, 320], strides = [1, 1]} : vector<5x320xf32> to vector<4x320xf32>
    %7 = arith.truncf %6 : vector<4x320xf32> to vector<4x320xbf16>
    %8 = vector.extract_strided_slice %3 {offsets = [0, 0], sizes = [4, 320], strides = [1, 1]} : vector<5x320xf32> to vector<4x320xf32>
    %9 = arith.truncf %8 : vector<4x320xf32> to vector<4x320xbf16>
    %10 = vector.extract_strided_slice %3 {offsets = [1, 0], sizes = [4, 320], strides = [1, 1]} : vector<5x320xf32> to vector<4x320xf32>
    %11 = arith.truncf %10 : vector<4x320xf32> to vector<4x320xbf16>
    %c0_5 = arith.constant 0 : index
    %c0_6 = arith.constant 0 : index
    %c0_7 = arith.constant 0 : index
    %12 = vector.load %arg3[%c0_5, %c0_6, %c0_7] : memref<3x320x512xbf16, #tpu.memory_space<vmem>>, vector<1x320x512xbf16>
    %13 = vector.shape_cast %12 : vector<1x320x512xbf16> to vector<320x512xbf16>
    %cst = arith.constant dense<0.000000e+00> : vector<4x512xf32>
    %14 = tpu.matmul %5, %13, %cst {dimension_numbers = #tpu.dot_dimension_numbers<[1], [0], [0], [1], [0, 0, 1, 1], [], []>} : vector<4x320xbf16>, vector<320x512xbf16>, vector<4x512xf32> -> vector<4x512xf32>
    %c1 = arith.constant 1 : index
    %c0_8 = arith.constant 0 : index
    %c0_9 = arith.constant 0 : index
    %15 = vector.load %arg3[%c1, %c0_8, %c0_9] : memref<3x320x512xbf16, #tpu.memory_space<vmem>>, vector<1x320x512xbf16>
    %16 = vector.shape_cast %15 : vector<1x320x512xbf16> to vector<320x512xbf16>
    %cst_10 = arith.constant dense<0.000000e+00> : vector<4x512xf32>
    %17 = tpu.matmul %9, %16, %cst_10 {dimension_numbers = #tpu.dot_dimension_numbers<[1], [0], [0], [1], [0, 0, 1, 1], [], []>} : vector<4x320xbf16>, vector<320x512xbf16>, vector<4x512xf32> -> vector<4x512xf32>
    %18 = arith.addf %14, %17 : vector<4x512xf32>
    %c2 = arith.constant 2 : index
    %c0_11 = arith.constant 0 : index
    %c0_12 = arith.constant 0 : index
    %19 = vector.load %arg3[%c2, %c0_11, %c0_12] : memref<3x320x512xbf16, #tpu.memory_space<vmem>>, vector<1x320x512xbf16>
    %20 = vector.shape_cast %19 : vector<1x320x512xbf16> to vector<320x512xbf16>
    %cst_13 = arith.constant dense<0.000000e+00> : vector<4x512xf32>
    %21 = tpu.matmul %7, %20, %cst_13 {dimension_numbers = #tpu.dot_dimension_numbers<[1], [0], [0], [1], [0, 0, 1, 1], [], []>} : vector<4x320xbf16>, vector<320x512xbf16>, vector<4x512xf32> -> vector<4x512xf32>
    %22 = arith.addf %18, %21 : vector<4x512xf32>
    %c0_14 = arith.constant 0 : index
    %c0_15 = arith.constant 0 : index
    %c0_16 = arith.constant 0 : index
    %23 = vector.load %arg3[%c0_14, %c0_15, %c0_16] : memref<3x320x512xbf16, #tpu.memory_space<vmem>>, vector<1x320x512xbf16>
    %24 = vector.shape_cast %23 : vector<1x320x512xbf16> to vector<320x512xbf16>
    %cst_17 = arith.constant dense<0.000000e+00> : vector<4x512xf32>
    %25 = tpu.matmul %9, %24, %cst_17 {dimension_numbers = #tpu.dot_dimension_numbers<[1], [0], [0], [1], [0, 0, 1, 1], [], []>} : vector<4x320xbf16>, vector<320x512xbf16>, vector<4x512xf32> -> vector<4x512xf32>
    %c1_18 = arith.constant 1 : index
    %c0_19 = arith.constant 0 : index
    %c0_20 = arith.constant 0 : index
    %26 = vector.load %arg3[%c1_18, %c0_19, %c0_20] : memref<3x320x512xbf16, #tpu.memory_space<vmem>>, vector<1x320x512xbf16>
    %27 = vector.shape_cast %26 : vector<1x320x512xbf16> to vector<320x512xbf16>
    %cst_21 = arith.constant dense<0.000000e+00> : vector<4x512xf32>
    %28 = tpu.matmul %7, %27, %cst_21 {dimension_numbers = #tpu.dot_dimension_numbers<[1], [0], [0], [1], [0, 0, 1, 1], [], []>} : vector<4x320xbf16>, vector<320x512xbf16>, vector<4x512xf32> -> vector<4x512xf32>
    %29 = arith.addf %25, %28 : vector<4x512xf32>
    %c2_22 = arith.constant 2 : index
    %c0_23 = arith.constant 0 : index
    %c0_24 = arith.constant 0 : index
    %30 = vector.load %arg3[%c2_22, %c0_23, %c0_24] : memref<3x320x512xbf16, #tpu.memory_space<vmem>>, vector<1x320x512xbf16>
    %31 = vector.shape_cast %30 : vector<1x320x512xbf16> to vector<320x512xbf16>
    %cst_25 = arith.constant dense<0.000000e+00> : vector<4x512xf32>
    %32 = tpu.matmul %11, %31, %cst_25 {dimension_numbers = #tpu.dot_dimension_numbers<[1], [0], [0], [1], [0, 0, 1, 1], [], []>} : vector<4x320xbf16>, vector<320x512xbf16>, vector<4x512xf32> -> vector<4x512xf32>
    %33 = arith.addf %29, %32 : vector<4x512xf32>
    %c0_26 = arith.constant 0 : index
    %c0_27 = arith.constant 0 : index
    %34 = vector.load %arg4[%c0_26, %c0_27] : memref<1x512xf32, #tpu.memory_space<vmem>>, vector<1x512xf32>
    %35 = vector.broadcast %34 : vector<1x512xf32> to vector<4x512xf32>
    %36 = arith.addf %22, %35 : vector<4x512xf32>
    %cst_28 = arith.constant 0.000000e+00 : f32
    %37 = vector.broadcast %cst_28 : f32 to vector<4x512xf32>
    %38 = arith.maximumf %36, %37 : vector<4x512xf32>
    %c0_29 = arith.constant 0 : index
    %c0_30 = arith.constant 0 : index
    %39 = vector.load %arg4[%c0_29, %c0_30] : memref<1x512xf32, #tpu.memory_space<vmem>>, vector<1x512xf32>
    %40 = vector.broadcast %39 : vector<1x512xf32> to vector<4x512xf32>
    %41 = arith.addf %33, %40 : vector<4x512xf32>
    %cst_31 = arith.constant 0.000000e+00 : f32
    %42 = vector.broadcast %cst_31 : f32 to vector<4x512xf32>
    %43 = arith.maximumf %41, %42 : vector<4x512xf32>
    %44 = vector.extract_strided_slice %38 {offsets = [0, 0], sizes = [4, 256], strides = [1, 1]} : vector<4x512xf32> to vector<4x256xf32>
    %45 = vector.extract_strided_slice %38 {offsets = [0, 256], sizes = [4, 256], strides = [1, 1]} : vector<4x512xf32> to vector<4x256xf32>
    %46 = arith.maximumf %44, %45 : vector<4x256xf32>
    %47 = vector.extract_strided_slice %43 {offsets = [0, 0], sizes = [4, 256], strides = [1, 1]} : vector<4x512xf32> to vector<4x256xf32>
    %48 = vector.extract_strided_slice %43 {offsets = [0, 256], sizes = [4, 256], strides = [1, 1]} : vector<4x512xf32> to vector<4x256xf32>
    %49 = arith.maximumf %47, %48 : vector<4x256xf32>
    %50 = arith.maximumf %46, %49 : vector<4x256xf32>
    %c0_32 = arith.constant 0 : index
    %c0_33 = arith.constant 0 : index
    %c0_34 = arith.constant 0 : index
    %51 = vector.load %arg5[%c0_32, %c0_33, %c0_34] : memref<1x4x256xf32, #tpu.memory_space<vmem>>, vector<1x4x256xf32>
    %52 = vector.shape_cast %51 : vector<1x4x256xf32> to vector<4x256xf32>
    %53 = vector.shape_cast %50 : vector<4x256xf32> to vector<1x4x256xf32>
    tpu.vector_store %arg5[%c0_32, %c0_33, %c0_34], %53 {strides = array<i32>} : memref<1x4x256xf32, #tpu.memory_space<vmem>>, vector<1x4x256xf32>,
    return
  }
  func.func @transform_0(%arg0: i32) -> (i32, i32, i32) {
    %c0_i32 = arith.constant 0 : i32
    %c0_i32_0 = arith.constant 0 : i32
    %c0_i32_1 = arith.constant 0 : i32
    return %arg0, %c0_i32, %c0_i32_0 : i32, i32, i32
  }
  func.func @transform_1(%arg0: i32) -> (i32, i32, i32) {
    %c0_i32 = arith.constant 0 : i32
    %c0_i32_0 = arith.constant 0 : i32
    %c0_i32_1 = arith.constant 0 : i32
    return %arg0, %c0_i32, %c0_i32_0 : i32, i32, i32
  }
  func.func @transform_2(%arg0: i32) -> (i32, i32, i32) {
    %c0_i32 = arith.constant 0 : i32
    %c0_i32_0 = arith.constant 0 : i32
    %c0_i32_1 = arith.constant 0 : i32
    %c0_i32_2 = arith.constant 0 : i32
    return %c0_i32, %c0_i32_0, %c0_i32_1 : i32, i32, i32
  }
  func.func @transform_3(%arg0: i32) -> (i32, i32) {
    %c0_i32 = arith.constant 0 : i32
    %c0_i32_0 = arith.constant 0 : i32
    %c0_i32_1 = arith.constant 0 : i32
    return %c0_i32, %c0_i32_0 : i32, i32
  }
  func.func @transform_4(%arg0: i32) -> (i32, i32, i32) {
    %c0_i32 = arith.constant 0 : i32
    %c0_i32_0 = arith.constant 0 : i32
    %c0_i32_1 = arith.constant 0 : i32
    return %arg0, %c0_i32, %c0_i32_0 : i32, i32, i32
  }
}

module attributes {stable_mosaic.version = 11 : i64} {
  func.func @_fc_head_kernel(%arg0: i32, %arg1: i32, %arg2: memref<8x256xf32, #tpu.memory_space<vmem>>, %arg3: memref<256x128xbf16, #tpu.memory_space<vmem>>, %arg4: memref<1x128xf32, #tpu.memory_space<vmem>>, %arg5: memref<128x128xbf16, #tpu.memory_space<vmem>>, %arg6: memref<1x128xf32, #tpu.memory_space<vmem>>, %arg7: memref<8x128xf32, #tpu.memory_space<vmem>>, %arg8: memref<8x128xf32, #tpu.memory_space<vmem>>) attributes {dimension_semantics = [#tpu.dimension_semantics<parallel>, #tpu.dimension_semantics<arbitrary>], iteration_bounds = array<i64: 1, 4>, scalar_prefetch = 0 : i64, scratch_operands = 1 : i64, tpu.core_type = #tpu.core_type<tc>, window_params = [{transform_indices = @transform_0, window_bounds = array<i64: 8, 256>}, {transform_indices = @transform_1, window_bounds = array<i64: 256, 128>}, {pipeline_mode = #tpu.pipeline_mode<synchronous>, transform_indices = @transform_2, window_bounds = array<i64: 1, 128>}, {pipeline_mode = #tpu.pipeline_mode<synchronous>, transform_indices = @transform_3, window_bounds = array<i64: 128, 128>}, {pipeline_mode = #tpu.pipeline_mode<synchronous>, transform_indices = @transform_4, window_bounds = array<i64: 1, 128>}, {transform_indices = @transform_5, window_bounds = array<i64: 8, 128>}]} {
    %c0_i32 = arith.constant 0 : i32
    %0 = arith.cmpi eq, %arg1, %c0_i32 : i32
    %1 = arith.extui %0 : i1 to i32
    %c0_i32_0 = arith.constant 0 : i32
    %2 = arith.cmpi ne, %1, %c0_i32_0 : i32
    scf.if %2 {
      %cst_9 = arith.constant 0.000000e+00 : f32
      %13 = vector.broadcast %cst_9 : f32 to vector<8x128xf32>
      %c0_10 = arith.constant 0 : index
      %c0_11 = arith.constant 0 : index
      %14 = vector.load %arg8[%c0_10, %c0_11] : memref<8x128xf32, #tpu.memory_space<vmem>>, vector<8x128xf32>
      tpu.vector_store %arg8[%c0_10, %c0_11], %13 {strides = array<i32>} : memref<8x128xf32, #tpu.memory_space<vmem>>, vector<8x128xf32>,
    } else {
    }
    %c0 = arith.constant 0 : index
    %c0_1 = arith.constant 0 : index
    %3 = vector.load %arg8[%c0, %c0_1] : memref<8x128xf32, #tpu.memory_space<vmem>>, vector<8x128xf32>
    %c0_2 = arith.constant 0 : index
    %c0_3 = arith.constant 0 : index
    %4 = vector.load %arg2[%c0_2, %c0_3] : memref<8x256xf32, #tpu.memory_space<vmem>>, vector<8x256xf32>
    %5 = arith.truncf %4 : vector<8x256xf32> to vector<8x256xbf16>
    %c0_4 = arith.constant 0 : index
    %c0_5 = arith.constant 0 : index
    %6 = vector.load %arg3[%c0_4, %c0_5] : memref<256x128xbf16, #tpu.memory_space<vmem>>, vector<256x128xbf16>
    %cst = arith.constant dense<0.000000e+00> : vector<8x128xf32>
    %7 = tpu.matmul %5, %6, %cst {dimension_numbers = #tpu.dot_dimension_numbers<[1], [0], [0], [1], [0, 0, 1, 1], [], []>} : vector<8x256xbf16>, vector<256x128xbf16>, vector<8x128xf32> -> vector<8x128xf32>
    %8 = arith.addf %3, %7 : vector<8x128xf32>
    %c0_6 = arith.constant 0 : index
    %c0_7 = arith.constant 0 : index
    %9 = vector.load %arg8[%c0_6, %c0_7] : memref<8x128xf32, #tpu.memory_space<vmem>>, vector<8x128xf32>
    tpu.vector_store %arg8[%c0_6, %c0_7], %8 {strides = array<i32>} : memref<8x128xf32, #tpu.memory_space<vmem>>, vector<8x128xf32>,
    %c3_i32 = arith.constant 3 : i32
    %10 = arith.cmpi eq, %arg1, %c3_i32 : i32
    %11 = arith.extui %10 : i1 to i32
    %c0_i32_8 = arith.constant 0 : i32
    %12 = arith.cmpi ne, %11, %c0_i32_8 : i32
    scf.if %12 {
      %c0_9 = arith.constant 0 : index
      %c0_10 = arith.constant 0 : index
      %13 = vector.load %arg8[%c0_9, %c0_10] : memref<8x128xf32, #tpu.memory_space<vmem>>, vector<8x128xf32>
      %c0_11 = arith.constant 0 : index
      %c0_12 = arith.constant 0 : index
      %14 = vector.load %arg4[%c0_11, %c0_12] : memref<1x128xf32, #tpu.memory_space<vmem>>, vector<1x128xf32>
      %15 = vector.broadcast %14 : vector<1x128xf32> to vector<8x128xf32>
      %16 = arith.addf %13, %15 : vector<8x128xf32>
      %cst_13 = arith.constant 0.000000e+00 : f32
      %17 = vector.broadcast %cst_13 : f32 to vector<8x128xf32>
      %18 = arith.maximumf %16, %17 : vector<8x128xf32>
      %19 = arith.truncf %18 : vector<8x128xf32> to vector<8x128xbf16>
      %c0_14 = arith.constant 0 : index
      %c0_15 = arith.constant 0 : index
      %20 = vector.load %arg5[%c0_14, %c0_15] : memref<128x128xbf16, #tpu.memory_space<vmem>>, vector<128x128xbf16>
      %cst_16 = arith.constant dense<0.000000e+00> : vector<8x128xf32>
      %21 = tpu.matmul %19, %20, %cst_16 {dimension_numbers = #tpu.dot_dimension_numbers<[1], [0], [0], [1], [0, 0, 1, 1], [], []>} : vector<8x128xbf16>, vector<128x128xbf16>, vector<8x128xf32> -> vector<8x128xf32>
      %c0_17 = arith.constant 0 : index
      %c0_18 = arith.constant 0 : index
      %22 = vector.load %arg6[%c0_17, %c0_18] : memref<1x128xf32, #tpu.memory_space<vmem>>, vector<1x128xf32>
      %23 = vector.broadcast %22 : vector<1x128xf32> to vector<8x128xf32>
      %24 = arith.addf %21, %23 : vector<8x128xf32>
      %c0_19 = arith.constant 0 : index
      %c0_20 = arith.constant 0 : index
      %25 = vector.load %arg7[%c0_19, %c0_20] : memref<8x128xf32, #tpu.memory_space<vmem>>, vector<8x128xf32>
      tpu.vector_store %arg7[%c0_19, %c0_20], %24 {strides = array<i32>} : memref<8x128xf32, #tpu.memory_space<vmem>>, vector<8x128xf32>,
    } else {
    }
    return
  }
  func.func @transform_0(%arg0: i32, %arg1: i32) -> (i32, i32) {
    %c0_i32 = arith.constant 0 : i32
    return %arg0, %arg1 : i32, i32
  }
  func.func @transform_1(%arg0: i32, %arg1: i32) -> (i32, i32) {
    %c0_i32 = arith.constant 0 : i32
    %c0_i32_0 = arith.constant 0 : i32
    return %arg1, %c0_i32 : i32, i32
  }
  func.func @transform_2(%arg0: i32, %arg1: i32) -> (i32, i32) {
    %c0_i32 = arith.constant 0 : i32
    %c0_i32_0 = arith.constant 0 : i32
    %c0_i32_1 = arith.constant 0 : i32
    return %c0_i32, %c0_i32_0 : i32, i32
  }
  func.func @transform_3(%arg0: i32, %arg1: i32) -> (i32, i32) {
    %c0_i32 = arith.constant 0 : i32
    %c0_i32_0 = arith.constant 0 : i32
    %c0_i32_1 = arith.constant 0 : i32
    return %c0_i32, %c0_i32_0 : i32, i32
  }
  func.func @transform_4(%arg0: i32, %arg1: i32) -> (i32, i32) {
    %c0_i32 = arith.constant 0 : i32
    %c0_i32_0 = arith.constant 0 : i32
    %c0_i32_1 = arith.constant 0 : i32
    return %c0_i32, %c0_i32_0 : i32, i32
  }
  func.func @transform_5(%arg0: i32, %arg1: i32) -> (i32, i32) {
    %c0_i32 = arith.constant 0 : i32
    %c0_i32_0 = arith.constant 0 : i32
    return %arg0, %c0_i32 : i32, i32
  }
}

</mosaic_0001>

<llo_original>
// kernel: simple_cnn_forward.3
$region0: #{simple_cnn_forward.3}
  #allocation0 [shape = 'u32[]', space=smem, size = 0x4, offset = 0x4, fixed_abs, tag = 'smem constant byte address 0x4 - core index']
  #allocation1 [shape = 'u32[144,128]{1,0:T(1,128)}', space=vmem, size = 0x12000, scoped, tag = 'internal scratch']
  %s0 = inlined_call_operand.vmem [shape: f32[2,9,54], index: 0, kind: input, shape index: {}]
  %s1 = inlined_call_operand.vmem [shape: f32[2,9,54], index: 1, kind: input, shape index: {}]
  %s2 = inlined_call_operand.hbm [shape: bf16[3,54,512], index: 2, kind: input, shape index: {}]
  %s3 = inlined_call_operand.hbm [shape: f32[1,512], index: 3, kind: input, shape index: {}]
  %s4 = inlined_call_operand.vmem [shape: f32[2,8,256], index: 4, kind: output, shape index: {}]
  %s5 = sld [smem:[#allocation0]]
  $region57: #{simple_cnn_forward.3} parent=0
    _
  %s7 = ssub.s32 1, %s5
  %s8 = scalar_select 0, %s7, %s5
  $region1: #{simple_cnn_forward.3} parent=0
    #allocation2 [shape = 'u8[172032]{0}', space=vmem, size = 0x2a000, scoped, tag = 'input window, operand 2, single buffered']
    #allocation3 [shape = 's32[2]{0}', space=sflag, size = 0x8, scoped, tag = 'scoped memory for simple_cnn_forward.3']
    #allocation4 [shape = 'u8[2048]{0}', space=vmem, size = 0x800, scoped, tag = 'input window, operand 3, single buffered']
    #allocation5 [shape = 's32[1]{0}', space=sflag, size = 0x4, scoped, tag = 'scoped memory for simple_cnn_forward.3']
    %9 = vsyncpa [#allocation3], 0
    %10 = vsyncpa [#allocation5], 0
    loop: start=0, step=1, limit=4
    $region2: #{simple_cnn_forward.3} parent=1 // loop_pre_header
      _
    $region3: #{simple_cnn_forward.3} parent=1 // loop_header
      %s12 = sphi 0, %s16
      %p13 = scmp.ge.s32.totalorder %s12, 4
      %s22 = sphi 0, %s24
      %s25 = sphi 0, %s22
      %s26 = sphi 0, %s25
      %s42 = sphi 0, %s26
      %s48 = sphi 0, %s50
      %s51 = sphi 0, %s48
      %s52 = sphi 0, %s51
      %s68 = sphi 0, %s52
      %s72 = sphi 0, %s72
      %s74 = sphi 0, %s72
      %s75 = sphi 0, %s74
      %s89 = sphi 0, %s75
      %s93 = sphi 0, %s93
      %s95 = sphi 0, %s93
      %s96 = sphi 0, %s95
      %s110 = sphi 0, %s96
      %s116 = sphi 0, %s118
      %s119 = sphi 0, %s116
      %s120 = sphi 0, %s119
      %s136 = sphi 0, %s120
    $region4: #{simple_cnn_forward.3} parent=1 // loop_header_branch
      %15 = sbr.rel (%p13) target = $region8
    $region5: #{simple_cnn_forward.3} parent=1 // loop_body
      %s17 = ssub.s32 %s12, 1
      %s18 = ssub.s32 %s12, 2
      %s19 = sadd.s32 %s12, 1
      %s20 = ssub.s32 %s12, %s19
      %p21 = scmp.eq.s32.totalorder %s20, 0
      %s23 = sadd.s32 %s22, 1
      %s24 = scalar_select %p21, %s22, %s23
      %p27 = pneg %p21
      %p28 = scmp.eq.s32.totalorder %s12, 1
      %p29 = por %p27, %p28
      %p30 = scmp.ne.s32.totalorder %s22, %s25
      %p31 = scmp.eq.s32.totalorder %s12, 0
      %p32 = por %p30, %p31
      %p33 = scmp.ne.s32.totalorder %s22, %s25
      %p34 = scmp.eq.s32.totalorder %s17, 1
      %p35 = por %p33, %p34
      %p36 = scmp.ne.s32.totalorder %s25, %s26
      %p37 = scmp.eq.s32.totalorder %s17, 0
      %p38 = por %p36, %p37
      %p39 = scmp.ne.s32.totalorder %s25, %s26
      %p40 = scmp.eq.s32.totalorder %s18, 1
      %p41 = por %p39, %p40
      %p43 = scmp.ne.s32.totalorder %s26, %s42
      %p44 = scmp.eq.s32.totalorder %s18, 0
      %p45 = por %p43, %p44
      %s46 = ssub.s32 %s12, %s19
      %p47 = scmp.eq.s32.totalorder %s46, 0
      %s49 = sadd.s32 %s48, 1
      %s50 = scalar_select %p47, %s48, %s49
      %p53 = pneg %p47
      %p54 = scmp.eq.s32.totalorder %s12, 1
      %p55 = por %p53, %p54
      %p56 = scmp.ne.s32.totalorder %s48, %s51
      %p57 = scmp.eq.s32.totalorder %s12, 0
      %p58 = por %p56, %p57
      %p59 = scmp.ne.s32.totalorder %s48, %s51
      %p60 = scmp.eq.s32.totalorder %s17, 1
      %p61 = por %p59, %p60
      %p62 = scmp.ne.s32.totalorder %s51, %s52
      %p63 = scmp.eq.s32.totalorder %s17, 0
      %p64 = por %p62, %p63
      %p65 = scmp.ne.s32.totalorder %s51, %s52
      %p66 = scmp.eq.s32.totalorder %s18, 1
      %p67 = por %p65, %p66
      %p69 = scmp.ne.s32.totalorder %s52, %s68
      %p70 = scmp.eq.s32.totalorder %s18, 0
      %p71 = por %p69, %p70
      %s73 = sadd.s32 %s72, 1
      %p76 = scmp.eq.s32.totalorder %s12, 1
      %p77 = scmp.ne.s32.totalorder %s72, %s74
      %p78 = scmp.eq.s32.totalorder %s12, 0
      %p79 = por %p77, %p78
      %p80 = scmp.ne.s32.totalorder %s72, %s74
      %p81 = scmp.eq.s32.totalorder %s17, 1
      %p82 = por %p80, %p81
      %p83 = scmp.ne.s32.totalorder %s74, %s75
      %p84 = scmp.eq.s32.totalorder %s17, 0
      %p85 = por %p83, %p84
      %p86 = scmp.ne.s32.totalorder %s74, %s75
      %p87 = scmp.eq.s32.totalorder %s18, 1
      %p88 = por %p86, %p87
      %p90 = scmp.ne.s32.totalorder %s75, %s89
      %p91 = scmp.eq.s32.totalorder %s18, 0
      %p92 = por %p90, %p91
      %s94 = sadd.s32 %s93, 1
      %p97 = scmp.eq.s32.totalorder %s12, 1
      %p98 = scmp.ne.s32.totalorder %s93, %s95
      %p99 = scmp.eq.s32.totalorder %s12, 0
      %p100 = por %p98, %p99
      %p101 = scmp.ne.s32.totalorder %s93, %s95
      %p102 = scmp.eq.s32.totalorder %s17, 1
      %p103 = por %p101, %p102
      %p104 = scmp.ne.s32.totalorder %s95, %s96
      %p105 = scmp.eq.s32.totalorder %s17, 0
      %p106 = por %p104, %p105
      %p107 = scmp.ne.s32.totalorder %s95, %s96
      %p108 = scmp.eq.s32.totalorder %s18, 1
      %p109 = por %p107, %p108
      %p111 = scmp.ne.s32.totalorder %s96, %s110
      %p112 = scmp.eq.s32.totalorder %s18, 0
      %p113 = por %p111, %p112
      %s114 = ssub.s32 %s12, %s19
      %p115 = scmp.eq.s32.totalorder %s114, 0
      %s117 = sadd.s32 %s116, 1
      %s118 = scalar_select %p115, %s116, %s117
      %p121 = pneg %p115
      %p122 = scmp.eq.s32.totalorder %s12, 1
      %p123 = por %p121, %p122
      %p124 = scmp.ne.s32.totalorder %s116, %s119
      %p125 = scmp.eq.s32.totalorder %s12, 0
      %p126 = por %p124, %p125
      %p127 = scmp.ne.s32.totalorder %s116, %s119
      %p128 = scmp.eq.s32.totalorder %s17, 1
      %p129 = por %p127, %p128
      %p130 = scmp.ne.s32.totalorder %s119, %s120
      %p131 = scmp.eq.s32.totalorder %s17, 0
      %p132 = por %p130, %p131
      %p133 = scmp.ne.s32.totalorder %s119, %s120
      %p134 = scmp.eq.s32.totalorder %s18, 1
      %p135 = por %p133, %p134
      %p137 = scmp.ne.s32.totalorder %s120, %s136
      %p138 = scmp.eq.s32.totalorder %s18, 0
      %p139 = por %p137, %p138
      %p140 = scmp.le.s32.totalorder 1, %s12
      %p141 = scmp.lt.s32.totalorder %s12, 3
      %p142 = pnand %p140, %p141
      %p143 = pneg %p142
      // Predicated region
      $region9: #{simple_cnn_forward.3} parent=5 // pred_check
        _
      $region10: #{simple_cnn_forward.3} parent=5 // pred_check_branch
        %145 = sbr.rel (%p142) target = $region12
      $region11: #{simple_cnn_forward.3} parent=5 // pred_region
        %s146 = ssub.s32 %s12, 1
        // Predicated region
        $region13: #{simple_cnn_forward.3} parent=11 // pred_check
          %p147 = pneg %p85
        $region14: #{simple_cnn_forward.3} parent=11 // pred_check_branch
          %149 = sbr.rel (%p147) target = $region16
        $region15: #{simple_cnn_forward.3} parent=11 // pred_region
          %s151 = ssub.s32 5376, 5376
          %152 = vsyncadd [#allocation3], %s151
          %s153 = sshll.u32 [#allocation2], 4
          %s154 = int_to_ptr.vmem [resolvable:$true] %s153
          %159 = dma.hbm_to_vmem [thread:$0]  %s2, 5376, %s154, [#allocation3], 256, 256, 16
        $region16: #{simple_cnn_forward.3} parent=11 // pred_fallthru
          _
        // Predicated region
        $region17: #{simple_cnn_forward.3} parent=11 // pred_check
          %p160 = pneg %p106
        $region18: #{simple_cnn_forward.3} parent=11 // pred_check_branch
          %162 = sbr.rel (%p160) target = $region20
        $region19: #{simple_cnn_forward.3} parent=11 // pred_region
          %s164 = ssub.s32 64, 64
          %165 = vsyncadd [#allocation5], %s164
          %s167 = sshll.u32 [#allocation4], 4
          %s168 = int_to_ptr.vmem [resolvable:$true] %s167
          %170 = dma.hbm_to_vmem [thread:$0]  %s3, 64, %s168, [#allocation5]
        $region20: #{simple_cnn_forward.3} parent=11 // pred_fallthru
          _
      $region12: #{simple_cnn_forward.3} parent=5 // pred_fallthru
        _
      %p171 = scmp.lt.s32.totalorder %s12, 2
      // Predicated region
      $region21: #{simple_cnn_forward.3} parent=5 // pred_check
        %p172 = pneg %p171
      $region22: #{simple_cnn_forward.3} parent=5 // pred_check_branch
        %174 = sbr.rel (%p172) target = $region24
      $region23: #{simple_cnn_forward.3} parent=5 // pred_region
        // Predicated region
        $region25: #{simple_cnn_forward.3} parent=23 // pred_check
          %p175 = pneg %p32
        $region26: #{simple_cnn_forward.3} parent=23 // pred_check_branch
          %177 = sbr.rel (%p175) target = $region28
        $region27: #{simple_cnn_forward.3} parent=23 // pred_region
          %p178 = scmp.lt.s32.totalorder %s12, 1
          %s179 = scalar_select %p178, %s12, 1
          %s180 = smul.addr %s179, 2
          %s181 = smul.addr %s180, 8
          %s182 = scalar_lea.vmem %s0, %s181
        $region28: #{simple_cnn_forward.3} parent=23 // pred_fallthru
          _
        // Predicated region
        $region29: #{simple_cnn_forward.3} parent=23 // pred_check
          %p183 = pneg %p58
        $region30: #{simple_cnn_forward.3} parent=23 // pred_check_branch
          %185 = sbr.rel (%p183) target = $region32
        $region31: #{simple_cnn_forward.3} parent=23 // pred_region
          %p186 = scmp.lt.s32.totalorder %s12, 1
          %s187 = scalar_select %p186, %s12, 1
          %s188 = smul.addr %s187, 2
          %s189 = smul.addr %s188, 8
          %s190 = scalar_lea.vmem %s1, %s189
        $region32: #{simple_cnn_forward.3} parent=23 // pred_fallthru
          _
      $region24: #{simple_cnn_forward.3} parent=5 // pred_fallthru
        _
      %p191 = scmp.le.s32.totalorder 1, %s12
      %p192 = scmp.lt.s32.totalorder %s12, 3
      %p193 = pnand %p191, %p192
      %p194 = pneg %p193
      // Predicated region
      $region33: #{simple_cnn_forward.3} parent=5 // pred_check
        _
      $region34: #{simple_cnn_forward.3} parent=5 // pred_check_branch
        %196 = sbr.rel (%p193) target = $region36
      $region35: #{simple_cnn_forward.3} parent=5 // pred_region
        %s197 = ssub.s32 %s12, 1
        // Predicated region
        $region37: #{simple_cnn_forward.3} parent=35 // pred_check
          %p198 = pneg %p85
        $region38: #{simple_cnn_forward.3} parent=35 // pred_check_branch
          %200 = sbr.rel (%p198) target = $region40
        $region39: #{simple_cnn_forward.3} parent=35 // pred_region
          %201 = dma.done [#allocation3], 5376
        $region40: #{simple_cnn_forward.3} parent=35 // pred_fallthru
          _
        // Predicated region
        $region41: #{simple_cnn_forward.3} parent=35 // pred_check
          %p202 = pneg %p106
        $region42: #{simple_cnn_forward.3} parent=35 // pred_check_branch
          %204 = sbr.rel (%p202) target = $region44
        $region43: #{simple_cnn_forward.3} parent=35 // pred_region
          %205 = dma.done [#allocation5], 64
        $region44: #{simple_cnn_forward.3} parent=35 // pred_fallthru
          _
        %p206 = scmp.lt.s32.totalorder %s17, 1
        %s207 = scalar_select %p206, %s17, 1
        %s208 = smul.addr %s207, 2
        %s209 = smul.addr %s208, 8
        %s210 = scalar_lea.vmem %s0, %s209
        %p211 = pneg %p38
        %p212 = pneg %p35
        %p213 = scmp.lt.s32.totalorder %s17, 1
        %s214 = scalar_select %p213, %s17, 1
        %s215 = smul.addr %s214, 2
        %s216 = smul.addr %s215, 8
        %s217 = scalar_lea.vmem %s1, %s216
        %p218 = pneg %p64
        %p219 = pneg %p61
        %p220 = pneg %p85
        %p221 = pneg %p82
        %p222 = pneg %p106
        %p223 = pneg %p103
        %p224 = pneg %p132
        %p225 = pneg %p129
        %p226 = scmp.lt.s32.totalorder %s17, 1
        %s227 = scalar_select %p226, %s17, 1
        %s228 = smul.addr %s227, 2
        %s229 = smul.addr %s228, 8
        %s230 = scalar_lea.vmem %s4, %s229
        %p231 = scmp.lt.s32.totalorder %s17, 1
        %s232 = scalar_select %p231, %s17, 1
        %s233 = smul.addr %s232, 2
        %s234 = smul.addr %s233, 8
        %s235 = scalar_lea.vmem %s0, %s234
        %p236 = scmp.lt.s32.totalorder %s17, 1
        %s237 = scalar_select %p236, %s17, 1
        %s238 = smul.addr %s237, 2
        %s239 = smul.addr %s238, 8
        %s240 = scalar_lea.vmem %s1, %s239
        %p241 = scmp.lt.s32.totalorder %s17, 1
        %s242 = scalar_select %p241, %s17, 1
        %s243 = smul.addr %s242, 2
        %s244 = smul.addr %s243, 8
        %s245 = scalar_lea.vmem %s4, %s244
        %v247 = vld [vmem:[%s235] sm:$0xff]
        %v248 = vld [vmem:[%s235 + $0x8] sm:$0x1]
        %v249 = vld [vmem:[%s240] sm:$0xff]
        %v250 = vld [vmem:[%s240 + $0x8] sm:$0x1]
        %v251 = vpack.c.bf16 %v247, %v247
        %v252 = vpack.c.bf16 %v248, %v247
        %v253 = vpack.c.bf16 %v249, %v249
        %v254 = vpack.c.bf16 %v250, %v249
        %v255 = vld [vmem:[#allocation2] sm:$0xff]
        %v256 = vld [vmem:[#allocation2 + $0x8] sm:$0xff]
        %v257 = vld [vmem:[#allocation2 + $0x10] sm:$0xff]
        %v258 = vld [vmem:[#allocation2 + $0x18] sm:$0xff]
        %v259 = vld [vmem:[#allocation2 + $0x20] sm:$0xff]
        %v260 = vld [vmem:[#allocation2 + $0x28] sm:$0xff]
        %v261 = vld [vmem:[#allocation2 + $0x30] sm:$0xff]
        %v262 = vld [vmem:[#allocation2 + $0x38] sm:$0xff]
        %v263 = vld [vmem:[#allocation2 + $0x40] sm:$0xff]
        %v264 = vld [vmem:[#allocation2 + $0x48] sm:$0xff]
        %v265 = vld [vmem:[#allocation2 + $0x50] sm:$0xff]
        %v266 = vld [vmem:[#allocation2 + $0x58] sm:$0xff]
        %v267 = vld [vmem:[#allocation2 + $0x60] sm:$0x77]
        %v268 = vld [vmem:[#allocation2 + $0x68] sm:$0x77]
        %s269 = scalar_lea.vmem [#allocation2], 112
        %v270 = vld [vmem:[%s269] sm:$0xff]
        %v271 = vld [vmem:[%s269 + $0x8] sm:$0xff]
        %v272 = vld [vmem:[%s269 + $0x10] sm:$0xff]
        %v273 = vld [vmem:[%s269 + $0x18] sm:$0xff]
        %v274 = vld [vmem:[%s269 + $0x20] sm:$0xff]
        %v275 = vld [vmem:[%s269 + $0x28] sm:$0xff]
        %v276 = vld [vmem:[%s269 + $0x30] sm:$0xff]
        %v277 = vld [vmem:[%s269 + $0x38] sm:$0xff]
        %v278 = vld [vmem:[%s269 + $0x40] sm:$0xff]
        %v279 = vld [vmem:[%s269 + $0x48] sm:$0xff]
        %v280 = vld [vmem:[%s269 + $0x50] sm:$0xff]
        %v281 = vld [vmem:[%s269 + $0x58] sm:$0xff]
        %v282 = vld [vmem:[%s269 + $0x60] sm:$0x77]
        %v283 = vld [vmem:[%s269 + $0x68] sm:$0x77]
        %v298 = vunpack.c.l.b16 %v270
        %v299 = vunpack.c.h.b16 %v270
        %v300 = vunpack.c.l.b16 %v271
        %v301 = vunpack.c.h.b16 %v271
        %v302 = vunpack.c.l.b16 %v272
        %v303 = vunpack.c.h.b16 %v272
        %v304 = vunpack.c.l.b16 %v273
        %v305 = vunpack.c.h.b16 %v273
        %v306 = vunpack.c.l.b16 %v274
        %v307 = vunpack.c.h.b16 %v274
        %v308 = vunpack.c.l.b16 %v275
        %v309 = vunpack.c.h.b16 %v275
        %v310 = vunpack.c.l.b16 %v276
        %v311 = vunpack.c.h.b16 %v276
        %v312 = vunpack.c.l.b16 %v277
        %v313 = vunpack.c.h.b16 %v277
        %v314 = vunpack.c.l.b16 %v278
        %v315 = vunpack.c.h.b16 %v278
        %v316 = vunpack.c.l.b16 %v279
        %v317 = vunpack.c.h.b16 %v279
        %v318 = vunpack.c.l.b16 %v280
        %v319 = vunpack.c.h.b16 %v280
        %v320 = vunpack.c.l.b16 %v281
        %v321 = vunpack.c.h.b16 %v281
        %v322 = vunpack.c.l.b16 %v282
        %v323 = vunpack.c.h.b16 %v282
        %v324 = vunpack.c.l.b16 %v283
        %v325 = vunpack.c.h.b16 %v283
        %v326 = vpack.c.b16 %v302, %v298
        %v327 = vpack.c.b16 %v303, %v299
        %v328 = vpack.c.b16 %v304, %v300
        %v329 = vpack.c.b16 %v305, %v301
        %v330 = vpack.c.b16 %v310, %v306
        %v331 = vpack.c.b16 %v311, %v307
        %v332 = vpack.c.b16 %v312, %v308
        %v333 = vpack.c.b16 %v313, %v309
        %v334 = vpack.c.b16 %v318, %v314
        %v335 = vpack.c.b16 %v319, %v315
        %v336 = vpack.c.b16 %v320, %v316
        %v337 = vpack.c.b16 %v321, %v317
        %v338 = vpack.c.b16 %v322, %v322
        %v339 = vpack.c.b16 %v323, %v323
        %v340 = vpack.c.b16 %v324, %v324
        %v341 = vpack.c.b16 %v325, %v325
        %vm354 = vcmask 441344
        %v356 = vsel %vm354, %v253, 0
        %vm358 = vcmask 1042432
        %v360 = vsel %vm358, %v338, 0
        %v363 = vsel %vm358, %v339, 0
        %v366 = vsel %vm358, %v340, 0
        %v369 = vsel %vm358, %v341, 0
        %371 = vmatprep.subr.bf16.mxu0 %v327
        %372 = vmatpush1.bf16.msra.mxu0 %v326
        %373 = vmatprep.subr.bf16.mxu0 %v331
        %374 = vmatpush1.bf16.msra.mxu0 %v330
        %375 = vmatprep.subr.bf16.mxu0 %v335
        %376 = vmatpush1.bf16.msra.mxu0 %v334
        %377 = vmatprep.subr.bf16.mxu0 %v363
        %378 = vmatpush1.bf16.msra.mxu0 %v360
        %379 = vmatprep.subr.bf16.mxu0 0
        %380 = vmatpush1.bf16.msra.mxu0 0
        %381 = vmatprep.subr.bf16.mxu0 0
        %382 = vmatpush1.bf16.msra.mxu0 0
        %383 = vmatprep.subr.bf16.mxu0 0
        %384 = vmatpush1.bf16.msra.mxu0 0
        %385 = vmatprep.subr.bf16.mxu0 0
        %386 = vmatpush1.bf16.msra.mxu0 0
        %387 = vmatprep.subr.bf16.mxu0 0
        %388 = vmatpush1.bf16.msra.mxu0 0
        %389 = vmatprep.subr.bf16.mxu0 0
        %390 = vmatpush1.bf16.msra.mxu0 0
        %391 = vmatprep.subr.bf16.mxu0 0
        %392 = vmatpush1.bf16.msra.mxu0 0
        %393 = vmatprep.subr.bf16.mxu0 0
        %394 = vmatpush1.bf16.msra.mxu0 0
        %395 = vmatprep.subr.bf16.mxu0 0
        %396 = vmatpush1.bf16.msra.mxu0 0
        %397 = vmatprep.subr.bf16.mxu0 0
        %398 = vmatpush1.bf16.msra.mxu0 0
        %399 = vmatprep.subr.bf16.mxu0 0
        %400 = vmatpush1.bf16.msra.mxu0 0
        %401 = vmatprep.subr.bf16.mxu0 0
        %402 = vmatpush1.bf16.msra.mxu0 0
        %403 = vmatprep.mubr.bf16.mxu0 0
        %404 = vmatmul.mubr.bf16.gmra.mrb[0].mxu0 %v356
        %v405 = vpop.f32.mrb[0].mxu0
        %v406 = vadd.f32 0.0, %v405
        %v407 = vpop.f32.mrb[0].mxu0
        %v408 = vadd.f32 0.0, %v407
        %v409 = vpop.f32.mrb[0].mxu0
        %v410 = vpop.f32.mrb[0].mxu0
        %411 = vdwg.mxu0
        %412 = vmatprep.subr.bf16.mxu0 %v329
        %413 = vmatpush1.bf16.msra.mxu0 %v328
        %414 = vmatprep.subr.bf16.mxu0 %v333
        %415 = vmatpush1.bf16.msra.mxu0 %v332
        %416 = vmatprep.subr.bf16.mxu0 %v337
        %417 = vmatpush1.bf16.msra.mxu0 %v336
        %418 = vmatprep.subr.bf16.mxu0 %v369
        %419 = vmatpush1.bf16.msra.mxu0 %v366
        %420 = vmatprep.subr.bf16.mxu0 0
        %421 = vmatpush1.bf16.msra.mxu0 0
        %422 = vmatprep.subr.bf16.mxu0 0
        %423 = vmatpush1.bf16.msra.mxu0 0
        %424 = vmatprep.subr.bf16.mxu0 0
        %425 = vmatpush1.bf16.msra.mxu0 0
        %426 = vmatprep.subr.bf16.mxu0 0
        %427 = vmatpush1.bf16.msra.mxu0 0
        %428 = vmatprep.subr.bf16.mxu0 0
        %429 = vmatpush1.bf16.msra.mxu0 0
        %430 = vmatprep.subr.bf16.mxu0 0
        %431 = vmatpush1.bf16.msra.mxu0 0
        %432 = vmatprep.subr.bf16.mxu0 0
        %433 = vmatpush1.bf16.msra.mxu0 0
        %434 = vmatprep.subr.bf16.mxu0 0
        %435 = vmatpush1.bf16.msra.mxu0 0
        %436 = vmatprep.subr.bf16.mxu0 0
        %437 = vmatpush1.bf16.msra.mxu0 0
        %438 = vmatprep.subr.bf16.mxu0 0
        %439 = vmatpush1.bf16.msra.mxu0 0
        %440 = vmatprep.subr.bf16.mxu0 0
        %441 = vmatpush1.bf16.msra.mxu0 0
        %442 = vmatprep.subr.bf16.mxu0 0
        %443 = vmatpush1.bf16.msra.mxu0 0
        %444 = vmatprep.mubr.bf16.mxu0 0
        %445 = vmatmul.mubr.bf16.gmra.mrb[0].mxu0 %v356
        %v446 = vpop.f32.mrb[0].mxu0
        %v447 = vadd.f32 0.0, %v446
        %v448 = vpop.f32.mrb[0].mxu0
        %v449 = vadd.f32 0.0, %v448
        %v450 = vpop.f32.mrb[0].mxu0
        %v451 = vpop.f32.mrb[0].mxu0
        %452 = vdwg.mxu0
        %v467 = vunpack.c.l.b16 %v255
        %v468 = vunpack.c.h.b16 %v255
        %v469 = vunpack.c.l.b16 %v256
        %v470 = vunpack.c.h.b16 %v256
        %v471 = vunpack.c.l.b16 %v257
        %v472 = vunpack.c.h.b16 %v257
        %v473 = vunpack.c.l.b16 %v258
        %v474 = vunpack.c.h.b16 %v258
        %v475 = vunpack.c.l.b16 %v259
        %v476 = vunpack.c.h.b16 %v259
        %v477 = vunpack.c.l.b16 %v260
        %v478 = vunpack.c.h.b16 %v260
        %v479 = vunpack.c.l.b16 %v261
        %v480 = vunpack.c.h.b16 %v261
        %v481 = vunpack.c.l.b16 %v262
        %v482 = vunpack.c.h.b16 %v262
        %v483 = vunpack.c.l.b16 %v263
        %v484 = vunpack.c.h.b16 %v263
        %v485 = vunpack.c.l.b16 %v264
        %v486 = vunpack.c.h.b16 %v264
        %v487 = vunpack.c.l.b16 %v265
        %v488 = vunpack.c.h.b16 %v265
        %v489 = vunpack.c.l.b16 %v266
        %v490 = vunpack.c.h.b16 %v266
        %v491 = vunpack.c.l.b16 %v267
        %v492 = vunpack.c.h.b16 %v267
        %v493 = vunpack.c.l.b16 %v268
        %v494 = vunpack.c.h.b16 %v268
        %v495 = vpack.c.b16 %v471, %v467
        %v496 = vpack.c.b16 %v472, %v468
        %v497 = vpack.c.b16 %v473, %v469
        %v498 = vpack.c.b16 %v474, %v470
        %v499 = vpack.c.b16 %v479, %v475
        %v500 = vpack.c.b16 %v480, %v476
        %v501 = vpack.c.b16 %v481, %v477
        %v502 = vpack.c.b16 %v482, %v478
        %v503 = vpack.c.b16 %v487, %v483
        %v504 = vpack.c.b16 %v488, %v484
        %v505 = vpack.c.b16 %v489, %v485
        %v506 = vpack.c.b16 %v490, %v486
        %v507 = vpack.c.b16 %v491, %v491
        %v508 = vpack.c.b16 %v492, %v492
        %v509 = vpack.c.b16 %v493, %v493
        %v510 = vpack.c.b16 %v494, %v494
        %v524 = vsel %vm354, %v251, 0
        %v527 = vsel %vm358, %v507, 0
        %v530 = vsel %vm358, %v508, 0
        %v533 = vsel %vm358, %v509, 0
        %v536 = vsel %vm358, %v510, 0
        %538 = vmatprep.subr.bf16.mxu0 %v496
        %539 = vmatpush1.bf16.msra.mxu0 %v495
        %540 = vmatprep.subr.bf16.mxu0 %v500
        %541 = vmatpush1.bf16.msra.mxu0 %v499
        %542 = vmatprep.subr.bf16.mxu0 %v504
        %543 = vmatpush1.bf16.msra.mxu0 %v503
        %544 = vmatprep.subr.bf16.mxu0 %v530
        %545 = vmatpush1.bf16.msra.mxu0 %v527
        %546 = vmatprep.subr.bf16.mxu0 0
        %547 = vmatpush1.bf16.msra.mxu0 0
        %548 = vmatprep.subr.bf16.mxu0 0
        %549 = vmatpush1.bf16.msra.mxu0 0
        %550 = vmatprep.subr.bf16.mxu0 0
        %551 = vmatpush1.bf16.msra.mxu0 0
        %552 = vmatprep.subr.bf16.mxu0 0
        %553 = vmatpush1.bf16.msra.mxu0 0
        %554 = vmatprep.subr.bf16.mxu0 0
        %555 = vmatpush1.bf16.msra.mxu0 0
        %556 = vmatprep.subr.bf16.mxu0 0
        %557 = vmatpush1.bf16.msra.mxu0 0
        %558 = vmatprep.subr.bf16.mxu0 0
        %559 = vmatpush1.bf16.msra.mxu0 0
        %560 = vmatprep.subr.bf16.mxu0 0
        %561 = vmatpush1.bf16.msra.mxu0 0
        %562 = vmatprep.subr.bf16.mxu0 0
        %563 = vmatpush1.bf16.msra.mxu0 0
        %564 = vmatprep.subr.bf16.mxu0 0
        %565 = vmatpush1.bf16.msra.mxu0 0
        %566 = vmatprep.subr.bf16.mxu0 0
        %567 = vmatpush1.bf16.msra.mxu0 0
        %568 = vmatprep.subr.bf16.mxu0 0
        %569 = vmatpush1.bf16.msra.mxu0 0
        %570 = vmatprep.mubr.bf16.mxu0 0
        %571 = vmatmul.mubr.bf16.gmra.mrb[0].mxu0 %v524
        %v572 = vpop.f32.mrb[0].mxu0
        %v573 = vadd.f32 %v406, %v572
        %v574 = vpop.f32.mrb[0].mxu0
        %v575 = vadd.f32 %v408, %v574
        %v576 = vpop.f32.mrb[0].mxu0
        %v577 = vpop.f32.mrb[0].mxu0
        %578 = vdwg.mxu0
        %579 = vmatprep.subr.bf16.mxu0 %v498
        %580 = vmatpush1.bf16.msra.mxu0 %v497
        %581 = vmatprep.subr.bf16.mxu0 %v502
        %582 = vmatpush1.bf16.msra.mxu0 %v501
        %583 = vmatprep.subr.bf16.mxu0 %v506
        %584 = vmatpush1.bf16.msra.mxu0 %v505
        %585 = vmatprep.subr.bf16.mxu0 %v536
        %586 = vmatpush1.bf16.msra.mxu0 %v533
        %587 = vmatprep.subr.bf16.mxu0 0
        %588 = vmatpush1.bf16.msra.mxu0 0
        %589 = vmatprep.subr.bf16.mxu0 0
        %590 = vmatpush1.bf16.msra.mxu0 0
        %591 = vmatprep.subr.bf16.mxu0 0
        %592 = vmatpush1.bf16.msra.mxu0 0
        %593 = vmatprep.subr.bf16.mxu0 0
        %594 = vmatpush1.bf16.msra.mxu0 0
        %595 = vmatprep.subr.bf16.mxu0 0
        %596 = vmatpush1.bf16.msra.mxu0 0
        %597 = vmatprep.subr.bf16.mxu0 0
        %598 = vmatpush1.bf16.msra.mxu0 0
        %599 = vmatprep.subr.bf16.mxu0 0
        %600 = vmatpush1.bf16.msra.mxu0 0
        %601 = vmatprep.subr.bf16.mxu0 0
        %602 = vmatpush1.bf16.msra.mxu0 0
        %603 = vmatprep.subr.bf16.mxu0 0
        %604 = vmatpush1.bf16.msra.mxu0 0
        %605 = vmatprep.subr.bf16.mxu0 0
        %606 = vmatpush1.bf16.msra.mxu0 0
        %607 = vmatprep.subr.bf16.mxu0 0
        %608 = vmatpush1.bf16.msra.mxu0 0
        %609 = vmatprep.subr.bf16.mxu0 0
        %610 = vmatpush1.bf16.msra.mxu0 0
        %611 = vmatprep.mubr.bf16.mxu0 0
        %612 = vmatmul.mubr.bf16.gmra.mrb[0].mxu0 %v524
        %v613 = vpop.f32.mrb[0].mxu0
        %v614 = vadd.f32 %v447, %v613
        %v615 = vpop.f32.mrb[0].mxu0
        %v616 = vadd.f32 %v449, %v615
        %v617 = vpop.f32.mrb[0].mxu0
        %v618 = vpop.f32.mrb[0].mxu0
        %619 = vdwg.mxu0
        %s620 = scalar_lea.vmem [#allocation2], 224
        %v621 = vld [vmem:[%s620] sm:$0xff]
        %v622 = vld [vmem:[%s620 + $0x8] sm:$0xff]
        %v623 = vld [vmem:[%s620 + $0x10] sm:$0xff]
        %v624 = vld [vmem:[%s620 + $0x18] sm:$0xff]
        %v625 = vld [vmem:[%s620 + $0x20] sm:$0xff]
        %v626 = vld [vmem:[%s620 + $0x28] sm:$0xff]
        %v627 = vld [vmem:[%s620 + $0x30] sm:$0xff]
        %v628 = vld [vmem:[%s620 + $0x38] sm:$0xff]
        %v629 = vld [vmem:[%s620 + $0x40] sm:$0xff]
        %v630 = vld [vmem:[%s620 + $0x48] sm:$0xff]
        %v631 = vld [vmem:[%s620 + $0x50] sm:$0xff]
        %v632 = vld [vmem:[%s620 + $0x58] sm:$0xff]
        %v633 = vld [vmem:[%s620 + $0x60] sm:$0x77]
        %v634 = vld [vmem:[%s620 + $0x68] sm:$0x77]
        %v636 = vshrl.u32 %v252, 16
        %v638 = vshll.u32 %v252, 16
        %v640 = vrot.slane %v638, 1
        %v641 = vor.u32 %v636, %v640
        %v656 = vunpack.c.l.b16 %v621
        %v657 = vunpack.c.h.b16 %v621
        %v658 = vunpack.c.l.b16 %v622
        %v659 = vunpack.c.h.b16 %v622
        %v660 = vunpack.c.l.b16 %v623
        %v661 = vunpack.c.h.b16 %v623
        %v662 = vunpack.c.l.b16 %v624
        %v663 = vunpack.c.h.b16 %v624
        %v664 = vunpack.c.l.b16 %v625
        %v665 = vunpack.c.h.b16 %v625
        %v666 = vunpack.c.l.b16 %v626
        %v667 = vunpack.c.h.b16 %v626
        %v668 = vunpack.c.l.b16 %v627
        %v669 = vunpack.c.h.b16 %v627
        %v670 = vunpack.c.l.b16 %v628
        %v671 = vunpack.c.h.b16 %v628
        %v672 = vunpack.c.l.b16 %v629
        %v673 = vunpack.c.h.b16 %v629
        %v674 = vunpack.c.l.b16 %v630
        %v675 = vunpack.c.h.b16 %v630
        %v676 = vunpack.c.l.b16 %v631
        %v677 = vunpack.c.h.b16 %v631
        %v678 = vunpack.c.l.b16 %v632
        %v679 = vunpack.c.h.b16 %v632
        %v680 = vunpack.c.l.b16 %v633
        %v681 = vunpack.c.h.b16 %v633
        %v682 = vunpack.c.l.b16 %v634
        %v683 = vunpack.c.h.b16 %v634
        %v684 = vpack.c.b16 %v660, %v656
        %v685 = vpack.c.b16 %v661, %v657
        %v686 = vpack.c.b16 %v662, %v658
        %v687 = vpack.c.b16 %v663, %v659
        %v688 = vpack.c.b16 %v668, %v664
        %v689 = vpack.c.b16 %v669, %v665
        %v690 = vpack.c.b16 %v670, %v666
        %v691 = vpack.c.b16 %v671, %v667
        %v692 = vpack.c.b16 %v676, %v672
        %v693 = vpack.c.b16 %v677, %v673
        %v694 = vpack.c.b16 %v678, %v674
        %v695 = vpack.c.b16 %v679, %v675
        %v696 = vpack.c.b16 %v680, %v680
        %v697 = vpack.c.b16 %v681, %v681
        %v698 = vpack.c.b16 %v682, %v682
        %v699 = vpack.c.b16 %v683, %v683
        %v713 = vsel %vm354, %v641, 0
        %v716 = vsel %vm358, %v696, 0
        %v719 = vsel %vm358, %v697, 0
        %v722 = vsel %vm358, %v698, 0
        %v725 = vsel %vm358, %v699, 0
        %727 = vmatprep.subr.bf16.mxu0 %v685
        %728 = vmatpush1.bf16.msra.mxu0 %v684
        %729 = vmatprep.subr.bf16.mxu0 %v689
        %730 = vmatpush1.bf16.msra.mxu0 %v688
        %731 = vmatprep.subr.bf16.mxu0 %v693
        %732 = vmatpush1.bf16.msra.mxu0 %v692
        %733 = vmatprep.subr.bf16.mxu0 %v719
        %734 = vmatpush1.bf16.msra.mxu0 %v716
        %735 = vmatprep.subr.bf16.mxu0 0
        %736 = vmatpush1.bf16.msra.mxu0 0
        %737 = vmatprep.subr.bf16.mxu0 0
        %738 = vmatpush1.bf16.msra.mxu0 0
        %739 = vmatprep.subr.bf16.mxu0 0
        %740 = vmatpush1.bf16.msra.mxu0 0
        %741 = vmatprep.subr.bf16.mxu0 0
        %742 = vmatpush1.bf16.msra.mxu0 0
        %743 = vmatprep.subr.bf16.mxu0 0
        %744 = vmatpush1.bf16.msra.mxu0 0
        %745 = vmatprep.subr.bf16.mxu0 0
        %746 = vmatpush1.bf16.msra.mxu0 0
        %747 = vmatprep.subr.bf16.mxu0 0
        %748 = vmatpush1.bf16.msra.mxu0 0
        %749 = vmatprep.subr.bf16.mxu0 0
        %750 = vmatpush1.bf16.msra.mxu0 0
        %751 = vmatprep.subr.bf16.mxu0 0
        %752 = vmatpush1.bf16.msra.mxu0 0
        %753 = vmatprep.subr.bf16.mxu0 0
        %754 = vmatpush1.bf16.msra.mxu0 0
        %755 = vmatprep.subr.bf16.mxu0 0
        %756 = vmatpush1.bf16.msra.mxu0 0
        %757 = vmatprep.subr.bf16.mxu0 0
        %758 = vmatpush1.bf16.msra.mxu0 0
        %759 = vmatprep.mubr.bf16.mxu0 0
        %760 = vmatmul.mubr.bf16.gmra.mrb[0].mxu0 %v713
        %v761 = vpop.f32.mrb[0].mxu0
        %v762 = vadd.f32 0.0, %v761
        %v763 = vpop.f32.mrb[0].mxu0
        %v764 = vadd.f32 0.0, %v763
        %v765 = vpop.f32.mrb[0].mxu0
        %v766 = vpop.f32.mrb[0].mxu0
        %767 = vdwg.mxu0
        %768 = vmatprep.subr.bf16.mxu0 %v687
        %769 = vmatpush1.bf16.msra.mxu0 %v686
        %770 = vmatprep.subr.bf16.mxu0 %v691
        %771 = vmatpush1.bf16.msra.mxu0 %v690
        %772 = vmatprep.subr.bf16.mxu0 %v695
        %773 = vmatpush1.bf16.msra.mxu0 %v694
        %774 = vmatprep.subr.bf16.mxu0 %v725
        %775 = vmatpush1.bf16.msra.mxu0 %v722
        %776 = vmatprep.subr.bf16.mxu0 0
        %777 = vmatpush1.bf16.msra.mxu0 0
        %778 = vmatprep.subr.bf16.mxu0 0
        %779 = vmatpush1.bf16.msra.mxu0 0
        %780 = vmatprep.subr.bf16.mxu0 0
        %781 = vmatpush1.bf16.msra.mxu0 0
        %782 = vmatprep.subr.bf16.mxu0 0
        %783 = vmatpush1.bf16.msra.mxu0 0
        %784 = vmatprep.subr.bf16.mxu0 0
        %785 = vmatpush1.bf16.msra.mxu0 0
        %786 = vmatprep.subr.bf16.mxu0 0
        %787 = vmatpush1.bf16.msra.mxu0 0
        %788 = vmatprep.subr.bf16.mxu0 0
        %789 = vmatpush1.bf16.msra.mxu0 0
        %790 = vmatprep.subr.bf16.mxu0 0
        %791 = vmatpush1.bf16.msra.mxu0 0
        %792 = vmatprep.subr.bf16.mxu0 0
        %793 = vmatpush1.bf16.msra.mxu0 0
        %794 = vmatprep.subr.bf16.mxu0 0
        %795 = vmatpush1.bf16.msra.mxu0 0
        %796 = vmatprep.subr.bf16.mxu0 0
        %797 = vmatpush1.bf16.msra.mxu0 0
        %798 = vmatprep.subr.bf16.mxu0 0
        %799 = vmatpush1.bf16.msra.mxu0 0
        %800 = vmatprep.mubr.bf16.mxu0 0
        %801 = vmatmul.mubr.bf16.gmra.mrb[0].mxu0 %v713
        %v802 = vpop.f32.mrb[0].mxu0
        %v803 = vadd.f32 0.0, %v802
        %v804 = vpop.f32.mrb[0].mxu0
        %v805 = vadd.f32 0.0, %v804
        %v806 = vpop.f32.mrb[0].mxu0
        %v807 = vpop.f32.mrb[0].mxu0
        %808 = vdwg.mxu0
        %v809 = vadd.f32 %v573, %v762
        %v810 = vadd.f32 %v575, %v764
        %v811 = vadd.f32 %v614, %v803
        %v812 = vadd.f32 %v616, %v805
        %813 = vmatprep.subr.bf16.mxu0 %v327
        %814 = vmatpush1.bf16.msra.mxu0 %v326
        %815 = vmatprep.subr.bf16.mxu0 %v331
        %816 = vmatpush1.bf16.msra.mxu0 %v330
        %817 = vmatprep.subr.bf16.mxu0 %v335
        %818 = vmatpush1.bf16.msra.mxu0 %v334
        %819 = vmatprep.subr.bf16.mxu0 %v363
        %820 = vmatpush1.bf16.msra.mxu0 %v360
        %821 = vmatprep.subr.bf16.mxu0 0
        %822 = vmatpush1.bf16.msra.mxu0 0
        %823 = vmatprep.subr.bf16.mxu0 0
        %824 = vmatpush1.bf16.msra.mxu0 0
        %825 = vmatprep.subr.bf16.mxu0 0
        %826 = vmatpush1.bf16.msra.mxu0 0
        %827 = vmatprep.subr.bf16.mxu0 0
        %828 = vmatpush1.bf16.msra.mxu0 0
        %829 = vmatprep.subr.bf16.mxu0 0
        %830 = vmatpush1.bf16.msra.mxu0 0
        %831 = vmatprep.subr.bf16.mxu0 0
        %832 = vmatpush1.bf16.msra.mxu0 0
        %833 = vmatprep.subr.bf16.mxu0 0
        %834 = vmatpush1.bf16.msra.mxu0 0
        %835 = vmatprep.subr.bf16.mxu0 0
        %836 = vmatpush1.bf16.msra.mxu0 0
        %837 = vmatprep.subr.bf16.mxu0 0
        %838 = vmatpush1.bf16.msra.mxu0 0
        %839 = vmatprep.subr.bf16.mxu0 0
        %840 = vmatpush1.bf16.msra.mxu0 0
        %841 = vmatprep.subr.bf16.mxu0 0
        %842 = vmatpush1.bf16.msra.mxu0 0
        %843 = vmatprep.subr.bf16.mxu0 0
        %844 = vmatpush1.bf16.msra.mxu0 0
        %845 = vmatprep.mubr.bf16.mxu0 0
        %846 = vmatmul.mubr.bf16.gmra.mrb[0].mxu0 %v713
        %v847 = vpop.f32.mrb[0].mxu0
        %v848 = vadd.f32 0.0, %v847
        %v849 = vpop.f32.mrb[0].mxu0
        %v850 = vadd.f32 0.0, %v849
        %v851 = vpop.f32.mrb[0].mxu0
        %v852 = vpop.f32.mrb[0].mxu0
        %853 = vdwg.mxu0
        %854 = vmatprep.subr.bf16.mxu0 %v329
        %855 = vmatpush1.bf16.msra.mxu0 %v328
        %856 = vmatprep.subr.bf16.mxu0 %v333
        %857 = vmatpush1.bf16.msra.mxu0 %v332
        %858 = vmatprep.subr.bf16.mxu0 %v337
        %859 = vmatpush1.bf16.msra.mxu0 %v336
        %860 = vmatprep.subr.bf16.mxu0 %v369
        %861 = vmatpush1.bf16.msra.mxu0 %v366
        %862 = vmatprep.subr.bf16.mxu0 0
        %863 = vmatpush1.bf16.msra.mxu0 0
        %864 = vmatprep.subr.bf16.mxu0 0
        %865 = vmatpush1.bf16.msra.mxu0 0
        %866 = vmatprep.subr.bf16.mxu0 0
        %867 = vmatpush1.bf16.msra.mxu0 0
        %868 = vmatprep.subr.bf16.mxu0 0
        %869 = vmatpush1.bf16.msra.mxu0 0
        %870 = vmatprep.subr.bf16.mxu0 0
        %871 = vmatpush1.bf16.msra.mxu0 0
        %872 = vmatprep.subr.bf16.mxu0 0
        %873 = vmatpush1.bf16.msra.mxu0 0
        %874 = vmatprep.subr.bf16.mxu0 0
        %875 = vmatpush1.bf16.msra.mxu0 0
        %876 = vmatprep.subr.bf16.mxu0 0
        %877 = vmatpush1.bf16.msra.mxu0 0
        %878 = vmatprep.subr.bf16.mxu0 0
        %879 = vmatpush1.bf16.msra.mxu0 0
        %880 = vmatprep.subr.bf16.mxu0 0
        %881 = vmatpush1.bf16.msra.mxu0 0
        %882 = vmatprep.subr.bf16.mxu0 0
        %883 = vmatpush1.bf16.msra.mxu0 0
        %884 = vmatprep.subr.bf16.mxu0 0
        %885 = vmatpush1.bf16.msra.mxu0 0
        %886 = vmatprep.mubr.bf16.mxu0 0
        %887 = vmatmul.mubr.bf16.gmra.mrb[0].mxu0 %v713
        %v888 = vpop.f32.mrb[0].mxu0
        %v889 = vadd.f32 0.0, %v888
        %v890 = vpop.f32.mrb[0].mxu0
        %v891 = vadd.f32 0.0, %v890
        %v892 = vpop.f32.mrb[0].mxu0
        %v893 = vpop.f32.mrb[0].mxu0
        %894 = vdwg.mxu0
        %895 = vmatprep.subr.bf16.mxu0 %v496
        %896 = vmatpush1.bf16.msra.mxu0 %v495
        %897 = vmatprep.subr.bf16.mxu0 %v500
        %898 = vmatpush1.bf16.msra.mxu0 %v499
        %899 = vmatprep.subr.bf16.mxu0 %v504
        %900 = vmatpush1.bf16.msra.mxu0 %v503
        %901 = vmatprep.subr.bf16.mxu0 %v530
        %902 = vmatpush1.bf16.msra.mxu0 %v527
        %903 = vmatprep.subr.bf16.mxu0 0
        %904 = vmatpush1.bf16.msra.mxu0 0
        %905 = vmatprep.subr.bf16.mxu0 0
        %906 = vmatpush1.bf16.msra.mxu0 0
        %907 = vmatprep.subr.bf16.mxu0 0
        %908 = vmatpush1.bf16.msra.mxu0 0
        %909 = vmatprep.subr.bf16.mxu0 0
        %910 = vmatpush1.bf16.msra.mxu0 0
        %911 = vmatprep.subr.bf16.mxu0 0
        %912 = vmatpush1.bf16.msra.mxu0 0
        %913 = vmatprep.subr.bf16.mxu0 0
        %914 = vmatpush1.bf16.msra.mxu0 0
        %915 = vmatprep.subr.bf16.mxu0 0
        %916 = vmatpush1.bf16.msra.mxu0 0
        %917 = vmatprep.subr.bf16.mxu0 0
        %918 = vmatpush1.bf16.msra.mxu0 0
        %919 = vmatprep.subr.bf16.mxu0 0
        %920 = vmatpush1.bf16.msra.mxu0 0
        %921 = vmatprep.subr.bf16.mxu0 0
        %922 = vmatpush1.bf16.msra.mxu0 0
        %923 = vmatprep.subr.bf16.mxu0 0
        %924 = vmatpush1.bf16.msra.mxu0 0
        %925 = vmatprep.subr.bf16.mxu0 0
        %926 = vmatpush1.bf16.msra.mxu0 0
        %927 = vmatprep.mubr.bf16.mxu0 0
        %928 = vmatmul.mubr.bf16.gmra.mrb[0].mxu0 %v356
        %v929 = vpop.f32.mrb[0].mxu0
        %v930 = vadd.f32 %v848, %v929
        %v931 = vpop.f32.mrb[0].mxu0
        %v932 = vadd.f32 %v850, %v931
        %v933 = vpop.f32.mrb[0].mxu0
        %v934 = vpop.f32.mrb[0].mxu0
        %935 = vdwg.mxu0
        %936 = vmatprep.subr.bf16.mxu0 %v498
        %937 = vmatpush1.bf16.msra.mxu0 %v497
        %938 = vmatprep.subr.bf16.mxu0 %v502
        %939 = vmatpush1.bf16.msra.mxu0 %v501
        %940 = vmatprep.subr.bf16.mxu0 %v506
        %941 = vmatpush1.bf16.msra.mxu0 %v505
        %942 = vmatprep.subr.bf16.mxu0 %v536
        %943 = vmatpush1.bf16.msra.mxu0 %v533
        %944 = vmatprep.subr.bf16.mxu0 0
        %945 = vmatpush1.bf16.msra.mxu0 0
        %946 = vmatprep.subr.bf16.mxu0 0
        %947 = vmatpush1.bf16.msra.mxu0 0
        %948 = vmatprep.subr.bf16.mxu0 0
        %949 = vmatpush1.bf16.msra.mxu0 0
        %950 = vmatprep.subr.bf16.mxu0 0
        %951 = vmatpush1.bf16.msra.mxu0 0
        %952 = vmatprep.subr.bf16.mxu0 0
        %953 = vmatpush1.bf16.msra.mxu0 0
        %954 = vmatprep.subr.bf16.mxu0 0
        %955 = vmatpush1.bf16.msra.mxu0 0
        %956 = vmatprep.subr.bf16.mxu0 0
        %957 = vmatpush1.bf16.msra.mxu0 0
        %958 = vmatprep.subr.bf16.mxu0 0
        %959 = vmatpush1.bf16.msra.mxu0 0
        %960 = vmatprep.subr.bf16.mxu0 0
        %961 = vmatpush1.bf16.msra.mxu0 0
        %962 = vmatprep.subr.bf16.mxu0 0
        %963 = vmatpush1.bf16.msra.mxu0 0
        %964 = vmatprep.subr.bf16.mxu0 0
        %965 = vmatpush1.bf16.msra.mxu0 0
        %966 = vmatprep.subr.bf16.mxu0 0
        %967 = vmatpush1.bf16.msra.mxu0 0
        %968 = vmatprep.mubr.bf16.mxu0 0
        %969 = vmatmul.mubr.bf16.gmra.mrb[0].mxu0 %v356
        %v970 = vpop.f32.mrb[0].mxu0
        %v971 = vadd.f32 %v889, %v970
        %v972 = vpop.f32.mrb[0].mxu0
        %v973 = vadd.f32 %v891, %v972
        %v974 = vpop.f32.mrb[0].mxu0
        %v975 = vpop.f32.mrb[0].mxu0
        %976 = vdwg.mxu0
        %v978 = vshrl.u32 %v254, 16
        %v980 = vshll.u32 %v254, 16
        %v982 = vrot.slane %v980, 1
        %v983 = vor.u32 %v978, %v982
        %v985 = vsel %vm354, %v983, 0
        %987 = vmatprep.subr.bf16.mxu0 %v685
        %988 = vmatpush1.bf16.msra.mxu0 %v684
        %989 = vmatprep.subr.bf16.mxu0 %v689
        %990 = vmatpush1.bf16.msra.mxu0 %v688
        %991 = vmatprep.subr.bf16.mxu0 %v693
        %992 = vmatpush1.bf16.msra.mxu0 %v692
        %993 = vmatprep.subr.bf16.mxu0 %v719
        %994 = vmatpush1.bf16.msra.mxu0 %v716
        %995 = vmatprep.subr.bf16.mxu0 0
        %996 = vmatpush1.bf16.msra.mxu0 0
        %997 = vmatprep.subr.bf16.mxu0 0
        %998 = vmatpush1.bf16.msra.mxu0 0
        %999 = vmatprep.subr.bf16.mxu0 0
        %1000 = vmatpush1.bf16.msra.mxu0 0
        %1001 = vmatprep.subr.bf16.mxu0 0
        %1002 = vmatpush1.bf16.msra.mxu0 0
        %1003 = vmatprep.subr.bf16.mxu0 0
        %1004 = vmatpush1.bf16.msra.mxu0 0
        %1005 = vmatprep.subr.bf16.mxu0 0
        %1006 = vmatpush1.bf16.msra.mxu0 0
        %1007 = vmatprep.subr.bf16.mxu0 0
        %1008 = vmatpush1.bf16.msra.mxu0 0
        %1009 = vmatprep.subr.bf16.mxu0 0
        %1010 = vmatpush1.bf16.msra.mxu0 0
        %1011 = vmatprep.subr.bf16.mxu0 0
        %1012 = vmatpush1.bf16.msra.mxu0 0
        %1013 = vmatprep.subr.bf16.mxu0 0
        %1014 = vmatpush1.bf16.msra.mxu0 0
        %1015 = vmatprep.subr.bf16.mxu0 0
        %1016 = vmatpush1.bf16.msra.mxu0 0
        %1017 = vmatprep.subr.bf16.mxu0 0
        %1018 = vmatpush1.bf16.msra.mxu0 0
        %1019 = vmatprep.mubr.bf16.mxu0 0
        %1020 = vmatmul.mubr.bf16.gmra.mrb[0].mxu0 %v985
        %v1021 = vpop.f32.mrb[0].mxu0
        %v1022 = vadd.f32 0.0, %v1021
        %v1023 = vpop.f32.mrb[0].mxu0
        %v1024 = vadd.f32 0.0, %v1023
        %v1025 = vpop.f32.mrb[0].mxu0
        %v1026 = vpop.f32.mrb[0].mxu0
        %1027 = vdwg.mxu0
        %1028 = vmatprep.subr.bf16.mxu0 %v687
        %1029 = vmatpush1.bf16.msra.mxu0 %v686
        %1030 = vmatprep.subr.bf16.mxu0 %v691
        %1031 = vmatpush1.bf16.msra.mxu0 %v690
        %1032 = vmatprep.subr.bf16.mxu0 %v695
        %1033 = vmatpush1.bf16.msra.mxu0 %v694
        %1034 = vmatprep.subr.bf16.mxu0 %v725
        %1035 = vmatpush1.bf16.msra.mxu0 %v722
        %1036 = vmatprep.subr.bf16.mxu0 0
        %1037 = vmatpush1.bf16.msra.mxu0 0
        %1038 = vmatprep.subr.bf16.mxu0 0
        %1039 = vmatpush1.bf16.msra.mxu0 0
        %1040 = vmatprep.subr.bf16.mxu0 0
        %1041 = vmatpush1.bf16.msra.mxu0 0
        %1042 = vmatprep.subr.bf16.mxu0 0
        %1043 = vmatpush1.bf16.msra.mxu0 0
        %1044 = vmatprep.subr.bf16.mxu0 0
        %1045 = vmatpush1.bf16.msra.mxu0 0
        %1046 = vmatprep.subr.bf16.mxu0 0
        %1047 = vmatpush1.bf16.msra.mxu0 0
        %1048 = vmatprep.subr.bf16.mxu0 0
        %1049 = vmatpush1.bf16.msra.mxu0 0
        %1050 = vmatprep.subr.bf16.mxu0 0
        %1051 = vmatpush1.bf16.msra.mxu0 0
        %1052 = vmatprep.subr.bf16.mxu0 0
        %1053 = vmatpush1.bf16.msra.mxu0 0
        %1054 = vmatprep.subr.bf16.mxu0 0
        %1055 = vmatpush1.bf16.msra.mxu0 0
        %1056 = vmatprep.subr.bf16.mxu0 0
        %1057 = vmatpush1.bf16.msra.mxu0 0
        %1058 = vmatprep.subr.bf16.mxu0 0
        %1059 = vmatpush1.bf16.msra.mxu0 0
        %1060 = vmatprep.mubr.bf16.mxu0 0
        %1061 = vmatmul.mubr.bf16.gmra.mrb[0].mxu0 %v985
        %v1062 = vpop.f32.mrb[0].mxu0
        %v1063 = vadd.f32 0.0, %v1062
        %v1064 = vpop.f32.mrb[0].mxu0
        %v1065 = vadd.f32 0.0, %v1064
        %v1066 = vpop.f32.mrb[0].mxu0
        %v1067 = vpop.f32.mrb[0].mxu0
        %1068 = vdwg.mxu0
        %v1069 = vadd.f32 %v930, %v1022
        %v1070 = vadd.f32 %v932, %v1024
        %v1071 = vadd.f32 %v971, %v1063
        %v1072 = vadd.f32 %v973, %v1065
        %v1073 = vld [vmem:[#allocation4] sm:$0xf]
        %v1075 = vlaneseq
        %v1076 = vshrl.u32 %v1075, 7
        %v1077 = vsub.s32 0, %v1076
        %v1078 = vrot.slane %v1073, %v1077
        %v1079 = vlaneseq
        %v1080 = vshrl.u32 %v1079, 7
        %v1081 = vsub.s32 1, %v1080
        %v1082 = vrot.slane %v1073, %v1081
        %v1083 = vlaneseq
        %v1084 = vshrl.u32 %v1083, 7
        %v1085 = vsub.s32 2, %v1084
        %v1086 = vrot.slane %v1073, %v1085
        %v1087 = vlaneseq
        %v1088 = vshrl.u32 %v1087, 7
        %v1089 = vsub.s32 3, %v1088
        %v1090 = vrot.slane %v1073, %v1089
        %v1095 = vadd.f32 %v809, %v1078
        %v1096 = vadd.f32 %v810, %v1082
        %v1097 = vadd.f32 %v811, %v1086
        %v1098 = vadd.f32 %v812, %v1090
        %v1099 = vmax.f32 %v1095, 0.0
        %v1100 = vmax.f32 %v1096, 0.0
        %v1101 = vmax.f32 %v1097, 0.0
        %v1102 = vmax.f32 %v1098, 0.0
        %v1103 = vadd.f32 %v1069, %v1078
        %v1104 = vadd.f32 %v1070, %v1082
        %v1105 = vadd.f32 %v1071, %v1086
        %v1106 = vadd.f32 %v1072, %v1090
        %v1107 = vmax.f32 %v1103, 0.0
        %v1108 = vmax.f32 %v1104, 0.0
        %v1109 = vmax.f32 %v1105, 0.0
        %v1110 = vmax.f32 %v1106, 0.0
        %v1111 = vmax.f32 %v1099, %v1101
        %v1112 = vmax.f32 %v1100, %v1102
        %v1113 = vmax.f32 %v1107, %v1109
        %v1114 = vmax.f32 %v1108, %v1110
        %v1115 = vmax.f32 %v1111, %v1113
        %v1116 = vmax.f32 %v1112, %v1114
        %1117 = vst [vmem:[%s245] sm:$0xff] %v1115
        %1118 = vst [vmem:[%s245 + $0x8] sm:$0xff] %v1116
        %p1119 = scmp.lt.s32.totalorder %s17, 1
        %s1120 = scalar_select %p1119, %s17, 1
        %s1121 = smul.addr %s1120, 2
        %s1122 = smul.addr %s1121, 8
        %s1123 = scalar_lea.vmem %s4, %s1122
        // Predicated region
        $region45: #{simple_cnn_forward.3} parent=35 // pred_check
          %p1124 = pneg %p129
        $region46: #{simple_cnn_forward.3} parent=35 // pred_check_branch
          %1126 = sbr.rel (%p1124) target = $region48
        $region47: #{simple_cnn_forward.3} parent=35 // pred_region
          _
        $region48: #{simple_cnn_forward.3} parent=35 // pred_fallthru
          _
      $region36: #{simple_cnn_forward.3} parent=5 // pred_fallthru
        _
      %p1127 = scmp.le.s32.totalorder 2, %s12
      // Predicated region
      $region49: #{simple_cnn_forward.3} parent=5 // pred_check
        %p1128 = pneg %p1127
      $region50: #{simple_cnn_forward.3} parent=5 // pred_check_branch
        %1130 = sbr.rel (%p1128) target = $region52
      $region51: #{simple_cnn_forward.3} parent=5 // pred_region
        %s1131 = ssub.s32 %s12, 2
        // Predicated region
        $region53: #{simple_cnn_forward.3} parent=51 // pred_check
          %p1132 = pneg %p135
        $region54: #{simple_cnn_forward.3} parent=51 // pred_check_branch
          %1134 = sbr.rel (%p1132) target = $region56
        $region55: #{simple_cnn_forward.3} parent=51 // pred_region
          %p1135 = scmp.lt.s32.totalorder %s18, 1
          %s1136 = scalar_select %p1135, %s18, 1
          %s1137 = smul.addr %s1136, 2
          %s1138 = smul.addr %s1137, 8
          %s1139 = scalar_lea.vmem %s4, %s1138
        $region56: #{simple_cnn_forward.3} parent=51 // pred_fallthru
          _
      $region52: #{simple_cnn_forward.3} parent=5 // pred_fallthru
        _
    $region6: #{simple_cnn_forward.3} parent=1 // loop_footer
      %s16 = sadd.s32 1, %s12
    $region7: #{simple_cnn_forward.3} parent=1 // loop_footer_branch
      %11 = sbr.rel target = $region3
    $region8: #{simple_cnn_forward.3} parent=1 // loop_exit
      _
    %1140 = vsyncpa [#allocation3], 1
    %s1141 = scalar_lea.sflag [#allocation3], 1
    %1142 = vsyncpa %s1141, 1
    %1143 = vsyncpa [#allocation5], 1

// kernel: simple_cnn_forward.5
$region0: #{simple_cnn_forward.5}
  #allocation0 [shape = 'u32[]', space=smem, size = 0x4, offset = 0x4, fixed_abs, tag = 'smem constant byte address 0x4 - core index']
  #allocation1 [shape = 'u32[144,128]{1,0:T(1,128)}', space=vmem, size = 0x12000, scoped, tag = 'internal scratch']
  #allocation2 [shape = 'f32[8,128]{1,0:T(8,128)}', space=vmem, size = 0x1000, scoped, tag = 'scratch operand']
  %s0 = inlined_call_operand.vmem [shape: f32[8,1024], index: 0, kind: input, shape index: {}]
  %s1 = inlined_call_operand.vmem [shape: bf16[1024,128], index: 1, kind: input, shape index: {}]
  %s2 = inlined_call_operand.vmem [shape: f32[1,128], index: 2, kind: input, shape index: {}]
  %s3 = inlined_call_operand.vmem [shape: bf16[128,128], index: 3, kind: input, shape index: {}]
  %s4 = inlined_call_operand.vmem [shape: f32[1,128], index: 4, kind: input, shape index: {}]
  %s5 = inlined_call_operand.vmem [shape: f32[8,128], index: 5, kind: output, shape index: {}]
  %s6 = sld [smem:[#allocation0]]
  $region61: #{simple_cnn_forward.5} parent=0
    _
  %s8 = ssub.s32 1, %s6
  %s9 = scalar_select 0, %s8, %s6
  loop: start=0, step=1, limit=6
  $region2: #{simple_cnn_forward.5} parent=0 // loop_pre_header
    _
  $region3: #{simple_cnn_forward.5} parent=0 // loop_header
    %s11 = sphi 0, %s15
    %p12 = scmp.ge.s32.totalorder %s11, 6
    %s18 = sphi 0, %s30
    %s19 = sphi 0, %s26
    %s20 = sphi 0, %s18
    %s21 = sphi 0, %s19
    %s22 = sphi 0, %s20
    %s23 = sphi 0, %s21
    %s35 = sphi 0, %s37
    %s38 = sphi 0, %s35
    %s39 = sphi 0, %s38
    %s55 = sphi 0, %s39
    %s61 = sphi 0, %s63
    %s64 = sphi 0, %s61
    %s65 = sphi 0, %s64
    %s81 = sphi 0, %s65
    %s85 = sphi 0, %s85
    %s87 = sphi 0, %s85
    %s88 = sphi 0, %s87
    %s102 = sphi 0, %s88
    %s106 = sphi 0, %s106
    %s108 = sphi 0, %s106
    %s109 = sphi 0, %s108
    %s123 = sphi 0, %s109
    %s127 = sphi 0, %s127
    %s129 = sphi 0, %s127
    %s130 = sphi 0, %s129
    %s144 = sphi 0, %s130
    %s150 = sphi 0, %s152
    %s153 = sphi 0, %s150
    %s154 = sphi 0, %s153
    %s170 = sphi 0, %s154
  $region4: #{simple_cnn_forward.5} parent=0 // loop_header_branch
    %14 = sbr.rel (%p12) target = $region8
  $region5: #{simple_cnn_forward.5} parent=0 // loop_body
    %s16 = ssub.s32 %s11, 1
    %s17 = ssub.s32 %s11, 2
    %s24 = sadd.s32 1, %s19
    %p25 = scmp.ge.s32.totalorder %s24, 4
    %s26 = scalar_select %p25, 0, %s24
    %s27 = sadd.s32 1, %s18
    %s28 = scalar_select %p25, %s27, %s18
    %p29 = scmp.ge.s32.totalorder %s28, 1
    %s30 = scalar_select %p29, 0, %s28
    %s31 = ssub.s32 %s18, %s30
    %s32 = ssub.s32 %s19, %s26
    %s33 = sor.u32 %s31, %s32
    %p34 = scmp.eq.s32.totalorder %s33, 0
    %s36 = sadd.s32 %s35, 1
    %s37 = scalar_select %p34, %s35, %s36
    %p40 = pneg %p34
    %p41 = scmp.eq.s32.totalorder %s11, 3
    %p42 = por %p40, %p41
    %p43 = scmp.ne.s32.totalorder %s35, %s38
    %p44 = scmp.eq.s32.totalorder %s11, 0
    %p45 = por %p43, %p44
    %p46 = scmp.ne.s32.totalorder %s35, %s38
    %p47 = scmp.eq.s32.totalorder %s16, 3
    %p48 = por %p46, %p47
    %p49 = scmp.ne.s32.totalorder %s38, %s39
    %p50 = scmp.eq.s32.totalorder %s16, 0
    %p51 = por %p49, %p50
    %p52 = scmp.ne.s32.totalorder %s38, %s39
    %p53 = scmp.eq.s32.totalorder %s17, 3
    %p54 = por %p52, %p53
    %p56 = scmp.ne.s32.totalorder %s39, %s55
    %p57 = scmp.eq.s32.totalorder %s17, 0
    %p58 = por %p56, %p57
    %s59 = ssub.s32 %s19, %s26
    %p60 = scmp.eq.s32.totalorder %s59, 0
    %s62 = sadd.s32 %s61, 1
    %s63 = scalar_select %p60, %s61, %s62
    %p66 = pneg %p60
    %p67 = scmp.eq.s32.totalorder %s11, 3
    %p68 = por %p66, %p67
    %p69 = scmp.ne.s32.totalorder %s61, %s64
    %p70 = scmp.eq.s32.totalorder %s11, 0
    %p71 = por %p69, %p70
    %p72 = scmp.ne.s32.totalorder %s61, %s64
    %p73 = scmp.eq.s32.totalorder %s16, 3
    %p74 = por %p72, %p73
    %p75 = scmp.ne.s32.totalorder %s64, %s65
    %p76 = scmp.eq.s32.totalorder %s16, 0
    %p77 = por %p75, %p76
    %p78 = scmp.ne.s32.totalorder %s64, %s65
    %p79 = scmp.eq.s32.totalorder %s17, 3
    %p80 = por %p78, %p79
    %p82 = scmp.ne.s32.totalorder %s65, %s81
    %p83 = scmp.eq.s32.totalorder %s17, 0
    %p84 = por %p82, %p83
    %s86 = sadd.s32 %s85, 1
    %p89 = scmp.eq.s32.totalorder %s11, 3
    %p90 = scmp.ne.s32.totalorder %s85, %s87
    %p91 = scmp.eq.s32.totalorder %s11, 0
    %p92 = por %p90, %p91
    %p93 = scmp.ne.s32.totalorder %s85, %s87
    %p94 = scmp.eq.s32.totalorder %s16, 3
    %p95 = por %p93, %p94
    %p96 = scmp.ne.s32.totalorder %s87, %s88
    %p97 = scmp.eq.s32.totalorder %s16, 0
    %p98 = por %p96, %p97
    %p99 = scmp.ne.s32.totalorder %s87, %s88
    %p100 = scmp.eq.s32.totalorder %s17, 3
    %p101 = por %p99, %p100
    %p103 = scmp.ne.s32.totalorder %s88, %s102
    %p104 = scmp.eq.s32.totalorder %s17, 0
    %p105 = por %p103, %p104
    %s107 = sadd.s32 %s106, 1
    %p110 = scmp.eq.s32.totalorder %s11, 3
    %p111 = scmp.ne.s32.totalorder %s106, %s108
    %p112 = scmp.eq.s32.totalorder %s11, 0
    %p113 = por %p111, %p112
    %p114 = scmp.ne.s32.totalorder %s106, %s108
    %p115 = scmp.eq.s32.totalorder %s16, 3
    %p116 = por %p114, %p115
    %p117 = scmp.ne.s32.totalorder %s108, %s109
    %p118 = scmp.eq.s32.totalorder %s16, 0
    %p119 = por %p117, %p118
    %p120 = scmp.ne.s32.totalorder %s108, %s109
    %p121 = scmp.eq.s32.totalorder %s17, 3
    %p122 = por %p120, %p121
    %p124 = scmp.ne.s32.totalorder %s109, %s123
    %p125 = scmp.eq.s32.totalorder %s17, 0
    %p126 = por %p124, %p125
    %s128 = sadd.s32 %s127, 1
    %p131 = scmp.eq.s32.totalorder %s11, 3
    %p132 = scmp.ne.s32.totalorder %s127, %s129
    %p133 = scmp.eq.s32.totalorder %s11, 0
    %p134 = por %p132, %p133
    %p135 = scmp.ne.s32.totalorder %s127, %s129
    %p136 = scmp.eq.s32.totalorder %s16, 3
    %p137 = por %p135, %p136
    %p138 = scmp.ne.s32.totalorder %s129, %s130
    %p139 = scmp.eq.s32.totalorder %s16, 0
    %p140 = por %p138, %p139
    %p141 = scmp.ne.s32.totalorder %s129, %s130
    %p142 = scmp.eq.s32.totalorder %s17, 3
    %p143 = por %p141, %p142
    %p145 = scmp.ne.s32.totalorder %s130, %s144
    %p146 = scmp.eq.s32.totalorder %s17, 0
    %p147 = por %p145, %p146
    %s148 = ssub.s32 %s18, %s30
    %p149 = scmp.eq.s32.totalorder %s148, 0
    %s151 = sadd.s32 %s150, 1
    %s152 = scalar_select %p149, %s150, %s151
    %p155 = pneg %p149
    %p156 = scmp.eq.s32.totalorder %s11, 3
    %p157 = por %p155, %p156
    %p158 = scmp.ne.s32.totalorder %s150, %s153
    %p159 = scmp.eq.s32.totalorder %s11, 0
    %p160 = por %p158, %p159
    %p161 = scmp.ne.s32.totalorder %s150, %s153
    %p162 = scmp.eq.s32.totalorder %s16, 3
    %p163 = por %p161, %p162
    %p164 = scmp.ne.s32.totalorder %s153, %s154
    %p165 = scmp.eq.s32.totalorder %s16, 0
    %p166 = por %p164, %p165
    %p167 = scmp.ne.s32.totalorder %s153, %s154
    %p168 = scmp.eq.s32.totalorder %s17, 3
    %p169 = por %p167, %p168
    %p171 = scmp.ne.s32.totalorder %s154, %s170
    %p172 = scmp.eq.s32.totalorder %s17, 0
    %p173 = por %p171, %p172
    %p174 = scmp.le.s32.totalorder 1, %s11
    %p175 = scmp.lt.s32.totalorder %s11, 5
    %p176 = pnand %p174, %p175
    %p177 = pneg %p176
    // Predicated region
    $region9: #{simple_cnn_forward.5} parent=5 // pred_check
      _
    $region10: #{simple_cnn_forward.5} parent=5 // pred_check_branch
      %179 = sbr.rel (%p176) target = $region12
    $region11: #{simple_cnn_forward.5} parent=5 // pred_region
      %s180 = ssub.s32 %s11, 1
      // Predicated region
      $region13: #{simple_cnn_forward.5} parent=11 // pred_check
        %p181 = pneg %p98
      $region14: #{simple_cnn_forward.5} parent=11 // pred_check_branch
        %183 = sbr.rel (%p181) target = $region16
      $region15: #{simple_cnn_forward.5} parent=11 // pred_region
        _
      $region16: #{simple_cnn_forward.5} parent=11 // pred_fallthru
        _
      // Predicated region
      $region17: #{simple_cnn_forward.5} parent=11 // pred_check
        %p184 = pneg %p119
      $region18: #{simple_cnn_forward.5} parent=11 // pred_check_branch
        %186 = sbr.rel (%p184) target = $region20
      $region19: #{simple_cnn_forward.5} parent=11 // pred_region
        _
      $region20: #{simple_cnn_forward.5} parent=11 // pred_fallthru
        _
      // Predicated region
      $region21: #{simple_cnn_forward.5} parent=11 // pred_check
        %p187 = pneg %p140
      $region22: #{simple_cnn_forward.5} parent=11 // pred_check_branch
        %189 = sbr.rel (%p187) target = $region24
      $region23: #{simple_cnn_forward.5} parent=11 // pred_region
        _
      $region24: #{simple_cnn_forward.5} parent=11 // pred_fallthru
        _
    $region12: #{simple_cnn_forward.5} parent=5 // pred_fallthru
      _
    %p190 = scmp.lt.s32.totalorder %s11, 4
    // Predicated region
    $region25: #{simple_cnn_forward.5} parent=5 // pred_check
      %p191 = pneg %p190
    $region26: #{simple_cnn_forward.5} parent=5 // pred_check_branch
      %193 = sbr.rel (%p191) target = $region28
    $region27: #{simple_cnn_forward.5} parent=5 // pred_region
      // Predicated region
      $region29: #{simple_cnn_forward.5} parent=27 // pred_check
        %p194 = pneg %p45
      $region30: #{simple_cnn_forward.5} parent=27 // pred_check_branch
        %196 = sbr.rel (%p194) target = $region32
      $region31: #{simple_cnn_forward.5} parent=27 // pred_region
        %s197 = smul.u32 2, %s19
        %p198 = scmp.lt.s32.totalorder %s18, 0
        %s199 = scalar_select %p198, %s18, 0
        %p200 = scmp.lt.s32.totalorder %s197, 7
        %s201 = scalar_select %p200, %s197, 7
        %s202 = smul.addr %s199, 8
        %s203 = sadd.s32 %s201, %s202
        %s204 = smul.addr %s203, 8
        %s205 = scalar_lea.vmem %s0, %s204
        %s206 = smul.u32 2, %s19
      $region32: #{simple_cnn_forward.5} parent=27 // pred_fallthru
        _
      // Predicated region
      $region33: #{simple_cnn_forward.5} parent=27 // pred_check
        %p207 = pneg %p71
      $region34: #{simple_cnn_forward.5} parent=27 // pred_check_branch
        %209 = sbr.rel (%p207) target = $region36
      $region35: #{simple_cnn_forward.5} parent=27 // pred_region
        %s210 = smul.u32 32, %s19
        %p211 = scmp.lt.s32.totalorder %s210, 127
        %s212 = scalar_select %p211, %s210, 127
        %s213 = smul.addr %s212, 4
        %s214 = scalar_lea.vmem %s1, %s213
        %s215 = smul.u32 32, %s19
      $region36: #{simple_cnn_forward.5} parent=27 // pred_fallthru
        _
    $region28: #{simple_cnn_forward.5} parent=5 // pred_fallthru
      _
    %p216 = scmp.le.s32.totalorder 1, %s11
    %p217 = scmp.lt.s32.totalorder %s11, 5
    %p218 = pnand %p216, %p217
    %p219 = pneg %p218
    // Predicated region
    $region37: #{simple_cnn_forward.5} parent=5 // pred_check
      _
    $region38: #{simple_cnn_forward.5} parent=5 // pred_check_branch
      %221 = sbr.rel (%p218) target = $region40
    $region39: #{simple_cnn_forward.5} parent=5 // pred_region
      %s222 = ssub.s32 %s11, 1
      %s223 = smul.u32 2, %s21
      %p224 = scmp.lt.s32.totalorder %s20, 0
      %s225 = scalar_select %p224, %s20, 0
      %p226 = scmp.lt.s32.totalorder %s223, 7
      %s227 = scalar_select %p226, %s223, 7
      %s228 = smul.addr %s225, 8
      %s229 = sadd.s32 %s227, %s228
      %s230 = smul.addr %s229, 8
      %s231 = scalar_lea.vmem %s0, %s230
      %p232 = pneg %p51
      %p233 = pneg %p48
      %s234 = smul.u32 32, %s21
      %p235 = scmp.lt.s32.totalorder %s234, 127
      %s236 = scalar_select %p235, %s234, 127
      %s237 = smul.addr %s236, 4
      %s238 = scalar_lea.vmem %s1, %s237
      %p239 = pneg %p77
      %p240 = pneg %p74
      %p241 = pneg %p98
      %p242 = pneg %p95
      %p243 = pneg %p119
      %p244 = pneg %p116
      %p245 = pneg %p140
      %p246 = pneg %p137
      %p247 = pneg %p166
      %p248 = pneg %p163
      %p249 = scmp.lt.s32.totalorder %s20, 0
      %s250 = scalar_select %p249, %s20, 0
      %s251 = smul.addr %s250, 8
      %s252 = scalar_lea.vmem %s5, %s251
      %s253 = smul.u32 2, %s21
      %p254 = scmp.lt.s32.totalorder %s20, 0
      %s255 = scalar_select %p254, %s20, 0
      %p256 = scmp.lt.s32.totalorder %s253, 7
      %s257 = scalar_select %p256, %s253, 7
      %s258 = smul.addr %s255, 8
      %s259 = sadd.s32 %s257, %s258
      %s260 = smul.addr %s259, 8
      %s261 = scalar_lea.vmem %s0, %s260
      %s262 = smul.u32 2, %s21
      %s263 = smul.u32 32, %s21
      %p264 = scmp.lt.s32.totalorder %s263, 127
      %s265 = scalar_select %p264, %s263, 127
      %s266 = smul.addr %s265, 4
      %s267 = scalar_lea.vmem %s1, %s266
      %s268 = smul.u32 32, %s21
      %p269 = scmp.lt.s32.totalorder %s20, 0
      %s270 = scalar_select %p269, %s20, 0
      %s271 = smul.addr %s270, 8
      %s272 = scalar_lea.vmem %s5, %s271
      %p274 = scmp.eq.s32.totalorder %s21, 0
      // Predicated region
      $region41: #{simple_cnn_forward.5} parent=39 // pred_check
        %p275 = pneg %p274
      $region42: #{simple_cnn_forward.5} parent=39 // pred_check_branch
        %277 = sbr.rel (%p275) target = $region44
      $region43: #{simple_cnn_forward.5} parent=39 // pred_region
        %278 = vst [vmem:[#allocation2] sm:$0xff] 0.0
      $region44: #{simple_cnn_forward.5} parent=39 // pred_fallthru
        _
      %v279 = vld [vmem:[#allocation2] sm:$0xff]
      %v280 = vld [vmem:[%s261] sm:$0xff]
      %v281 = vld [vmem:[%s261 + $0x8] sm:$0xff]
      %v282 = vpack.c.bf16 %v280, %v280
      %v283 = vpack.c.bf16 %v281, %v281
      %v284 = vld [vmem:[%s267] sm:$0xf]
      %v285 = vld [vmem:[%s267 + $0x4] sm:$0xf]
      %v286 = vld [vmem:[%s267 + $0x8] sm:$0xf]
      %v287 = vld [vmem:[%s267 + $0xc] sm:$0xf]
      %v288 = vld [vmem:[%s267 + $0x10] sm:$0xf]
      %v289 = vld [vmem:[%s267 + $0x14] sm:$0xf]
      %v290 = vld [vmem:[%s267 + $0x18] sm:$0xf]
      %v291 = vld [vmem:[%s267 + $0x1c] sm:$0xf]
      %v292 = vld [vmem:[%s267 + $0x20] sm:$0xf]
      %v293 = vld [vmem:[%s267 + $0x24] sm:$0xf]
      %v294 = vld [vmem:[%s267 + $0x28] sm:$0xf]
      %v295 = vld [vmem:[%s267 + $0x2c] sm:$0xf]
      %v296 = vld [vmem:[%s267 + $0x30] sm:$0xf]
      %v297 = vld [vmem:[%s267 + $0x34] sm:$0xf]
      %v298 = vld [vmem:[%s267 + $0x38] sm:$0xf]
      %v299 = vld [vmem:[%s267 + $0x3c] sm:$0xf]
      %v300 = vld [vmem:[%s267 + $0x40] sm:$0xf]
      %v301 = vld [vmem:[%s267 + $0x44] sm:$0xf]
      %v302 = vld [vmem:[%s267 + $0x48] sm:$0xf]
      %v303 = vld [vmem:[%s267 + $0x4c] sm:$0xf]
      %v304 = vld [vmem:[%s267 + $0x50] sm:$0xf]
      %v305 = vld [vmem:[%s267 + $0x54] sm:$0xf]
      %v306 = vld [vmem:[%s267 + $0x58] sm:$0xf]
      %v307 = vld [vmem:[%s267 + $0x5c] sm:$0xf]
      %v308 = vld [vmem:[%s267 + $0x60] sm:$0xf]
      %v309 = vld [vmem:[%s267 + $0x64] sm:$0xf]
      %v310 = vld [vmem:[%s267 + $0x68] sm:$0xf]
      %v311 = vld [vmem:[%s267 + $0x6c] sm:$0xf]
      %v312 = vld [vmem:[%s267 + $0x70] sm:$0xf]
      %v313 = vld [vmem:[%s267 + $0x74] sm:$0xf]
      %v314 = vld [vmem:[%s267 + $0x78] sm:$0xf]
      %v315 = vld [vmem:[%s267 + $0x7c] sm:$0xf]
      %v348 = vunpack.c.l.b16 %v284
      %v349 = vunpack.c.l.b16 %v285
      %v350 = vunpack.c.l.b16 %v286
      %v351 = vunpack.c.l.b16 %v287
      %v352 = vunpack.c.l.b16 %v288
      %v353 = vunpack.c.l.b16 %v289
      %v354 = vunpack.c.l.b16 %v290
      %v355 = vunpack.c.l.b16 %v291
      %v356 = vunpack.c.l.b16 %v292
      %v357 = vunpack.c.l.b16 %v293
      %v358 = vunpack.c.l.b16 %v294
      %v359 = vunpack.c.l.b16 %v295
      %v360 = vunpack.c.l.b16 %v296
      %v361 = vunpack.c.l.b16 %v297
      %v362 = vunpack.c.l.b16 %v298
      %v363 = vunpack.c.l.b16 %v299
      %v364 = vunpack.c.l.b16 %v300
      %v365 = vunpack.c.l.b16 %v301
      %v366 = vunpack.c.l.b16 %v302
      %v367 = vunpack.c.l.b16 %v303
      %v368 = vunpack.c.l.b16 %v304
      %v369 = vunpack.c.l.b16 %v305
      %v370 = vunpack.c.l.b16 %v306
      %v371 = vunpack.c.l.b16 %v307
      %v372 = vunpack.c.l.b16 %v308
      %v373 = vunpack.c.l.b16 %v309
      %v374 = vunpack.c.l.b16 %v310
      %v375 = vunpack.c.l.b16 %v311
      %v376 = vunpack.c.l.b16 %v312
      %v377 = vunpack.c.l.b16 %v313
      %v378 = vunpack.c.l.b16 %v314
      %v379 = vunpack.c.l.b16 %v315
      %v380 = vpack.c.b16 %v349, %v348
      %v381 = vpack.c.b16 %v351, %v350
      %v382 = vpack.c.b16 %v353, %v352
      %v383 = vpack.c.b16 %v355, %v354
      %v384 = vpack.c.b16 %v357, %v356
      %v385 = vpack.c.b16 %v359, %v358
      %v386 = vpack.c.b16 %v361, %v360
      %v387 = vpack.c.b16 %v363, %v362
      %v388 = vpack.c.b16 %v365, %v364
      %v389 = vpack.c.b16 %v367, %v366
      %v390 = vpack.c.b16 %v369, %v368
      %v391 = vpack.c.b16 %v371, %v370
      %v392 = vpack.c.b16 %v373, %v372
      %v393 = vpack.c.b16 %v375, %v374
      %v394 = vpack.c.b16 %v377, %v376
      %v395 = vpack.c.b16 %v379, %v378
      %412 = vmatprep.subr.bf16.mxu0 0
      %413 = vmatpush1.bf16.msra.mxu0 %v380
      %414 = vmatprep.subr.bf16.mxu0 0
      %415 = vmatpush1.bf16.msra.mxu0 %v381
      %416 = vmatprep.subr.bf16.mxu0 0
      %417 = vmatpush1.bf16.msra.mxu0 %v382
      %418 = vmatprep.subr.bf16.mxu0 0
      %419 = vmatpush1.bf16.msra.mxu0 %v383
      %420 = vmatprep.subr.bf16.mxu0 0
      %421 = vmatpush1.bf16.msra.mxu0 %v384
      %422 = vmatprep.subr.bf16.mxu0 0
      %423 = vmatpush1.bf16.msra.mxu0 %v385
      %424 = vmatprep.subr.bf16.mxu0 0
      %425 = vmatpush1.bf16.msra.mxu0 %v386
      %426 = vmatprep.subr.bf16.mxu0 0
      %427 = vmatpush1.bf16.msra.mxu0 %v387
      %428 = vmatprep.subr.bf16.mxu0 0
      %429 = vmatpush1.bf16.msra.mxu0 %v388
      %430 = vmatprep.subr.bf16.mxu0 0
      %431 = vmatpush1.bf16.msra.mxu0 %v389
      %432 = vmatprep.subr.bf16.mxu0 0
      %433 = vmatpush1.bf16.msra.mxu0 %v390
      %434 = vmatprep.subr.bf16.mxu0 0
      %435 = vmatpush1.bf16.msra.mxu0 %v391
      %436 = vmatprep.subr.bf16.mxu0 0
      %437 = vmatpush1.bf16.msra.mxu0 %v392
      %438 = vmatprep.subr.bf16.mxu0 0
      %439 = vmatpush1.bf16.msra.mxu0 %v393
      %440 = vmatprep.subr.bf16.mxu0 0
      %441 = vmatpush1.bf16.msra.mxu0 %v394
      %442 = vmatprep.subr.bf16.mxu0 0
      %443 = vmatpush1.bf16.msra.mxu0 %v395
      %444 = vmatprep.mubr.bf16.mxu0 %v283
      %445 = vmatmul.mubr.bf16.gmra.mrb[0].mxu0 %v282
      %v446 = vpop.f32.mrb[0].mxu0
      %v447 = vadd.f32 0.0, %v446
      %v448 = vpop.f32.mrb[0].mxu0
      %v449 = vpop.f32.mrb[0].mxu0
      %v450 = vpop.f32.mrb[0].mxu0
      %451 = vdwg.mxu0
      %v452 = vadd.f32 %v279, %v447
      %453 = vst [vmem:[#allocation2] sm:$0xff] %v452
      %p454 = scmp.eq.s32.totalorder %s21, 3
      // Predicated region
      $region45: #{simple_cnn_forward.5} parent=39 // pred_check
        %p455 = pneg %p454
      $region46: #{simple_cnn_forward.5} parent=39 // pred_check_branch
        %457 = sbr.rel (%p455) target = $region48
      $region47: #{simple_cnn_forward.5} parent=39 // pred_region
        %v458 = vld [vmem:[#allocation2] sm:$0xff]
        %v459 = vld [vmem:[%s2] sm:$0x1]
        %v461 = vlaneseq
        %v462 = vshrl.u32 %v461, 7
        %v463 = vsub.s32 0, %v462
        %v464 = vrot.slane %v459, %v463
        %v466 = vadd.f32 %v458, %v464
        %v467 = vmax.f32 %v466, 0.0
        %v468 = vpack.c.bf16 %v467, %v467
        %v469 = vld [vmem:[%s3] sm:$0xf]
        %v470 = vld [vmem:[%s3 + $0x4] sm:$0xf]
        %v471 = vld [vmem:[%s3 + $0x8] sm:$0xf]
        %v472 = vld [vmem:[%s3 + $0xc] sm:$0xf]
        %v473 = vld [vmem:[%s3 + $0x10] sm:$0xf]
        %v474 = vld [vmem:[%s3 + $0x14] sm:$0xf]
        %v475 = vld [vmem:[%s3 + $0x18] sm:$0xf]
        %v476 = vld [vmem:[%s3 + $0x1c] sm:$0xf]
        %v477 = vld [vmem:[%s3 + $0x20] sm:$0xf]
        %v478 = vld [vmem:[%s3 + $0x24] sm:$0xf]
        %v479 = vld [vmem:[%s3 + $0x28] sm:$0xf]
        %v480 = vld [vmem:[%s3 + $0x2c] sm:$0xf]
        %v481 = vld [vmem:[%s3 + $0x30] sm:$0xf]
        %v482 = vld [vmem:[%s3 + $0x34] sm:$0xf]
        %v483 = vld [vmem:[%s3 + $0x38] sm:$0xf]
        %v484 = vld [vmem:[%s3 + $0x3c] sm:$0xf]
        %v485 = vld [vmem:[%s4] sm:$0x1]
        %v487 = vlaneseq
        %v488 = vshrl.u32 %v487, 7
        %v489 = vsub.s32 0, %v488
        %v490 = vrot.slane %v485, %v489
        %v508 = vunpack.c.l.b16 %v469
        %v509 = vunpack.c.l.b16 %v470
        %v510 = vunpack.c.l.b16 %v471
        %v511 = vunpack.c.l.b16 %v472
        %v512 = vunpack.c.l.b16 %v473
        %v513 = vunpack.c.l.b16 %v474
        %v514 = vunpack.c.l.b16 %v475
        %v515 = vunpack.c.l.b16 %v476
        %v516 = vunpack.c.l.b16 %v477
        %v517 = vunpack.c.l.b16 %v478
        %v518 = vunpack.c.l.b16 %v479
        %v519 = vunpack.c.l.b16 %v480
        %v520 = vunpack.c.l.b16 %v481
        %v521 = vunpack.c.l.b16 %v482
        %v522 = vunpack.c.l.b16 %v483
        %v523 = vunpack.c.l.b16 %v484
        %v524 = vpack.c.b16 %v509, %v508
        %v525 = vpack.c.b16 %v511, %v510
        %v526 = vpack.c.b16 %v513, %v512
        %v527 = vpack.c.b16 %v515, %v514
        %v528 = vpack.c.b16 %v517, %v516
        %v529 = vpack.c.b16 %v519, %v518
        %v530 = vpack.c.b16 %v521, %v520
        %v531 = vpack.c.b16 %v523, %v522
        %540 = vmatprep.subr.bf16.mxu0 0
        %541 = vmatpush1.bf16.msra.mxu0 %v524
        %542 = vmatprep.subr.bf16.mxu0 0
        %543 = vmatpush1.bf16.msra.mxu0 %v525
        %544 = vmatprep.subr.bf16.mxu0 0
        %545 = vmatpush1.bf16.msra.mxu0 %v526
        %546 = vmatprep.subr.bf16.mxu0 0
        %547 = vmatpush1.bf16.msra.mxu0 %v527
        %548 = vmatprep.subr.bf16.mxu0 0
        %549 = vmatpush1.bf16.msra.mxu0 %v528
        %550 = vmatprep.subr.bf16.mxu0 0
        %551 = vmatpush1.bf16.msra.mxu0 %v529
        %552 = vmatprep.subr.bf16.mxu0 0
        %553 = vmatpush1.bf16.msra.mxu0 %v530
        %554 = vmatprep.subr.bf16.mxu0 0
        %555 = vmatpush1.bf16.msra.mxu0 %v531
        %556 = vmatprep.subr.bf16.mxu0 0
        %557 = vmatpush1.bf16.msra.mxu0 0
        %558 = vmatprep.subr.bf16.mxu0 0
        %559 = vmatpush1.bf16.msra.mxu0 0
        %560 = vmatprep.subr.bf16.mxu0 0
        %561 = vmatpush1.bf16.msra.mxu0 0
        %562 = vmatprep.subr.bf16.mxu0 0
        %563 = vmatpush1.bf16.msra.mxu0 0
        %564 = vmatprep.subr.bf16.mxu0 0
        %565 = vmatpush1.bf16.msra.mxu0 0
        %566 = vmatprep.subr.bf16.mxu0 0
        %567 = vmatpush1.bf16.msra.mxu0 0
        %568 = vmatprep.subr.bf16.mxu0 0
        %569 = vmatpush1.bf16.msra.mxu0 0
        %570 = vmatprep.subr.bf16.mxu0 0
        %571 = vmatpush1.bf16.msra.mxu0 0
        %572 = vmatprep.mubr.bf16.mxu0 0
        %573 = vmatmul.mubr.bf16.gmra.mrb[0].mxu0 %v468
        %v574 = vpop.f32.mrb[0].mxu0
        %v575 = vadd.f32 %v490, %v574
        %v576 = vpop.f32.mrb[0].mxu0
        %v577 = vpop.f32.mrb[0].mxu0
        %v578 = vpop.f32.mrb[0].mxu0
        %579 = vdwg.mxu0
        %580 = vst [vmem:[%s272] sm:$0xff] %v575
      $region48: #{simple_cnn_forward.5} parent=39 // pred_fallthru
        _
      %p581 = scmp.lt.s32.totalorder %s20, 0
      %s582 = scalar_select %p581, %s20, 0
      %s583 = smul.addr %s582, 8
      %s584 = scalar_lea.vmem %s5, %s583
      // Predicated region
      $region49: #{simple_cnn_forward.5} parent=39 // pred_check
        %p585 = pneg %p163
      $region50: #{simple_cnn_forward.5} parent=39 // pred_check_branch
        %587 = sbr.rel (%p585) target = $region52
      $region51: #{simple_cnn_forward.5} parent=39 // pred_region
        _
      $region52: #{simple_cnn_forward.5} parent=39 // pred_fallthru
        _
      // Predicated region
      $region53: #{simple_cnn_forward.5} parent=39 // pred_check
        %p588 = pneg %p163
      $region54: #{simple_cnn_forward.5} parent=39 // pred_check_branch
        %590 = sbr.rel (%p588) target = $region56
      $region55: #{simple_cnn_forward.5} parent=39 // pred_region
        %p591 = scmp.lt.s32.totalorder %s20, 0
        %s592 = scalar_select %p591, %s20, 0
        %s593 = smul.addr %s592, 8
        %s594 = scalar_lea.vmem %s5, %s593
      $region56: #{simple_cnn_forward.5} parent=39 // pred_fallthru
        _
    $region40: #{simple_cnn_forward.5} parent=5 // pred_fallthru
      _
    %p595 = scmp.le.s32.totalorder 2, %s11
    // Predicated region
    $region57: #{simple_cnn_forward.5} parent=5 // pred_check
      %p596 = pneg %p595
    $region58: #{simple_cnn_forward.5} parent=5 // pred_check_branch
      %598 = sbr.rel (%p596) target = $region60
    $region59: #{simple_cnn_forward.5} parent=5 // pred_region
      %s599 = ssub.s32 %s11, 2
    $region60: #{simple_cnn_forward.5} parent=5 // pred_fallthru
      _
  $region6: #{simple_cnn_forward.5} parent=0 // loop_footer
    %s15 = sadd.s32 1, %s11
  $region7: #{simple_cnn_forward.5} parent=0 // loop_footer_branch
    %10 = sbr.rel target = $region3
  $region8: #{simple_cnn_forward.5} parent=0 // loop_exit
    _

// kernel: simple_cnn_forward.4
$region0: #{simple_cnn_forward.4}
  #allocation0 [shape = 'u32[]', space=smem, size = 0x4, offset = 0x4, fixed_abs, tag = 'smem constant byte address 0x4 - core index']
  #allocation1 [shape = 'u32[144,128]{1,0:T(1,128)}', space=vmem, size = 0x12000, scoped, tag = 'internal scratch']
  %s0 = inlined_call_operand.vmem [shape: f32[2,5,320], index: 0, kind: input, shape index: {}]
  %s1 = inlined_call_operand.vmem [shape: f32[2,5,320], index: 1, kind: input, shape index: {}]
  %s2 = inlined_call_operand.vmem [shape: bf16[3,320,512], index: 2, kind: input, shape index: {}]
  %s3 = inlined_call_operand.vmem [shape: f32[1,512], index: 3, kind: input, shape index: {}]
  %s4 = inlined_call_operand.vmem [shape: f32[2,4,256], index: 4, kind: output, shape index: {}]
  %s5 = sld [smem:[#allocation0]]
  $region49: #{simple_cnn_forward.4} parent=0
    _
  %s7 = ssub.s32 1, %s5
  %s8 = scalar_select 0, %s7, %s5
  loop: start=0, step=1, limit=4
  $region2: #{simple_cnn_forward.4} parent=0 // loop_pre_header
    _
  $region3: #{simple_cnn_forward.4} parent=0 // loop_header
    %s10 = sphi 0, %s14
    %p11 = scmp.ge.s32.totalorder %s10, 4
    %s20 = sphi 0, %s22
    %s23 = sphi 0, %s20
    %s24 = sphi 0, %s23
    %s40 = sphi 0, %s24
    %s46 = sphi 0, %s48
    %s49 = sphi 0, %s46
    %s50 = sphi 0, %s49
    %s66 = sphi 0, %s50
    %s70 = sphi 0, %s70
    %s72 = sphi 0, %s70
    %s73 = sphi 0, %s72
    %s87 = sphi 0, %s73
    %s91 = sphi 0, %s91
    %s93 = sphi 0, %s91
    %s94 = sphi 0, %s93
    %s108 = sphi 0, %s94
    %s114 = sphi 0, %s116
    %s117 = sphi 0, %s114
    %s118 = sphi 0, %s117
    %s134 = sphi 0, %s118
  $region4: #{simple_cnn_forward.4} parent=0 // loop_header_branch
    %13 = sbr.rel (%p11) target = $region8
  $region5: #{simple_cnn_forward.4} parent=0 // loop_body
    %s15 = ssub.s32 %s10, 1
    %s16 = ssub.s32 %s10, 2
    %s17 = sadd.s32 %s10, 1
    %s18 = ssub.s32 %s10, %s17
    %p19 = scmp.eq.s32.totalorder %s18, 0
    %s21 = sadd.s32 %s20, 1
    %s22 = scalar_select %p19, %s20, %s21
    %p25 = pneg %p19
    %p26 = scmp.eq.s32.totalorder %s10, 1
    %p27 = por %p25, %p26
    %p28 = scmp.ne.s32.totalorder %s20, %s23
    %p29 = scmp.eq.s32.totalorder %s10, 0
    %p30 = por %p28, %p29
    %p31 = scmp.ne.s32.totalorder %s20, %s23
    %p32 = scmp.eq.s32.totalorder %s15, 1
    %p33 = por %p31, %p32
    %p34 = scmp.ne.s32.totalorder %s23, %s24
    %p35 = scmp.eq.s32.totalorder %s15, 0
    %p36 = por %p34, %p35
    %p37 = scmp.ne.s32.totalorder %s23, %s24
    %p38 = scmp.eq.s32.totalorder %s16, 1
    %p39 = por %p37, %p38
    %p41 = scmp.ne.s32.totalorder %s24, %s40
    %p42 = scmp.eq.s32.totalorder %s16, 0
    %p43 = por %p41, %p42
    %s44 = ssub.s32 %s10, %s17
    %p45 = scmp.eq.s32.totalorder %s44, 0
    %s47 = sadd.s32 %s46, 1
    %s48 = scalar_select %p45, %s46, %s47
    %p51 = pneg %p45
    %p52 = scmp.eq.s32.totalorder %s10, 1
    %p53 = por %p51, %p52
    %p54 = scmp.ne.s32.totalorder %s46, %s49
    %p55 = scmp.eq.s32.totalorder %s10, 0
    %p56 = por %p54, %p55
    %p57 = scmp.ne.s32.totalorder %s46, %s49
    %p58 = scmp.eq.s32.totalorder %s15, 1
    %p59 = por %p57, %p58
    %p60 = scmp.ne.s32.totalorder %s49, %s50
    %p61 = scmp.eq.s32.totalorder %s15, 0
    %p62 = por %p60, %p61
    %p63 = scmp.ne.s32.totalorder %s49, %s50
    %p64 = scmp.eq.s32.totalorder %s16, 1
    %p65 = por %p63, %p64
    %p67 = scmp.ne.s32.totalorder %s50, %s66
    %p68 = scmp.eq.s32.totalorder %s16, 0
    %p69 = por %p67, %p68
    %s71 = sadd.s32 %s70, 1
    %p74 = scmp.eq.s32.totalorder %s10, 1
    %p75 = scmp.ne.s32.totalorder %s70, %s72
    %p76 = scmp.eq.s32.totalorder %s10, 0
    %p77 = por %p75, %p76
    %p78 = scmp.ne.s32.totalorder %s70, %s72
    %p79 = scmp.eq.s32.totalorder %s15, 1
    %p80 = por %p78, %p79
    %p81 = scmp.ne.s32.totalorder %s72, %s73
    %p82 = scmp.eq.s32.totalorder %s15, 0
    %p83 = por %p81, %p82
    %p84 = scmp.ne.s32.totalorder %s72, %s73
    %p85 = scmp.eq.s32.totalorder %s16, 1
    %p86 = por %p84, %p85
    %p88 = scmp.ne.s32.totalorder %s73, %s87
    %p89 = scmp.eq.s32.totalorder %s16, 0
    %p90 = por %p88, %p89
    %s92 = sadd.s32 %s91, 1
    %p95 = scmp.eq.s32.totalorder %s10, 1
    %p96 = scmp.ne.s32.totalorder %s91, %s93
    %p97 = scmp.eq.s32.totalorder %s10, 0
    %p98 = por %p96, %p97
    %p99 = scmp.ne.s32.totalorder %s91, %s93
    %p100 = scmp.eq.s32.totalorder %s15, 1
    %p101 = por %p99, %p100
    %p102 = scmp.ne.s32.totalorder %s93, %s94
    %p103 = scmp.eq.s32.totalorder %s15, 0
    %p104 = por %p102, %p103
    %p105 = scmp.ne.s32.totalorder %s93, %s94
    %p106 = scmp.eq.s32.totalorder %s16, 1
    %p107 = por %p105, %p106
    %p109 = scmp.ne.s32.totalorder %s94, %s108
    %p110 = scmp.eq.s32.totalorder %s16, 0
    %p111 = por %p109, %p110
    %s112 = ssub.s32 %s10, %s17
    %p113 = scmp.eq.s32.totalorder %s112, 0
    %s115 = sadd.s32 %s114, 1
    %s116 = scalar_select %p113, %s114, %s115
    %p119 = pneg %p113
    %p120 = scmp.eq.s32.totalorder %s10, 1
    %p121 = por %p119, %p120
    %p122 = scmp.ne.s32.totalorder %s114, %s117
    %p123 = scmp.eq.s32.totalorder %s10, 0
    %p124 = por %p122, %p123
    %p125 = scmp.ne.s32.totalorder %s114, %s117
    %p126 = scmp.eq.s32.totalorder %s15, 1
    %p127 = por %p125, %p126
    %p128 = scmp.ne.s32.totalorder %s117, %s118
    %p129 = scmp.eq.s32.totalorder %s15, 0
    %p130 = por %p128, %p129
    %p131 = scmp.ne.s32.totalorder %s117, %s118
    %p132 = scmp.eq.s32.totalorder %s16, 1
    %p133 = por %p131, %p132
    %p135 = scmp.ne.s32.totalorder %s118, %s134
    %p136 = scmp.eq.s32.totalorder %s16, 0
    %p137 = por %p135, %p136
    %p138 = scmp.le.s32.totalorder 1, %s10
    %p139 = scmp.lt.s32.totalorder %s10, 3
    %p140 = pnand %p138, %p139
    %p141 = pneg %p140
    // Predicated region
    $region9: #{simple_cnn_forward.4} parent=5 // pred_check
      _
    $region10: #{simple_cnn_forward.4} parent=5 // pred_check_branch
      %143 = sbr.rel (%p140) target = $region12
    $region11: #{simple_cnn_forward.4} parent=5 // pred_region
      %s144 = ssub.s32 %s10, 1
      // Predicated region
      $region13: #{simple_cnn_forward.4} parent=11 // pred_check
        %p145 = pneg %p83
      $region14: #{simple_cnn_forward.4} parent=11 // pred_check_branch
        %147 = sbr.rel (%p145) target = $region16
      $region15: #{simple_cnn_forward.4} parent=11 // pred_region
        _
      $region16: #{simple_cnn_forward.4} parent=11 // pred_fallthru
        _
      // Predicated region
      $region17: #{simple_cnn_forward.4} parent=11 // pred_check
        %p148 = pneg %p104
      $region18: #{simple_cnn_forward.4} parent=11 // pred_check_branch
        %150 = sbr.rel (%p148) target = $region20
      $region19: #{simple_cnn_forward.4} parent=11 // pred_region
        _
      $region20: #{simple_cnn_forward.4} parent=11 // pred_fallthru
        _
    $region12: #{simple_cnn_forward.4} parent=5 // pred_fallthru
      _
    %p151 = scmp.lt.s32.totalorder %s10, 2
    // Predicated region
    $region21: #{simple_cnn_forward.4} parent=5 // pred_check
      %p152 = pneg %p151
    $region22: #{simple_cnn_forward.4} parent=5 // pred_check_branch
      %154 = sbr.rel (%p152) target = $region24
    $region23: #{simple_cnn_forward.4} parent=5 // pred_region
      // Predicated region
      $region25: #{simple_cnn_forward.4} parent=23 // pred_check
        %p155 = pneg %p30
      $region26: #{simple_cnn_forward.4} parent=23 // pred_check_branch
        %157 = sbr.rel (%p155) target = $region28
      $region27: #{simple_cnn_forward.4} parent=23 // pred_region
        %p158 = scmp.lt.s32.totalorder %s10, 1
        %s159 = scalar_select %p158, %s10, 1
        %s160 = smul.addr %s159, 3
        %s161 = smul.addr %s160, 8
        %s162 = scalar_lea.vmem %s0, %s161
      $region28: #{simple_cnn_forward.4} parent=23 // pred_fallthru
        _
      // Predicated region
      $region29: #{simple_cnn_forward.4} parent=23 // pred_check
        %p163 = pneg %p56
      $region30: #{simple_cnn_forward.4} parent=23 // pred_check_branch
        %165 = sbr.rel (%p163) target = $region32
      $region31: #{simple_cnn_forward.4} parent=23 // pred_region
        %p166 = scmp.lt.s32.totalorder %s10, 1
        %s167 = scalar_select %p166, %s10, 1
        %s168 = smul.addr %s167, 3
        %s169 = smul.addr %s168, 8
        %s170 = scalar_lea.vmem %s1, %s169
      $region32: #{simple_cnn_forward.4} parent=23 // pred_fallthru
        _
    $region24: #{simple_cnn_forward.4} parent=5 // pred_fallthru
      _
    %p171 = scmp.le.s32.totalorder 1, %s10
    %p172 = scmp.lt.s32.totalorder %s10, 3
    %p173 = pnand %p171, %p172
    %p174 = pneg %p173
    // Predicated region
    $region33: #{simple_cnn_forward.4} parent=5 // pred_check
      _
    $region34: #{simple_cnn_forward.4} parent=5 // pred_check_branch
      %176 = sbr.rel (%p173) target = $region36
    $region35: #{simple_cnn_forward.4} parent=5 // pred_region
      %s177 = ssub.s32 %s10, 1
      %p178 = scmp.lt.s32.totalorder %s15, 1
      %s179 = scalar_select %p178, %s15, 1
      %s180 = smul.addr %s179, 3
      %s181 = smul.addr %s180, 8
      %s182 = scalar_lea.vmem %s0, %s181
      %p183 = pneg %p36
      %p184 = pneg %p33
      %p185 = scmp.lt.s32.totalorder %s15, 1
      %s186 = scalar_select %p185, %s15, 1
      %s187 = smul.addr %s186, 3
      %s188 = smul.addr %s187, 8
      %s189 = scalar_lea.vmem %s1, %s188
      %p190 = pneg %p62
      %p191 = pneg %p59
      %p192 = pneg %p83
      %p193 = pneg %p80
      %p194 = pneg %p104
      %p195 = pneg %p101
      %p196 = pneg %p130
      %p197 = pneg %p127
      %p198 = scmp.lt.s32.totalorder %s15, 1
      %s199 = scalar_select %p198, %s15, 1
      %s200 = smul.addr %s199, 2
      %s201 = smul.addr %s200, 4
      %s202 = scalar_lea.vmem %s4, %s201
      %p203 = scmp.lt.s32.totalorder %s15, 1
      %s204 = scalar_select %p203, %s15, 1
      %s205 = smul.addr %s204, 3
      %s206 = smul.addr %s205, 8
      %s207 = scalar_lea.vmem %s0, %s206
      %p208 = scmp.lt.s32.totalorder %s15, 1
      %s209 = scalar_select %p208, %s15, 1
      %s210 = smul.addr %s209, 3
      %s211 = smul.addr %s210, 8
      %s212 = scalar_lea.vmem %s1, %s211
      %p213 = scmp.lt.s32.totalorder %s15, 1
      %s214 = scalar_select %p213, %s15, 1
      %s215 = smul.addr %s214, 2
      %s216 = smul.addr %s215, 4
      %s217 = scalar_lea.vmem %s4, %s216
      %v219 = vld [vmem:[%s207] sm:$0x1f]
      %v220 = vld [vmem:[%s207 + $0x8] sm:$0x1f]
      %v221 = vld [vmem:[%s207 + $0x10] sm:$0x1f]
      %v222 = vld [vmem:[%s212] sm:$0x1f]
      %v223 = vld [vmem:[%s212 + $0x8] sm:$0x1f]
      %v224 = vld [vmem:[%s212 + $0x10] sm:$0x1f]
      %v225 = vpack.c.bf16 %v219, %v219
      %v226 = vpack.c.bf16 %v220, %v220
      %v227 = vpack.c.bf16 %v221, %v221
      %v228 = vpack.c.bf16 %v222, %v222
      %v229 = vpack.c.bf16 %v223, %v223
      %v230 = vpack.c.bf16 %v224, %v224
      %v231 = vld [vmem:[%s2] sm:$0xff]
      %v232 = vld [vmem:[%s2 + $0x8] sm:$0xff]
      %v233 = vld [vmem:[%s2 + $0x10] sm:$0xff]
      %v234 = vld [vmem:[%s2 + $0x18] sm:$0xff]
      %v235 = vld [vmem:[%s2 + $0x20] sm:$0xff]
      %v236 = vld [vmem:[%s2 + $0x28] sm:$0xff]
      %v237 = vld [vmem:[%s2 + $0x30] sm:$0xff]
      %v238 = vld [vmem:[%s2 + $0x38] sm:$0xff]
      %v239 = vld [vmem:[%s2 + $0x40] sm:$0xff]
      %v240 = vld [vmem:[%s2 + $0x48] sm:$0xff]
      %v241 = vld [vmem:[%s2 + $0x50] sm:$0xff]
      %v242 = vld [vmem:[%s2 + $0x58] sm:$0xff]
      %v243 = vld [vmem:[%s2 + $0x60] sm:$0xff]
      %v244 = vld [vmem:[%s2 + $0x68] sm:$0xff]
      %v245 = vld [vmem:[%s2 + $0x70] sm:$0xff]
      %v246 = vld [vmem:[%s2 + $0x78] sm:$0xff]
      %v247 = vld [vmem:[%s2 + $0x80] sm:$0xff]
      %v248 = vld [vmem:[%s2 + $0x88] sm:$0xff]
      %v249 = vld [vmem:[%s2 + $0x90] sm:$0xff]
      %v250 = vld [vmem:[%s2 + $0x98] sm:$0xff]
      %v251 = vld [vmem:[%s2 + $0xa0] sm:$0xff]
      %v252 = vld [vmem:[%s2 + $0xa8] sm:$0xff]
      %v253 = vld [vmem:[%s2 + $0xb0] sm:$0xff]
      %v254 = vld [vmem:[%s2 + $0xb8] sm:$0xff]
      %v255 = vld [vmem:[%s2 + $0xc0] sm:$0xff]
      %v256 = vld [vmem:[%s2 + $0xc8] sm:$0xff]
      %v257 = vld [vmem:[%s2 + $0xd0] sm:$0xff]
      %v258 = vld [vmem:[%s2 + $0xd8] sm:$0xff]
      %v259 = vld [vmem:[%s2 + $0xe0] sm:$0xff]
      %v260 = vld [vmem:[%s2 + $0xe8] sm:$0xff]
      %v261 = vld [vmem:[%s2 + $0xf0] sm:$0xff]
      %v262 = vld [vmem:[%s2 + $0xf8] sm:$0xff]
      %v263 = vld [vmem:[%s2 + $0x100] sm:$0xff]
      %v264 = vld [vmem:[%s2 + $0x108] sm:$0xff]
      %v265 = vld [vmem:[%s2 + $0x110] sm:$0xff]
      %v266 = vld [vmem:[%s2 + $0x118] sm:$0xff]
      %v267 = vld [vmem:[%s2 + $0x120] sm:$0xff]
      %v268 = vld [vmem:[%s2 + $0x128] sm:$0xff]
      %v269 = vld [vmem:[%s2 + $0x130] sm:$0xff]
      %v270 = vld [vmem:[%s2 + $0x138] sm:$0xff]
      %v271 = vld [vmem:[%s2 + $0x140] sm:$0xff]
      %v272 = vld [vmem:[%s2 + $0x148] sm:$0xff]
      %v273 = vld [vmem:[%s2 + $0x150] sm:$0xff]
      %v274 = vld [vmem:[%s2 + $0x158] sm:$0xff]
      %v275 = vld [vmem:[%s2 + $0x160] sm:$0xff]
      %v276 = vld [vmem:[%s2 + $0x168] sm:$0xff]
      %v277 = vld [vmem:[%s2 + $0x170] sm:$0xff]
      %v278 = vld [vmem:[%s2 + $0x178] sm:$0xff]
      %v279 = vld [vmem:[%s2 + $0x180] sm:$0xff]
      %v280 = vld [vmem:[%s2 + $0x188] sm:$0xff]
      %v281 = vld [vmem:[%s2 + $0x190] sm:$0xff]
      %v282 = vld [vmem:[%s2 + $0x198] sm:$0xff]
      %v283 = vld [vmem:[%s2 + $0x1a0] sm:$0xff]
      %v284 = vld [vmem:[%s2 + $0x1a8] sm:$0xff]
      %v285 = vld [vmem:[%s2 + $0x1b0] sm:$0xff]
      %v286 = vld [vmem:[%s2 + $0x1b8] sm:$0xff]
      %v287 = vld [vmem:[%s2 + $0x1c0] sm:$0xff]
      %v288 = vld [vmem:[%s2 + $0x1c8] sm:$0xff]
      %v289 = vld [vmem:[%s2 + $0x1d0] sm:$0xff]
      %v290 = vld [vmem:[%s2 + $0x1d8] sm:$0xff]
      %v291 = vld [vmem:[%s2 + $0x1e0] sm:$0xff]
      %v292 = vld [vmem:[%s2 + $0x1e8] sm:$0xff]
      %v293 = vld [vmem:[%s2 + $0x1f0] sm:$0xff]
      %v294 = vld [vmem:[%s2 + $0x1f8] sm:$0xff]
      %v295 = vld [vmem:[%s2 + $0x200] sm:$0xff]
      %v296 = vld [vmem:[%s2 + $0x208] sm:$0xff]
      %v297 = vld [vmem:[%s2 + $0x210] sm:$0xff]
      %v298 = vld [vmem:[%s2 + $0x218] sm:$0xff]
      %v299 = vld [vmem:[%s2 + $0x220] sm:$0xff]
      %v300 = vld [vmem:[%s2 + $0x228] sm:$0xff]
      %v301 = vld [vmem:[%s2 + $0x230] sm:$0xff]
      %v302 = vld [vmem:[%s2 + $0x238] sm:$0xff]
      %v303 = vld [vmem:[%s2 + $0x240] sm:$0xff]
      %v304 = vld [vmem:[%s2 + $0x248] sm:$0xff]
      %v305 = vld [vmem:[%s2 + $0x250] sm:$0xff]
      %v306 = vld [vmem:[%s2 + $0x258] sm:$0xff]
      %v307 = vld [vmem:[%s2 + $0x260] sm:$0xff]
      %v308 = vld [vmem:[%s2 + $0x268] sm:$0xff]
      %v309 = vld [vmem:[%s2 + $0x270] sm:$0xff]
      %v310 = vld [vmem:[%s2 + $0x278] sm:$0xff]
      %s311 = scalar_lea.vmem %s2, 640
      %v312 = vld [vmem:[%s311] sm:$0xff]
      %v313 = vld [vmem:[%s311 + $0x8] sm:$0xff]
      %v314 = vld [vmem:[%s311 + $0x10] sm:$0xff]
      %v315 = vld [vmem:[%s311 + $0x18] sm:$0xff]
      %v316 = vld [vmem:[%s311 + $0x20] sm:$0xff]
      %v317 = vld [vmem:[%s311 + $0x28] sm:$0xff]
      %v318 = vld [vmem:[%s311 + $0x30] sm:$0xff]
      %v319 = vld [vmem:[%s311 + $0x38] sm:$0xff]
      %v320 = vld [vmem:[%s311 + $0x40] sm:$0xff]
      %v321 = vld [vmem:[%s311 + $0x48] sm:$0xff]
      %v322 = vld [vmem:[%s311 + $0x50] sm:$0xff]
      %v323 = vld [vmem:[%s311 + $0x58] sm:$0xff]
      %v324 = vld [vmem:[%s311 + $0x60] sm:$0xff]
      %v325 = vld [vmem:[%s311 + $0x68] sm:$0xff]
      %v326 = vld [vmem:[%s311 + $0x70] sm:$0xff]
      %v327 = vld [vmem:[%s311 + $0x78] sm:$0xff]
      %v328 = vld [vmem:[%s311 + $0x80] sm:$0xff]
      %v329 = vld [vmem:[%s311 + $0x88] sm:$0xff]
      %v330 = vld [vmem:[%s311 + $0x90] sm:$0xff]
      %v331 = vld [vmem:[%s311 + $0x98] sm:$0xff]
      %v332 = vld [vmem:[%s311 + $0xa0] sm:$0xff]
      %v333 = vld [vmem:[%s311 + $0xa8] sm:$0xff]
      %v334 = vld [vmem:[%s311 + $0xb0] sm:$0xff]
      %v335 = vld [vmem:[%s311 + $0xb8] sm:$0xff]
      %v336 = vld [vmem:[%s311 + $0xc0] sm:$0xff]
      %v337 = vld [vmem:[%s311 + $0xc8] sm:$0xff]
      %v338 = vld [vmem:[%s311 + $0xd0] sm:$0xff]
      %v339 = vld [vmem:[%s311 + $0xd8] sm:$0xff]
      %v340 = vld [vmem:[%s311 + $0xe0] sm:$0xff]
      %v341 = vld [vmem:[%s311 + $0xe8] sm:$0xff]
      %v342 = vld [vmem:[%s311 + $0xf0] sm:$0xff]
      %v343 = vld [vmem:[%s311 + $0xf8] sm:$0xff]
      %v344 = vld [vmem:[%s311 + $0x100] sm:$0xff]
      %v345 = vld [vmem:[%s311 + $0x108] sm:$0xff]
      %v346 = vld [vmem:[%s311 + $0x110] sm:$0xff]
      %v347 = vld [vmem:[%s311 + $0x118] sm:$0xff]
      %v348 = vld [vmem:[%s311 + $0x120] sm:$0xff]
      %v349 = vld [vmem:[%s311 + $0x128] sm:$0xff]
      %v350 = vld [vmem:[%s311 + $0x130] sm:$0xff]
      %v351 = vld [vmem:[%s311 + $0x138] sm:$0xff]
      %v352 = vld [vmem:[%s311 + $0x140] sm:$0xff]
      %v353 = vld [vmem:[%s311 + $0x148] sm:$0xff]
      %v354 = vld [vmem:[%s311 + $0x150] sm:$0xff]
      %v355 = vld [vmem:[%s311 + $0x158] sm:$0xff]
      %v356 = vld [vmem:[%s311 + $0x160] sm:$0xff]
      %v357 = vld [vmem:[%s311 + $0x168] sm:$0xff]
      %v358 = vld [vmem:[%s311 + $0x170] sm:$0xff]
      %v359 = vld [vmem:[%s311 + $0x178] sm:$0xff]
      %v360 = vld [vmem:[%s311 + $0x180] sm:$0xff]
      %v361 = vld [vmem:[%s311 + $0x188] sm:$0xff]
      %v362 = vld [vmem:[%s311 + $0x190] sm:$0xff]
      %v363 = vld [vmem:[%s311 + $0x198] sm:$0xff]
      %v364 = vld [vmem:[%s311 + $0x1a0] sm:$0xff]
      %v365 = vld [vmem:[%s311 + $0x1a8] sm:$0xff]
      %v366 = vld [vmem:[%s311 + $0x1b0] sm:$0xff]
      %v367 = vld [vmem:[%s311 + $0x1b8] sm:$0xff]
      %v368 = vld [vmem:[%s311 + $0x1c0] sm:$0xff]
      %v369 = vld [vmem:[%s311 + $0x1c8] sm:$0xff]
      %v370 = vld [vmem:[%s311 + $0x1d0] sm:$0xff]
      %v371 = vld [vmem:[%s311 + $0x1d8] sm:$0xff]
      %v372 = vld [vmem:[%s311 + $0x1e0] sm:$0xff]
      %v373 = vld [vmem:[%s311 + $0x1e8] sm:$0xff]
      %v374 = vld [vmem:[%s311 + $0x1f0] sm:$0xff]
      %v375 = vld [vmem:[%s311 + $0x1f8] sm:$0xff]
      %v376 = vld [vmem:[%s311 + $0x200] sm:$0xff]
      %v377 = vld [vmem:[%s311 + $0x208] sm:$0xff]
      %v378 = vld [vmem:[%s311 + $0x210] sm:$0xff]
      %v379 = vld [vmem:[%s311 + $0x218] sm:$0xff]
      %v380 = vld [vmem:[%s311 + $0x220] sm:$0xff]
      %v381 = vld [vmem:[%s311 + $0x228] sm:$0xff]
      %v382 = vld [vmem:[%s311 + $0x230] sm:$0xff]
      %v383 = vld [vmem:[%s311 + $0x238] sm:$0xff]
      %v384 = vld [vmem:[%s311 + $0x240] sm:$0xff]
      %v385 = vld [vmem:[%s311 + $0x248] sm:$0xff]
      %v386 = vld [vmem:[%s311 + $0x250] sm:$0xff]
      %v387 = vld [vmem:[%s311 + $0x258] sm:$0xff]
      %v388 = vld [vmem:[%s311 + $0x260] sm:$0xff]
      %v389 = vld [vmem:[%s311 + $0x268] sm:$0xff]
      %v390 = vld [vmem:[%s311 + $0x270] sm:$0xff]
      %v391 = vld [vmem:[%s311 + $0x278] sm:$0xff]
      %v472 = vunpack.c.l.b16 %v312
      %v473 = vunpack.c.h.b16 %v312
      %v474 = vunpack.c.l.b16 %v313
      %v475 = vunpack.c.h.b16 %v313
      %v476 = vunpack.c.l.b16 %v314
      %v477 = vunpack.c.h.b16 %v314
      %v478 = vunpack.c.l.b16 %v315
      %v479 = vunpack.c.h.b16 %v315
      %v480 = vunpack.c.l.b16 %v316
      %v481 = vunpack.c.h.b16 %v316
      %v482 = vunpack.c.l.b16 %v317
      %v483 = vunpack.c.h.b16 %v317
      %v484 = vunpack.c.l.b16 %v318
      %v485 = vunpack.c.h.b16 %v318
      %v486 = vunpack.c.l.b16 %v319
      %v487 = vunpack.c.h.b16 %v319
      %v488 = vunpack.c.l.b16 %v320
      %v489 = vunpack.c.h.b16 %v320
      %v490 = vunpack.c.l.b16 %v321
      %v491 = vunpack.c.h.b16 %v321
      %v492 = vunpack.c.l.b16 %v322
      %v493 = vunpack.c.h.b16 %v322
      %v494 = vunpack.c.l.b16 %v323
      %v495 = vunpack.c.h.b16 %v323
      %v496 = vunpack.c.l.b16 %v324
      %v497 = vunpack.c.h.b16 %v324
      %v498 = vunpack.c.l.b16 %v325
      %v499 = vunpack.c.h.b16 %v325
      %v500 = vunpack.c.l.b16 %v326
      %v501 = vunpack.c.h.b16 %v326
      %v502 = vunpack.c.l.b16 %v327
      %v503 = vunpack.c.h.b16 %v327
      %v504 = vunpack.c.l.b16 %v328
      %v505 = vunpack.c.h.b16 %v328
      %v506 = vunpack.c.l.b16 %v329
      %v507 = vunpack.c.h.b16 %v329
      %v508 = vunpack.c.l.b16 %v330
      %v509 = vunpack.c.h.b16 %v330
      %v510 = vunpack.c.l.b16 %v331
      %v511 = vunpack.c.h.b16 %v331
      %v512 = vunpack.c.l.b16 %v332
      %v513 = vunpack.c.h.b16 %v332
      %v514 = vunpack.c.l.b16 %v333
      %v515 = vunpack.c.h.b16 %v333
      %v516 = vunpack.c.l.b16 %v334
      %v517 = vunpack.c.h.b16 %v334
      %v518 = vunpack.c.l.b16 %v335
      %v519 = vunpack.c.h.b16 %v335
      %v520 = vunpack.c.l.b16 %v336
      %v521 = vunpack.c.h.b16 %v336
      %v522 = vunpack.c.l.b16 %v337
      %v523 = vunpack.c.h.b16 %v337
      %v524 = vunpack.c.l.b16 %v338
      %v525 = vunpack.c.h.b16 %v338
      %v526 = vunpack.c.l.b16 %v339
      %v527 = vunpack.c.h.b16 %v339
      %v528 = vunpack.c.l.b16 %v340
      %v529 = vunpack.c.h.b16 %v340
      %v530 = vunpack.c.l.b16 %v341
      %v531 = vunpack.c.h.b16 %v341
      %v532 = vunpack.c.l.b16 %v342
      %v533 = vunpack.c.h.b16 %v342
      %v534 = vunpack.c.l.b16 %v343
      %v535 = vunpack.c.h.b16 %v343
      %v536 = vunpack.c.l.b16 %v344
      %v537 = vunpack.c.h.b16 %v344
      %v538 = vunpack.c.l.b16 %v345
      %v539 = vunpack.c.h.b16 %v345
      %v540 = vunpack.c.l.b16 %v346
      %v541 = vunpack.c.h.b16 %v346
      %v542 = vunpack.c.l.b16 %v347
      %v543 = vunpack.c.h.b16 %v347
      %v544 = vunpack.c.l.b16 %v348
      %v545 = vunpack.c.h.b16 %v348
      %v546 = vunpack.c.l.b16 %v349
      %v547 = vunpack.c.h.b16 %v349
      %v548 = vunpack.c.l.b16 %v350
      %v549 = vunpack.c.h.b16 %v350
      %v550 = vunpack.c.l.b16 %v351
      %v551 = vunpack.c.h.b16 %v351
      %v552 = vunpack.c.l.b16 %v352
      %v553 = vunpack.c.h.b16 %v352
      %v554 = vunpack.c.l.b16 %v353
      %v555 = vunpack.c.h.b16 %v353
      %v556 = vunpack.c.l.b16 %v354
      %v557 = vunpack.c.h.b16 %v354
      %v558 = vunpack.c.l.b16 %v355
      %v559 = vunpack.c.h.b16 %v355
      %v560 = vunpack.c.l.b16 %v356
      %v561 = vunpack.c.h.b16 %v356
      %v562 = vunpack.c.l.b16 %v357
      %v563 = vunpack.c.h.b16 %v357
      %v564 = vunpack.c.l.b16 %v358
      %v565 = vunpack.c.h.b16 %v358
      %v566 = vunpack.c.l.b16 %v359
      %v567 = vunpack.c.h.b16 %v359
      %v568 = vunpack.c.l.b16 %v360
      %v569 = vunpack.c.h.b16 %v360
      %v570 = vunpack.c.l.b16 %v361
      %v571 = vunpack.c.h.b16 %v361
      %v572 = vunpack.c.l.b16 %v362
      %v573 = vunpack.c.h.b16 %v362
      %v574 = vunpack.c.l.b16 %v363
      %v575 = vunpack.c.h.b16 %v363
      %v576 = vunpack.c.l.b16 %v364
      %v577 = vunpack.c.h.b16 %v364
      %v578 = vunpack.c.l.b16 %v365
      %v579 = vunpack.c.h.b16 %v365
      %v580 = vunpack.c.l.b16 %v366
      %v581 = vunpack.c.h.b16 %v366
      %v582 = vunpack.c.l.b16 %v367
      %v583 = vunpack.c.h.b16 %v367
      %v584 = vunpack.c.l.b16 %v368
      %v585 = vunpack.c.h.b16 %v368
      %v586 = vunpack.c.l.b16 %v369
      %v587 = vunpack.c.h.b16 %v369
      %v588 = vunpack.c.l.b16 %v370
      %v589 = vunpack.c.h.b16 %v370
      %v590 = vunpack.c.l.b16 %v371
      %v591 = vunpack.c.h.b16 %v371
      %v592 = vunpack.c.l.b16 %v372
      %v593 = vunpack.c.h.b16 %v372
      %v594 = vunpack.c.l.b16 %v373
      %v595 = vunpack.c.h.b16 %v373
      %v596 = vunpack.c.l.b16 %v374
      %v597 = vunpack.c.h.b16 %v374
      %v598 = vunpack.c.l.b16 %v375
      %v599 = vunpack.c.h.b16 %v375
      %v600 = vunpack.c.l.b16 %v376
      %v601 = vunpack.c.h.b16 %v376
      %v602 = vunpack.c.l.b16 %v377
      %v603 = vunpack.c.h.b16 %v377
      %v604 = vunpack.c.l.b16 %v378
      %v605 = vunpack.c.h.b16 %v378
      %v606 = vunpack.c.l.b16 %v379
      %v607 = vunpack.c.h.b16 %v379
      %v608 = vunpack.c.l.b16 %v380
      %v609 = vunpack.c.h.b16 %v380
      %v610 = vunpack.c.l.b16 %v381
      %v611 = vunpack.c.h.b16 %v381
      %v612 = vunpack.c.l.b16 %v382
      %v613 = vunpack.c.h.b16 %v382
      %v614 = vunpack.c.l.b16 %v383
      %v615 = vunpack.c.h.b16 %v383
      %v616 = vunpack.c.l.b16 %v384
      %v617 = vunpack.c.h.b16 %v384
      %v618 = vunpack.c.l.b16 %v385
      %v619 = vunpack.c.h.b16 %v385
      %v620 = vunpack.c.l.b16 %v386
      %v621 = vunpack.c.h.b16 %v386
      %v622 = vunpack.c.l.b16 %v387
      %v623 = vunpack.c.h.b16 %v387
      %v624 = vunpack.c.l.b16 %v388
      %v625 = vunpack.c.h.b16 %v388
      %v626 = vunpack.c.l.b16 %v389
      %v627 = vunpack.c.h.b16 %v389
      %v628 = vunpack.c.l.b16 %v390
      %v629 = vunpack.c.h.b16 %v390
      %v630 = vunpack.c.l.b16 %v391
      %v631 = vunpack.c.h.b16 %v391
      %v632 = vpack.c.b16 %v476, %v472
      %v633 = vpack.c.b16 %v477, %v473
      %v634 = vpack.c.b16 %v478, %v474
      %v635 = vpack.c.b16 %v479, %v475
      %v636 = vpack.c.b16 %v484, %v480
      %v637 = vpack.c.b16 %v485, %v481
      %v638 = vpack.c.b16 %v486, %v482
      %v639 = vpack.c.b16 %v487, %v483
      %v640 = vpack.c.b16 %v492, %v488
      %v641 = vpack.c.b16 %v493, %v489
      %v642 = vpack.c.b16 %v494, %v490
      %v643 = vpack.c.b16 %v495, %v491
      %v644 = vpack.c.b16 %v500, %v496
      %v645 = vpack.c.b16 %v501, %v497
      %v646 = vpack.c.b16 %v502, %v498
      %v647 = vpack.c.b16 %v503, %v499
      %v648 = vpack.c.b16 %v508, %v504
      %v649 = vpack.c.b16 %v509, %v505
      %v650 = vpack.c.b16 %v510, %v506
      %v651 = vpack.c.b16 %v511, %v507
      %v652 = vpack.c.b16 %v516, %v512
      %v653 = vpack.c.b16 %v517, %v513
      %v654 = vpack.c.b16 %v518, %v514
      %v655 = vpack.c.b16 %v519, %v515
      %v656 = vpack.c.b16 %v524, %v520
      %v657 = vpack.c.b16 %v525, %v521
      %v658 = vpack.c.b16 %v526, %v522
      %v659 = vpack.c.b16 %v527, %v523
      %v660 = vpack.c.b16 %v532, %v528
      %v661 = vpack.c.b16 %v533, %v529
      %v662 = vpack.c.b16 %v534, %v530
      %v663 = vpack.c.b16 %v535, %v531
      %v664 = vpack.c.b16 %v540, %v536
      %v665 = vpack.c.b16 %v541, %v537
      %v666 = vpack.c.b16 %v542, %v538
      %v667 = vpack.c.b16 %v543, %v539
      %v668 = vpack.c.b16 %v548, %v544
      %v669 = vpack.c.b16 %v549, %v545
      %v670 = vpack.c.b16 %v550, %v546
      %v671 = vpack.c.b16 %v551, %v547
      %v672 = vpack.c.b16 %v556, %v552
      %v673 = vpack.c.b16 %v557, %v553
      %v674 = vpack.c.b16 %v558, %v554
      %v675 = vpack.c.b16 %v559, %v555
      %v676 = vpack.c.b16 %v564, %v560
      %v677 = vpack.c.b16 %v565, %v561
      %v678 = vpack.c.b16 %v566, %v562
      %v679 = vpack.c.b16 %v567, %v563
      %v680 = vpack.c.b16 %v572, %v568
      %v681 = vpack.c.b16 %v573, %v569
      %v682 = vpack.c.b16 %v574, %v570
      %v683 = vpack.c.b16 %v575, %v571
      %v684 = vpack.c.b16 %v580, %v576
      %v685 = vpack.c.b16 %v581, %v577
      %v686 = vpack.c.b16 %v582, %v578
      %v687 = vpack.c.b16 %v583, %v579
      %v688 = vpack.c.b16 %v588, %v584
      %v689 = vpack.c.b16 %v589, %v585
      %v690 = vpack.c.b16 %v590, %v586
      %v691 = vpack.c.b16 %v591, %v587
      %v692 = vpack.c.b16 %v596, %v592
      %v693 = vpack.c.b16 %v597, %v593
      %v694 = vpack.c.b16 %v598, %v594
      %v695 = vpack.c.b16 %v599, %v595
      %v696 = vpack.c.b16 %v604, %v600
      %v697 = vpack.c.b16 %v605, %v601
      %v698 = vpack.c.b16 %v606, %v602
      %v699 = vpack.c.b16 %v607, %v603
      %v700 = vpack.c.b16 %v612, %v608
      %v701 = vpack.c.b16 %v613, %v609
      %v702 = vpack.c.b16 %v614, %v610
      %v703 = vpack.c.b16 %v615, %v611
      %v704 = vpack.c.b16 %v620, %v616
      %v705 = vpack.c.b16 %v621, %v617
      %v706 = vpack.c.b16 %v622, %v618
      %v707 = vpack.c.b16 %v623, %v619
      %v708 = vpack.c.b16 %v628, %v624
      %v709 = vpack.c.b16 %v629, %v625
      %v710 = vpack.c.b16 %v630, %v626
      %v711 = vpack.c.b16 %v631, %v627
      %vm792 = vcmask 523264
      %v794 = vsel %vm792, %v230, 0
      %796 = vmatprep.subr.bf16.mxu0 %v633
      %797 = vmatpush1.bf16.msra.mxu0 %v632
      %798 = vmatprep.subr.bf16.mxu0 %v637
      %799 = vmatpush1.bf16.msra.mxu0 %v636
      %800 = vmatprep.subr.bf16.mxu0 %v641
      %801 = vmatpush1.bf16.msra.mxu0 %v640
      %802 = vmatprep.subr.bf16.mxu0 %v645
      %803 = vmatpush1.bf16.msra.mxu0 %v644
      %804 = vmatprep.subr.bf16.mxu0 %v649
      %805 = vmatpush1.bf16.msra.mxu0 %v648
      %806 = vmatprep.subr.bf16.mxu0 %v653
      %807 = vmatpush1.bf16.msra.mxu0 %v652
      %808 = vmatprep.subr.bf16.mxu0 %v657
      %809 = vmatpush1.bf16.msra.mxu0 %v656
      %810 = vmatprep.subr.bf16.mxu0 %v661
      %811 = vmatpush1.bf16.msra.mxu0 %v660
      %812 = vmatprep.subr.bf16.mxu0 %v665
      %813 = vmatpush1.bf16.msra.mxu0 %v664
      %814 = vmatprep.subr.bf16.mxu0 %v669
      %815 = vmatpush1.bf16.msra.mxu0 %v668
      %816 = vmatprep.subr.bf16.mxu0 %v673
      %817 = vmatpush1.bf16.msra.mxu0 %v672
      %818 = vmatprep.subr.bf16.mxu0 %v677
      %819 = vmatpush1.bf16.msra.mxu0 %v676
      %820 = vmatprep.subr.bf16.mxu0 %v681
      %821 = vmatpush1.bf16.msra.mxu0 %v680
      %822 = vmatprep.subr.bf16.mxu0 %v685
      %823 = vmatpush1.bf16.msra.mxu0 %v684
      %824 = vmatprep.subr.bf16.mxu0 %v689
      %825 = vmatpush1.bf16.msra.mxu0 %v688
      %826 = vmatprep.subr.bf16.mxu0 %v693
      %827 = vmatpush1.bf16.msra.mxu0 %v692
      %828 = vmatprep.mubr.bf16.mxu0 %v229
      %829 = vmatmul.mubr.bf16.gmra.mrb[0].mxu0 %v228
      %v830 = vpop.f32.mrb[0].mxu0
      %v831 = vadd.f32 0.0, %v830
      %v832 = vpop.f32.mrb[0].mxu0
      %v833 = vadd.f32 0.0, %v832
      %v834 = vpop.f32.mrb[0].mxu0
      %v835 = vpop.f32.mrb[0].mxu0
      %836 = vdwg.mxu0
      %837 = vmatprep.subr.bf16.mxu0 %v697
      %838 = vmatpush1.bf16.msra.mxu0 %v696
      %839 = vmatprep.subr.bf16.mxu0 %v701
      %840 = vmatpush1.bf16.msra.mxu0 %v700
      %841 = vmatprep.subr.bf16.mxu0 %v705
      %842 = vmatpush1.bf16.msra.mxu0 %v704
      %843 = vmatprep.subr.bf16.mxu0 %v709
      %844 = vmatpush1.bf16.msra.mxu0 %v708
      %845 = vmatprep.subr.bf16.mxu0 0
      %846 = vmatpush1.bf16.msra.mxu0 0
      %847 = vmatprep.subr.bf16.mxu0 0
      %848 = vmatpush1.bf16.msra.mxu0 0
      %849 = vmatprep.subr.bf16.mxu0 0
      %850 = vmatpush1.bf16.msra.mxu0 0
      %851 = vmatprep.subr.bf16.mxu0 0
      %852 = vmatpush1.bf16.msra.mxu0 0
      %853 = vmatprep.subr.bf16.mxu0 0
      %854 = vmatpush1.bf16.msra.mxu0 0
      %855 = vmatprep.subr.bf16.mxu0 0
      %856 = vmatpush1.bf16.msra.mxu0 0
      %857 = vmatprep.subr.bf16.mxu0 0
      %858 = vmatpush1.bf16.msra.mxu0 0
      %859 = vmatprep.subr.bf16.mxu0 0
      %860 = vmatpush1.bf16.msra.mxu0 0
      %861 = vmatprep.subr.bf16.mxu0 0
      %862 = vmatpush1.bf16.msra.mxu0 0
      %863 = vmatprep.subr.bf16.mxu0 0
      %864 = vmatpush1.bf16.msra.mxu0 0
      %865 = vmatprep.subr.bf16.mxu0 0
      %866 = vmatpush1.bf16.msra.mxu0 0
      %867 = vmatprep.subr.bf16.mxu0 0
      %868 = vmatpush1.bf16.msra.mxu0 0
      %869 = vmatprep.mubr.bf16.mxu0 0
      %870 = vmatmul.mubr.bf16.gmra.mrb[0].mxu0 %v794
      %v871 = vpop.f32.mrb[0].mxu0
      %v872 = vadd.f32 %v831, %v871
      %v873 = vpop.f32.mrb[0].mxu0
      %v874 = vadd.f32 %v833, %v873
      %v875 = vpop.f32.mrb[0].mxu0
      %v876 = vpop.f32.mrb[0].mxu0
      %877 = vdwg.mxu0
      %878 = vmatprep.subr.bf16.mxu0 %v635
      %879 = vmatpush1.bf16.msra.mxu0 %v634
      %880 = vmatprep.subr.bf16.mxu0 %v639
      %881 = vmatpush1.bf16.msra.mxu0 %v638
      %882 = vmatprep.subr.bf16.mxu0 %v643
      %883 = vmatpush1.bf16.msra.mxu0 %v642
      %884 = vmatprep.subr.bf16.mxu0 %v647
      %885 = vmatpush1.bf16.msra.mxu0 %v646
      %886 = vmatprep.subr.bf16.mxu0 %v651
      %887 = vmatpush1.bf16.msra.mxu0 %v650
      %888 = vmatprep.subr.bf16.mxu0 %v655
      %889 = vmatpush1.bf16.msra.mxu0 %v654
      %890 = vmatprep.subr.bf16.mxu0 %v659
      %891 = vmatpush1.bf16.msra.mxu0 %v658
      %892 = vmatprep.subr.bf16.mxu0 %v663
      %893 = vmatpush1.bf16.msra.mxu0 %v662
      %894 = vmatprep.subr.bf16.mxu0 %v667
      %895 = vmatpush1.bf16.msra.mxu0 %v666
      %896 = vmatprep.subr.bf16.mxu0 %v671
      %897 = vmatpush1.bf16.msra.mxu0 %v670
      %898 = vmatprep.subr.bf16.mxu0 %v675
      %899 = vmatpush1.bf16.msra.mxu0 %v674
      %900 = vmatprep.subr.bf16.mxu0 %v679
      %901 = vmatpush1.bf16.msra.mxu0 %v678
      %902 = vmatprep.subr.bf16.mxu0 %v683
      %903 = vmatpush1.bf16.msra.mxu0 %v682
      %904 = vmatprep.subr.bf16.mxu0 %v687
      %905 = vmatpush1.bf16.msra.mxu0 %v686
      %906 = vmatprep.subr.bf16.mxu0 %v691
      %907 = vmatpush1.bf16.msra.mxu0 %v690
      %908 = vmatprep.subr.bf16.mxu0 %v695
      %909 = vmatpush1.bf16.msra.mxu0 %v694
      %910 = vmatprep.mubr.bf16.mxu0 %v229
      %911 = vmatmul.mubr.bf16.gmra.mrb[0].mxu0 %v228
      %v912 = vpop.f32.mrb[0].mxu0
      %v913 = vadd.f32 0.0, %v912
      %v914 = vpop.f32.mrb[0].mxu0
      %v915 = vadd.f32 0.0, %v914
      %v916 = vpop.f32.mrb[0].mxu0
      %v917 = vpop.f32.mrb[0].mxu0
      %918 = vdwg.mxu0
      %919 = vmatprep.subr.bf16.mxu0 %v699
      %920 = vmatpush1.bf16.msra.mxu0 %v698
      %921 = vmatprep.subr.bf16.mxu0 %v703
      %922 = vmatpush1.bf16.msra.mxu0 %v702
      %923 = vmatprep.subr.bf16.mxu0 %v707
      %924 = vmatpush1.bf16.msra.mxu0 %v706
      %925 = vmatprep.subr.bf16.mxu0 %v711
      %926 = vmatpush1.bf16.msra.mxu0 %v710
      %927 = vmatprep.subr.bf16.mxu0 0
      %928 = vmatpush1.bf16.msra.mxu0 0
      %929 = vmatprep.subr.bf16.mxu0 0
      %930 = vmatpush1.bf16.msra.mxu0 0
      %931 = vmatprep.subr.bf16.mxu0 0
      %932 = vmatpush1.bf16.msra.mxu0 0
      %933 = vmatprep.subr.bf16.mxu0 0
      %934 = vmatpush1.bf16.msra.mxu0 0
      %935 = vmatprep.subr.bf16.mxu0 0
      %936 = vmatpush1.bf16.msra.mxu0 0
      %937 = vmatprep.subr.bf16.mxu0 0
      %938 = vmatpush1.bf16.msra.mxu0 0
      %939 = vmatprep.subr.bf16.mxu0 0
      %940 = vmatpush1.bf16.msra.mxu0 0
      %941 = vmatprep.subr.bf16.mxu0 0
      %942 = vmatpush1.bf16.msra.mxu0 0
      %943 = vmatprep.subr.bf16.mxu0 0
      %944 = vmatpush1.bf16.msra.mxu0 0
      %945 = vmatprep.subr.bf16.mxu0 0
      %946 = vmatpush1.bf16.msra.mxu0 0
      %947 = vmatprep.subr.bf16.mxu0 0
      %948 = vmatpush1.bf16.msra.mxu0 0
      %949 = vmatprep.subr.bf16.mxu0 0
      %950 = vmatpush1.bf16.msra.mxu0 0
      %951 = vmatprep.mubr.bf16.mxu0 0
      %952 = vmatmul.mubr.bf16.gmra.mrb[0].mxu0 %v794
      %v953 = vpop.f32.mrb[0].mxu0
      %v954 = vadd.f32 %v913, %v953
      %v955 = vpop.f32.mrb[0].mxu0
      %v956 = vadd.f32 %v915, %v955
      %v957 = vpop.f32.mrb[0].mxu0
      %v958 = vpop.f32.mrb[0].mxu0
      %959 = vdwg.mxu0
      %v1040 = vunpack.c.l.b16 %v231
      %v1041 = vunpack.c.h.b16 %v231
      %v1042 = vunpack.c.l.b16 %v232
      %v1043 = vunpack.c.h.b16 %v232
      %v1044 = vunpack.c.l.b16 %v233
      %v1045 = vunpack.c.h.b16 %v233
      %v1046 = vunpack.c.l.b16 %v234
      %v1047 = vunpack.c.h.b16 %v234
      %v1048 = vunpack.c.l.b16 %v235
      %v1049 = vunpack.c.h.b16 %v235
      %v1050 = vunpack.c.l.b16 %v236
      %v1051 = vunpack.c.h.b16 %v236
      %v1052 = vunpack.c.l.b16 %v237
      %v1053 = vunpack.c.h.b16 %v237
      %v1054 = vunpack.c.l.b16 %v238
      %v1055 = vunpack.c.h.b16 %v238
      %v1056 = vunpack.c.l.b16 %v239
      %v1057 = vunpack.c.h.b16 %v239
      %v1058 = vunpack.c.l.b16 %v240
      %v1059 = vunpack.c.h.b16 %v240
      %v1060 = vunpack.c.l.b16 %v241
      %v1061 = vunpack.c.h.b16 %v241
      %v1062 = vunpack.c.l.b16 %v242
      %v1063 = vunpack.c.h.b16 %v242
      %v1064 = vunpack.c.l.b16 %v243
      %v1065 = vunpack.c.h.b16 %v243
      %v1066 = vunpack.c.l.b16 %v244
      %v1067 = vunpack.c.h.b16 %v244
      %v1068 = vunpack.c.l.b16 %v245
      %v1069 = vunpack.c.h.b16 %v245
      %v1070 = vunpack.c.l.b16 %v246
      %v1071 = vunpack.c.h.b16 %v246
      %v1072 = vunpack.c.l.b16 %v247
      %v1073 = vunpack.c.h.b16 %v247
      %v1074 = vunpack.c.l.b16 %v248
      %v1075 = vunpack.c.h.b16 %v248
      %v1076 = vunpack.c.l.b16 %v249
      %v1077 = vunpack.c.h.b16 %v249
      %v1078 = vunpack.c.l.b16 %v250
      %v1079 = vunpack.c.h.b16 %v250
      %v1080 = vunpack.c.l.b16 %v251
      %v1081 = vunpack.c.h.b16 %v251
      %v1082 = vunpack.c.l.b16 %v252
      %v1083 = vunpack.c.h.b16 %v252
      %v1084 = vunpack.c.l.b16 %v253
      %v1085 = vunpack.c.h.b16 %v253
      %v1086 = vunpack.c.l.b16 %v254
      %v1087 = vunpack.c.h.b16 %v254
      %v1088 = vunpack.c.l.b16 %v255
      %v1089 = vunpack.c.h.b16 %v255
      %v1090 = vunpack.c.l.b16 %v256
      %v1091 = vunpack.c.h.b16 %v256
      %v1092 = vunpack.c.l.b16 %v257
      %v1093 = vunpack.c.h.b16 %v257
      %v1094 = vunpack.c.l.b16 %v258
      %v1095 = vunpack.c.h.b16 %v258
      %v1096 = vunpack.c.l.b16 %v259
      %v1097 = vunpack.c.h.b16 %v259
      %v1098 = vunpack.c.l.b16 %v260
      %v1099 = vunpack.c.h.b16 %v260
      %v1100 = vunpack.c.l.b16 %v261
      %v1101 = vunpack.c.h.b16 %v261
      %v1102 = vunpack.c.l.b16 %v262
      %v1103 = vunpack.c.h.b16 %v262
      %v1104 = vunpack.c.l.b16 %v263
      %v1105 = vunpack.c.h.b16 %v263
      %v1106 = vunpack.c.l.b16 %v264
      %v1107 = vunpack.c.h.b16 %v264
      %v1108 = vunpack.c.l.b16 %v265
      %v1109 = vunpack.c.h.b16 %v265
      %v1110 = vunpack.c.l.b16 %v266
      %v1111 = vunpack.c.h.b16 %v266
      %v1112 = vunpack.c.l.b16 %v267
      %v1113 = vunpack.c.h.b16 %v267
      %v1114 = vunpack.c.l.b16 %v268
      %v1115 = vunpack.c.h.b16 %v268
      %v1116 = vunpack.c.l.b16 %v269
      %v1117 = vunpack.c.h.b16 %v269
      %v1118 = vunpack.c.l.b16 %v270
      %v1119 = vunpack.c.h.b16 %v270
      %v1120 = vunpack.c.l.b16 %v271
      %v1121 = vunpack.c.h.b16 %v271
      %v1122 = vunpack.c.l.b16 %v272
      %v1123 = vunpack.c.h.b16 %v272
      %v1124 = vunpack.c.l.b16 %v273
      %v1125 = vunpack.c.h.b16 %v273
      %v1126 = vunpack.c.l.b16 %v274
      %v1127 = vunpack.c.h.b16 %v274
      %v1128 = vunpack.c.l.b16 %v275
      %v1129 = vunpack.c.h.b16 %v275
      %v1130 = vunpack.c.l.b16 %v276
      %v1131 = vunpack.c.h.b16 %v276
      %v1132 = vunpack.c.l.b16 %v277
      %v1133 = vunpack.c.h.b16 %v277
      %v1134 = vunpack.c.l.b16 %v278
      %v1135 = vunpack.c.h.b16 %v278
      %v1136 = vunpack.c.l.b16 %v279
      %v1137 = vunpack.c.h.b16 %v279
      %v1138 = vunpack.c.l.b16 %v280
      %v1139 = vunpack.c.h.b16 %v280
      %v1140 = vunpack.c.l.b16 %v281
      %v1141 = vunpack.c.h.b16 %v281
      %v1142 = vunpack.c.l.b16 %v282
      %v1143 = vunpack.c.h.b16 %v282
      %v1144 = vunpack.c.l.b16 %v283
      %v1145 = vunpack.c.h.b16 %v283
      %v1146 = vunpack.c.l.b16 %v284
      %v1147 = vunpack.c.h.b16 %v284
      %v1148 = vunpack.c.l.b16 %v285
      %v1149 = vunpack.c.h.b16 %v285
      %v1150 = vunpack.c.l.b16 %v286
      %v1151 = vunpack.c.h.b16 %v286
      %v1152 = vunpack.c.l.b16 %v287
      %v1153 = vunpack.c.h.b16 %v287
      %v1154 = vunpack.c.l.b16 %v288
      %v1155 = vunpack.c.h.b16 %v288
      %v1156 = vunpack.c.l.b16 %v289
      %v1157 = vunpack.c.h.b16 %v289
      %v1158 = vunpack.c.l.b16 %v290
      %v1159 = vunpack.c.h.b16 %v290
      %v1160 = vunpack.c.l.b16 %v291
      %v1161 = vunpack.c.h.b16 %v291
      %v1162 = vunpack.c.l.b16 %v292
      %v1163 = vunpack.c.h.b16 %v292
      %v1164 = vunpack.c.l.b16 %v293
      %v1165 = vunpack.c.h.b16 %v293
      %v1166 = vunpack.c.l.b16 %v294
      %v1167 = vunpack.c.h.b16 %v294
      %v1168 = vunpack.c.l.b16 %v295
      %v1169 = vunpack.c.h.b16 %v295
      %v1170 = vunpack.c.l.b16 %v296
      %v1171 = vunpack.c.h.b16 %v296
      %v1172 = vunpack.c.l.b16 %v297
      %v1173 = vunpack.c.h.b16 %v297
      %v1174 = vunpack.c.l.b16 %v298
      %v1175 = vunpack.c.h.b16 %v298
      %v1176 = vunpack.c.l.b16 %v299
      %v1177 = vunpack.c.h.b16 %v299
      %v1178 = vunpack.c.l.b16 %v300
      %v1179 = vunpack.c.h.b16 %v300
      %v1180 = vunpack.c.l.b16 %v301
      %v1181 = vunpack.c.h.b16 %v301
      %v1182 = vunpack.c.l.b16 %v302
      %v1183 = vunpack.c.h.b16 %v302
      %v1184 = vunpack.c.l.b16 %v303
      %v1185 = vunpack.c.h.b16 %v303
      %v1186 = vunpack.c.l.b16 %v304
      %v1187 = vunpack.c.h.b16 %v304
      %v1188 = vunpack.c.l.b16 %v305
      %v1189 = vunpack.c.h.b16 %v305
      %v1190 = vunpack.c.l.b16 %v306
      %v1191 = vunpack.c.h.b16 %v306
      %v1192 = vunpack.c.l.b16 %v307
      %v1193 = vunpack.c.h.b16 %v307
      %v1194 = vunpack.c.l.b16 %v308
      %v1195 = vunpack.c.h.b16 %v308
      %v1196 = vunpack.c.l.b16 %v309
      %v1197 = vunpack.c.h.b16 %v309
      %v1198 = vunpack.c.l.b16 %v310
      %v1199 = vunpack.c.h.b16 %v310
      %v1200 = vpack.c.b16 %v1044, %v1040
      %v1201 = vpack.c.b16 %v1045, %v1041
      %v1202 = vpack.c.b16 %v1046, %v1042
      %v1203 = vpack.c.b16 %v1047, %v1043
      %v1204 = vpack.c.b16 %v1052, %v1048
      %v1205 = vpack.c.b16 %v1053, %v1049
      %v1206 = vpack.c.b16 %v1054, %v1050
      %v1207 = vpack.c.b16 %v1055, %v1051
      %v1208 = vpack.c.b16 %v1060, %v1056
      %v1209 = vpack.c.b16 %v1061, %v1057
      %v1210 = vpack.c.b16 %v1062, %v1058
      %v1211 = vpack.c.b16 %v1063, %v1059
      %v1212 = vpack.c.b16 %v1068, %v1064
      %v1213 = vpack.c.b16 %v1069, %v1065
      %v1214 = vpack.c.b16 %v1070, %v1066
      %v1215 = vpack.c.b16 %v1071, %v1067
      %v1216 = vpack.c.b16 %v1076, %v1072
      %v1217 = vpack.c.b16 %v1077, %v1073
      %v1218 = vpack.c.b16 %v1078, %v1074
      %v1219 = vpack.c.b16 %v1079, %v1075
      %v1220 = vpack.c.b16 %v1084, %v1080
      %v1221 = vpack.c.b16 %v1085, %v1081
      %v1222 = vpack.c.b16 %v1086, %v1082
      %v1223 = vpack.c.b16 %v1087, %v1083
      %v1224 = vpack.c.b16 %v1092, %v1088
      %v1225 = vpack.c.b16 %v1093, %v1089
      %v1226 = vpack.c.b16 %v1094, %v1090
      %v1227 = vpack.c.b16 %v1095, %v1091
      %v1228 = vpack.c.b16 %v1100, %v1096
      %v1229 = vpack.c.b16 %v1101, %v1097
      %v1230 = vpack.c.b16 %v1102, %v1098
      %v1231 = vpack.c.b16 %v1103, %v1099
      %v1232 = vpack.c.b16 %v1108, %v1104
      %v1233 = vpack.c.b16 %v1109, %v1105
      %v1234 = vpack.c.b16 %v1110, %v1106
      %v1235 = vpack.c.b16 %v1111, %v1107
      %v1236 = vpack.c.b16 %v1116, %v1112
      %v1237 = vpack.c.b16 %v1117, %v1113
      %v1238 = vpack.c.b16 %v1118, %v1114
      %v1239 = vpack.c.b16 %v1119, %v1115
      %v1240 = vpack.c.b16 %v1124, %v1120
      %v1241 = vpack.c.b16 %v1125, %v1121
      %v1242 = vpack.c.b16 %v1126, %v1122
      %v1243 = vpack.c.b16 %v1127, %v1123
      %v1244 = vpack.c.b16 %v1132, %v1128
      %v1245 = vpack.c.b16 %v1133, %v1129
      %v1246 = vpack.c.b16 %v1134, %v1130
      %v1247 = vpack.c.b16 %v1135, %v1131
      %v1248 = vpack.c.b16 %v1140, %v1136
      %v1249 = vpack.c.b16 %v1141, %v1137
      %v1250 = vpack.c.b16 %v1142, %v1138
      %v1251 = vpack.c.b16 %v1143, %v1139
      %v1252 = vpack.c.b16 %v1148, %v1144
      %v1253 = vpack.c.b16 %v1149, %v1145
      %v1254 = vpack.c.b16 %v1150, %v1146
      %v1255 = vpack.c.b16 %v1151, %v1147
      %v1256 = vpack.c.b16 %v1156, %v1152
      %v1257 = vpack.c.b16 %v1157, %v1153
      %v1258 = vpack.c.b16 %v1158, %v1154
      %v1259 = vpack.c.b16 %v1159, %v1155
      %v1260 = vpack.c.b16 %v1164, %v1160
      %v1261 = vpack.c.b16 %v1165, %v1161
      %v1262 = vpack.c.b16 %v1166, %v1162
      %v1263 = vpack.c.b16 %v1167, %v1163
      %v1264 = vpack.c.b16 %v1172, %v1168
      %v1265 = vpack.c.b16 %v1173, %v1169
      %v1266 = vpack.c.b16 %v1174, %v1170
      %v1267 = vpack.c.b16 %v1175, %v1171
      %v1268 = vpack.c.b16 %v1180, %v1176
      %v1269 = vpack.c.b16 %v1181, %v1177
      %v1270 = vpack.c.b16 %v1182, %v1178
      %v1271 = vpack.c.b16 %v1183, %v1179
      %v1272 = vpack.c.b16 %v1188, %v1184
      %v1273 = vpack.c.b16 %v1189, %v1185
      %v1274 = vpack.c.b16 %v1190, %v1186
      %v1275 = vpack.c.b16 %v1191, %v1187
      %v1276 = vpack.c.b16 %v1196, %v1192
      %v1277 = vpack.c.b16 %v1197, %v1193
      %v1278 = vpack.c.b16 %v1198, %v1194
      %v1279 = vpack.c.b16 %v1199, %v1195
      %v1361 = vsel %vm792, %v227, 0
      %1363 = vmatprep.subr.bf16.mxu0 %v1201
      %1364 = vmatpush1.bf16.msra.mxu0 %v1200
      %1365 = vmatprep.subr.bf16.mxu0 %v1205
      %1366 = vmatpush1.bf16.msra.mxu0 %v1204
      %1367 = vmatprep.subr.bf16.mxu0 %v1209
      %1368 = vmatpush1.bf16.msra.mxu0 %v1208
      %1369 = vmatprep.subr.bf16.mxu0 %v1213
      %1370 = vmatpush1.bf16.msra.mxu0 %v1212
      %1371 = vmatprep.subr.bf16.mxu0 %v1217
      %1372 = vmatpush1.bf16.msra.mxu0 %v1216
      %1373 = vmatprep.subr.bf16.mxu0 %v1221
      %1374 = vmatpush1.bf16.msra.mxu0 %v1220
      %1375 = vmatprep.subr.bf16.mxu0 %v1225
      %1376 = vmatpush1.bf16.msra.mxu0 %v1224
      %1377 = vmatprep.subr.bf16.mxu0 %v1229
      %1378 = vmatpush1.bf16.msra.mxu0 %v1228
      %1379 = vmatprep.subr.bf16.mxu0 %v1233
      %1380 = vmatpush1.bf16.msra.mxu0 %v1232
      %1381 = vmatprep.subr.bf16.mxu0 %v1237
      %1382 = vmatpush1.bf16.msra.mxu0 %v1236
      %1383 = vmatprep.subr.bf16.mxu0 %v1241
      %1384 = vmatpush1.bf16.msra.mxu0 %v1240
      %1385 = vmatprep.subr.bf16.mxu0 %v1245
      %1386 = vmatpush1.bf16.msra.mxu0 %v1244
      %1387 = vmatprep.subr.bf16.mxu0 %v1249
      %1388 = vmatpush1.bf16.msra.mxu0 %v1248
      %1389 = vmatprep.subr.bf16.mxu0 %v1253
      %1390 = vmatpush1.bf16.msra.mxu0 %v1252
      %1391 = vmatprep.subr.bf16.mxu0 %v1257
      %1392 = vmatpush1.bf16.msra.mxu0 %v1256
      %1393 = vmatprep.subr.bf16.mxu0 %v1261
      %1394 = vmatpush1.bf16.msra.mxu0 %v1260
      %1395 = vmatprep.mubr.bf16.mxu0 %v226
      %1396 = vmatmul.mubr.bf16.gmra.mrb[0].mxu0 %v225
      %v1397 = vpop.f32.mrb[0].mxu0
      %v1398 = vadd.f32 %v872, %v1397
      %v1399 = vpop.f32.mrb[0].mxu0
      %v1400 = vadd.f32 %v874, %v1399
      %v1401 = vpop.f32.mrb[0].mxu0
      %v1402 = vpop.f32.mrb[0].mxu0
      %1403 = vdwg.mxu0
      %1404 = vmatprep.subr.bf16.mxu0 %v1265
      %1405 = vmatpush1.bf16.msra.mxu0 %v1264
      %1406 = vmatprep.subr.bf16.mxu0 %v1269
      %1407 = vmatpush1.bf16.msra.mxu0 %v1268
      %1408 = vmatprep.subr.bf16.mxu0 %v1273
      %1409 = vmatpush1.bf16.msra.mxu0 %v1272
      %1410 = vmatprep.subr.bf16.mxu0 %v1277
      %1411 = vmatpush1.bf16.msra.mxu0 %v1276
      %1412 = vmatprep.subr.bf16.mxu0 0
      %1413 = vmatpush1.bf16.msra.mxu0 0
      %1414 = vmatprep.subr.bf16.mxu0 0
      %1415 = vmatpush1.bf16.msra.mxu0 0
      %1416 = vmatprep.subr.bf16.mxu0 0
      %1417 = vmatpush1.bf16.msra.mxu0 0
      %1418 = vmatprep.subr.bf16.mxu0 0
      %1419 = vmatpush1.bf16.msra.mxu0 0
      %1420 = vmatprep.subr.bf16.mxu0 0
      %1421 = vmatpush1.bf16.msra.mxu0 0
      %1422 = vmatprep.subr.bf16.mxu0 0
      %1423 = vmatpush1.bf16.msra.mxu0 0
      %1424 = vmatprep.subr.bf16.mxu0 0
      %1425 = vmatpush1.bf16.msra.mxu0 0
      %1426 = vmatprep.subr.bf16.mxu0 0
      %1427 = vmatpush1.bf16.msra.mxu0 0
      %1428 = vmatprep.subr.bf16.mxu0 0
      %1429 = vmatpush1.bf16.msra.mxu0 0
      %1430 = vmatprep.subr.bf16.mxu0 0
      %1431 = vmatpush1.bf16.msra.mxu0 0
      %1432 = vmatprep.subr.bf16.mxu0 0
      %1433 = vmatpush1.bf16.msra.mxu0 0
      %1434 = vmatprep.subr.bf16.mxu0 0
      %1435 = vmatpush1.bf16.msra.mxu0 0
      %1436 = vmatprep.mubr.bf16.mxu0 0
      %1437 = vmatmul.mubr.bf16.gmra.mrb[0].mxu0 %v1361
      %v1438 = vpop.f32.mrb[0].mxu0
      %v1439 = vadd.f32 %v1398, %v1438
      %v1440 = vpop.f32.mrb[0].mxu0
      %v1441 = vadd.f32 %v1400, %v1440
      %v1442 = vpop.f32.mrb[0].mxu0
      %v1443 = vpop.f32.mrb[0].mxu0
      %1444 = vdwg.mxu0
      %1445 = vmatprep.subr.bf16.mxu0 %v1203
      %1446 = vmatpush1.bf16.msra.mxu0 %v1202
      %1447 = vmatprep.subr.bf16.mxu0 %v1207
      %1448 = vmatpush1.bf16.msra.mxu0 %v1206
      %1449 = vmatprep.subr.bf16.mxu0 %v1211
      %1450 = vmatpush1.bf16.msra.mxu0 %v1210
      %1451 = vmatprep.subr.bf16.mxu0 %v1215
      %1452 = vmatpush1.bf16.msra.mxu0 %v1214
      %1453 = vmatprep.subr.bf16.mxu0 %v1219
      %1454 = vmatpush1.bf16.msra.mxu0 %v1218
      %1455 = vmatprep.subr.bf16.mxu0 %v1223
      %1456 = vmatpush1.bf16.msra.mxu0 %v1222
      %1457 = vmatprep.subr.bf16.mxu0 %v1227
      %1458 = vmatpush1.bf16.msra.mxu0 %v1226
      %1459 = vmatprep.subr.bf16.mxu0 %v1231
      %1460 = vmatpush1.bf16.msra.mxu0 %v1230
      %1461 = vmatprep.subr.bf16.mxu0 %v1235
      %1462 = vmatpush1.bf16.msra.mxu0 %v1234
      %1463 = vmatprep.subr.bf16.mxu0 %v1239
      %1464 = vmatpush1.bf16.msra.mxu0 %v1238
      %1465 = vmatprep.subr.bf16.mxu0 %v1243
      %1466 = vmatpush1.bf16.msra.mxu0 %v1242
      %1467 = vmatprep.subr.bf16.mxu0 %v1247
      %1468 = vmatpush1.bf16.msra.mxu0 %v1246
      %1469 = vmatprep.subr.bf16.mxu0 %v1251
      %1470 = vmatpush1.bf16.msra.mxu0 %v1250
      %1471 = vmatprep.subr.bf16.mxu0 %v1255
      %1472 = vmatpush1.bf16.msra.mxu0 %v1254
      %1473 = vmatprep.subr.bf16.mxu0 %v1259
      %1474 = vmatpush1.bf16.msra.mxu0 %v1258
      %1475 = vmatprep.subr.bf16.mxu0 %v1263
      %1476 = vmatpush1.bf16.msra.mxu0 %v1262
      %1477 = vmatprep.mubr.bf16.mxu0 %v226
      %1478 = vmatmul.mubr.bf16.gmra.mrb[0].mxu0 %v225
      %v1479 = vpop.f32.mrb[0].mxu0
      %v1480 = vadd.f32 %v954, %v1479
      %v1481 = vpop.f32.mrb[0].mxu0
      %v1482 = vadd.f32 %v956, %v1481
      %v1483 = vpop.f32.mrb[0].mxu0
      %v1484 = vpop.f32.mrb[0].mxu0
      %1485 = vdwg.mxu0
      %1486 = vmatprep.subr.bf16.mxu0 %v1267
      %1487 = vmatpush1.bf16.msra.mxu0 %v1266
      %1488 = vmatprep.subr.bf16.mxu0 %v1271
      %1489 = vmatpush1.bf16.msra.mxu0 %v1270
      %1490 = vmatprep.subr.bf16.mxu0 %v1275
      %1491 = vmatpush1.bf16.msra.mxu0 %v1274
      %1492 = vmatprep.subr.bf16.mxu0 %v1279
      %1493 = vmatpush1.bf16.msra.mxu0 %v1278
      %1494 = vmatprep.subr.bf16.mxu0 0
      %1495 = vmatpush1.bf16.msra.mxu0 0
      %1496 = vmatprep.subr.bf16.mxu0 0
      %1497 = vmatpush1.bf16.msra.mxu0 0
      %1498 = vmatprep.subr.bf16.mxu0 0
      %1499 = vmatpush1.bf16.msra.mxu0 0
      %1500 = vmatprep.subr.bf16.mxu0 0
      %1501 = vmatpush1.bf16.msra.mxu0 0
      %1502 = vmatprep.subr.bf16.mxu0 0
      %1503 = vmatpush1.bf16.msra.mxu0 0
      %1504 = vmatprep.subr.bf16.mxu0 0
      %1505 = vmatpush1.bf16.msra.mxu0 0
      %1506 = vmatprep.subr.bf16.mxu0 0
      %1507 = vmatpush1.bf16.msra.mxu0 0
      %1508 = vmatprep.subr.bf16.mxu0 0
      %1509 = vmatpush1.bf16.msra.mxu0 0
      %1510 = vmatprep.subr.bf16.mxu0 0
      %1511 = vmatpush1.bf16.msra.mxu0 0
      %1512 = vmatprep.subr.bf16.mxu0 0
      %1513 = vmatpush1.bf16.msra.mxu0 0
      %1514 = vmatprep.subr.bf16.mxu0 0
      %1515 = vmatpush1.bf16.msra.mxu0 0
      %1516 = vmatprep.subr.bf16.mxu0 0
      %1517 = vmatpush1.bf16.msra.mxu0 0
      %1518 = vmatprep.mubr.bf16.mxu0 0
      %1519 = vmatmul.mubr.bf16.gmra.mrb[0].mxu0 %v1361
      %v1520 = vpop.f32.mrb[0].mxu0
      %v1521 = vadd.f32 %v1480, %v1520
      %v1522 = vpop.f32.mrb[0].mxu0
      %v1523 = vadd.f32 %v1482, %v1522
      %v1524 = vpop.f32.mrb[0].mxu0
      %v1525 = vpop.f32.mrb[0].mxu0
      %1526 = vdwg.mxu0
      %s1527 = scalar_lea.vmem %s2, 1280
      %v1528 = vld [vmem:[%s1527] sm:$0xff]
      %v1529 = vld [vmem:[%s1527 + $0x8] sm:$0xff]
      %v1530 = vld [vmem:[%s1527 + $0x10] sm:$0xff]
      %v1531 = vld [vmem:[%s1527 + $0x18] sm:$0xff]
      %v1532 = vld [vmem:[%s1527 + $0x20] sm:$0xff]
      %v1533 = vld [vmem:[%s1527 + $0x28] sm:$0xff]
      %v1534 = vld [vmem:[%s1527 + $0x30] sm:$0xff]
      %v1535 = vld [vmem:[%s1527 + $0x38] sm:$0xff]
      %v1536 = vld [vmem:[%s1527 + $0x40] sm:$0xff]
      %v1537 = vld [vmem:[%s1527 + $0x48] sm:$0xff]
      %v1538 = vld [vmem:[%s1527 + $0x50] sm:$0xff]
      %v1539 = vld [vmem:[%s1527 + $0x58] sm:$0xff]
      %v1540 = vld [vmem:[%s1527 + $0x60] sm:$0xff]
      %v1541 = vld [vmem:[%s1527 + $0x68] sm:$0xff]
      %v1542 = vld [vmem:[%s1527 + $0x70] sm:$0xff]
      %v1543 = vld [vmem:[%s1527 + $0x78] sm:$0xff]
      %v1544 = vld [vmem:[%s1527 + $0x80] sm:$0xff]
      %v1545 = vld [vmem:[%s1527 + $0x88] sm:$0xff]
      %v1546 = vld [vmem:[%s1527 + $0x90] sm:$0xff]
      %v1547 = vld [vmem:[%s1527 + $0x98] sm:$0xff]
      %v1548 = vld [vmem:[%s1527 + $0xa0] sm:$0xff]
      %v1549 = vld [vmem:[%s1527 + $0xa8] sm:$0xff]
      %v1550 = vld [vmem:[%s1527 + $0xb0] sm:$0xff]
      %v1551 = vld [vmem:[%s1527 + $0xb8] sm:$0xff]
      %v1552 = vld [vmem:[%s1527 + $0xc0] sm:$0xff]
      %v1553 = vld [vmem:[%s1527 + $0xc8] sm:$0xff]
      %v1554 = vld [vmem:[%s1527 + $0xd0] sm:$0xff]
      %v1555 = vld [vmem:[%s1527 + $0xd8] sm:$0xff]
      %v1556 = vld [vmem:[%s1527 + $0xe0] sm:$0xff]
      %v1557 = vld [vmem:[%s1527 + $0xe8] sm:$0xff]
      %v1558 = vld [vmem:[%s1527 + $0xf0] sm:$0xff]
      %v1559 = vld [vmem:[%s1527 + $0xf8] sm:$0xff]
      %v1560 = vld [vmem:[%s1527 + $0x100] sm:$0xff]
      %v1561 = vld [vmem:[%s1527 + $0x108] sm:$0xff]
      %v1562 = vld [vmem:[%s1527 + $0x110] sm:$0xff]
      %v1563 = vld [vmem:[%s1527 + $0x118] sm:$0xff]
      %v1564 = vld [vmem:[%s1527 + $0x120] sm:$0xff]
      %v1565 = vld [vmem:[%s1527 + $0x128] sm:$0xff]
      %v1566 = vld [vmem:[%s1527 + $0x130] sm:$0xff]
      %v1567 = vld [vmem:[%s1527 + $0x138] sm:$0xff]
      %v1568 = vld [vmem:[%s1527 + $0x140] sm:$0xff]
      %v1569 = vld [vmem:[%s1527 + $0x148] sm:$0xff]
      %v1570 = vld [vmem:[%s1527 + $0x150] sm:$0xff]
      %v1571 = vld [vmem:[%s1527 + $0x158] sm:$0xff]
      %v1572 = vld [vmem:[%s1527 + $0x160] sm:$0xff]
      %v1573 = vld [vmem:[%s1527 + $0x168] sm:$0xff]
      %v1574 = vld [vmem:[%s1527 + $0x170] sm:$0xff]
      %v1575 = vld [vmem:[%s1527 + $0x178] sm:$0xff]
      %v1576 = vld [vmem:[%s1527 + $0x180] sm:$0xff]
      %v1577 = vld [vmem:[%s1527 + $0x188] sm:$0xff]
      %v1578 = vld [vmem:[%s1527 + $0x190] sm:$0xff]
      %v1579 = vld [vmem:[%s1527 + $0x198] sm:$0xff]
      %v1580 = vld [vmem:[%s1527 + $0x1a0] sm:$0xff]
      %v1581 = vld [vmem:[%s1527 + $0x1a8] sm:$0xff]
      %v1582 = vld [vmem:[%s1527 + $0x1b0] sm:$0xff]
      %v1583 = vld [vmem:[%s1527 + $0x1b8] sm:$0xff]
      %v1584 = vld [vmem:[%s1527 + $0x1c0] sm:$0xff]
      %v1585 = vld [vmem:[%s1527 + $0x1c8] sm:$0xff]
      %v1586 = vld [vmem:[%s1527 + $0x1d0] sm:$0xff]
      %v1587 = vld [vmem:[%s1527 + $0x1d8] sm:$0xff]
      %v1588 = vld [vmem:[%s1527 + $0x1e0] sm:$0xff]
      %v1589 = vld [vmem:[%s1527 + $0x1e8] sm:$0xff]
      %v1590 = vld [vmem:[%s1527 + $0x1f0] sm:$0xff]
      %v1591 = vld [vmem:[%s1527 + $0x1f8] sm:$0xff]
      %v1592 = vld [vmem:[%s1527 + $0x200] sm:$0xff]
      %v1593 = vld [vmem:[%s1527 + $0x208] sm:$0xff]
      %v1594 = vld [vmem:[%s1527 + $0x210] sm:$0xff]
      %v1595 = vld [vmem:[%s1527 + $0x218] sm:$0xff]
      %v1596 = vld [vmem:[%s1527 + $0x220] sm:$0xff]
      %v1597 = vld [vmem:[%s1527 + $0x228] sm:$0xff]
      %v1598 = vld [vmem:[%s1527 + $0x230] sm:$0xff]
      %v1599 = vld [vmem:[%s1527 + $0x238] sm:$0xff]
      %v1600 = vld [vmem:[%s1527 + $0x240] sm:$0xff]
      %v1601 = vld [vmem:[%s1527 + $0x248] sm:$0xff]
      %v1602 = vld [vmem:[%s1527 + $0x250] sm:$0xff]
      %v1603 = vld [vmem:[%s1527 + $0x258] sm:$0xff]
      %v1604 = vld [vmem:[%s1527 + $0x260] sm:$0xff]
      %v1605 = vld [vmem:[%s1527 + $0x268] sm:$0xff]
      %v1606 = vld [vmem:[%s1527 + $0x270] sm:$0xff]
      %v1607 = vld [vmem:[%s1527 + $0x278] sm:$0xff]
      %v1609 = vshrl.u32 %v225, 16
      %v1611 = vshll.u32 %v225, 16
      %v1613 = vrot.slane %v1611, 1
      %v1614 = vor.u32 %v1609, %v1613
      %v1616 = vshrl.u32 %v226, 16
      %v1618 = vshll.u32 %v226, 16
      %v1620 = vrot.slane %v1618, 1
      %v1621 = vor.u32 %v1616, %v1620
      %v1622 = vshrl.u32 %v227, 16
      %v1624 = vshll.u32 %v227, 16
      %v1626 = vrot.slane %v1624, 1
      %v1627 = vor.u32 %v1622, %v1626
      %v1710 = vunpack.c.l.b16 %v1528
      %v1711 = vunpack.c.h.b16 %v1528
      %v1712 = vunpack.c.l.b16 %v1529
      %v1713 = vunpack.c.h.b16 %v1529
      %v1714 = vunpack.c.l.b16 %v1530
      %v1715 = vunpack.c.h.b16 %v1530
      %v1716 = vunpack.c.l.b16 %v1531
      %v1717 = vunpack.c.h.b16 %v1531
      %v1718 = vunpack.c.l.b16 %v1532
      %v1719 = vunpack.c.h.b16 %v1532
      %v1720 = vunpack.c.l.b16 %v1533
      %v1721 = vunpack.c.h.b16 %v1533
      %v1722 = vunpack.c.l.b16 %v1534
      %v1723 = vunpack.c.h.b16 %v1534
      %v1724 = vunpack.c.l.b16 %v1535
      %v1725 = vunpack.c.h.b16 %v1535
      %v1726 = vunpack.c.l.b16 %v1536
      %v1727 = vunpack.c.h.b16 %v1536
      %v1728 = vunpack.c.l.b16 %v1537
      %v1729 = vunpack.c.h.b16 %v1537
      %v1730 = vunpack.c.l.b16 %v1538
      %v1731 = vunpack.c.h.b16 %v1538
      %v1732 = vunpack.c.l.b16 %v1539
      %v1733 = vunpack.c.h.b16 %v1539
      %v1734 = vunpack.c.l.b16 %v1540
      %v1735 = vunpack.c.h.b16 %v1540
      %v1736 = vunpack.c.l.b16 %v1541
      %v1737 = vunpack.c.h.b16 %v1541
      %v1738 = vunpack.c.l.b16 %v1542
      %v1739 = vunpack.c.h.b16 %v1542
      %v1740 = vunpack.c.l.b16 %v1543
      %v1741 = vunpack.c.h.b16 %v1543
      %v1742 = vunpack.c.l.b16 %v1544
      %v1743 = vunpack.c.h.b16 %v1544
      %v1744 = vunpack.c.l.b16 %v1545
      %v1745 = vunpack.c.h.b16 %v1545
      %v1746 = vunpack.c.l.b16 %v1546
      %v1747 = vunpack.c.h.b16 %v1546
      %v1748 = vunpack.c.l.b16 %v1547
      %v1749 = vunpack.c.h.b16 %v1547
      %v1750 = vunpack.c.l.b16 %v1548
      %v1751 = vunpack.c.h.b16 %v1548
      %v1752 = vunpack.c.l.b16 %v1549
      %v1753 = vunpack.c.h.b16 %v1549
      %v1754 = vunpack.c.l.b16 %v1550
      %v1755 = vunpack.c.h.b16 %v1550
      %v1756 = vunpack.c.l.b16 %v1551
      %v1757 = vunpack.c.h.b16 %v1551
      %v1758 = vunpack.c.l.b16 %v1552
      %v1759 = vunpack.c.h.b16 %v1552
      %v1760 = vunpack.c.l.b16 %v1553
      %v1761 = vunpack.c.h.b16 %v1553
      %v1762 = vunpack.c.l.b16 %v1554
      %v1763 = vunpack.c.h.b16 %v1554
      %v1764 = vunpack.c.l.b16 %v1555
      %v1765 = vunpack.c.h.b16 %v1555
      %v1766 = vunpack.c.l.b16 %v1556
      %v1767 = vunpack.c.h.b16 %v1556
      %v1768 = vunpack.c.l.b16 %v1557
      %v1769 = vunpack.c.h.b16 %v1557
      %v1770 = vunpack.c.l.b16 %v1558
      %v1771 = vunpack.c.h.b16 %v1558
      %v1772 = vunpack.c.l.b16 %v1559
      %v1773 = vunpack.c.h.b16 %v1559
      %v1774 = vunpack.c.l.b16 %v1560
      %v1775 = vunpack.c.h.b16 %v1560
      %v1776 = vunpack.c.l.b16 %v1561
      %v1777 = vunpack.c.h.b16 %v1561
      %v1778 = vunpack.c.l.b16 %v1562
      %v1779 = vunpack.c.h.b16 %v1562
      %v1780 = vunpack.c.l.b16 %v1563
      %v1781 = vunpack.c.h.b16 %v1563
      %v1782 = vunpack.c.l.b16 %v1564
      %v1783 = vunpack.c.h.b16 %v1564
      %v1784 = vunpack.c.l.b16 %v1565
      %v1785 = vunpack.c.h.b16 %v1565
      %v1786 = vunpack.c.l.b16 %v1566
      %v1787 = vunpack.c.h.b16 %v1566
      %v1788 = vunpack.c.l.b16 %v1567
      %v1789 = vunpack.c.h.b16 %v1567
      %v1790 = vunpack.c.l.b16 %v1568
      %v1791 = vunpack.c.h.b16 %v1568
      %v1792 = vunpack.c.l.b16 %v1569
      %v1793 = vunpack.c.h.b16 %v1569
      %v1794 = vunpack.c.l.b16 %v1570
      %v1795 = vunpack.c.h.b16 %v1570
      %v1796 = vunpack.c.l.b16 %v1571
      %v1797 = vunpack.c.h.b16 %v1571
      %v1798 = vunpack.c.l.b16 %v1572
      %v1799 = vunpack.c.h.b16 %v1572
      %v1800 = vunpack.c.l.b16 %v1573
      %v1801 = vunpack.c.h.b16 %v1573
      %v1802 = vunpack.c.l.b16 %v1574
      %v1803 = vunpack.c.h.b16 %v1574
      %v1804 = vunpack.c.l.b16 %v1575
      %v1805 = vunpack.c.h.b16 %v1575
      %v1806 = vunpack.c.l.b16 %v1576
      %v1807 = vunpack.c.h.b16 %v1576
      %v1808 = vunpack.c.l.b16 %v1577
      %v1809 = vunpack.c.h.b16 %v1577
      %v1810 = vunpack.c.l.b16 %v1578
      %v1811 = vunpack.c.h.b16 %v1578
      %v1812 = vunpack.c.l.b16 %v1579
      %v1813 = vunpack.c.h.b16 %v1579
      %v1814 = vunpack.c.l.b16 %v1580
      %v1815 = vunpack.c.h.b16 %v1580
      %v1816 = vunpack.c.l.b16 %v1581
      %v1817 = vunpack.c.h.b16 %v1581
      %v1818 = vunpack.c.l.b16 %v1582
      %v1819 = vunpack.c.h.b16 %v1582
      %v1820 = vunpack.c.l.b16 %v1583
      %v1821 = vunpack.c.h.b16 %v1583
      %v1822 = vunpack.c.l.b16 %v1584
      %v1823 = vunpack.c.h.b16 %v1584
      %v1824 = vunpack.c.l.b16 %v1585
      %v1825 = vunpack.c.h.b16 %v1585
      %v1826 = vunpack.c.l.b16 %v1586
      %v1827 = vunpack.c.h.b16 %v1586
      %v1828 = vunpack.c.l.b16 %v1587
      %v1829 = vunpack.c.h.b16 %v1587
      %v1830 = vunpack.c.l.b16 %v1588
      %v1831 = vunpack.c.h.b16 %v1588
      %v1832 = vunpack.c.l.b16 %v1589
      %v1833 = vunpack.c.h.b16 %v1589
      %v1834 = vunpack.c.l.b16 %v1590
      %v1835 = vunpack.c.h.b16 %v1590
      %v1836 = vunpack.c.l.b16 %v1591
      %v1837 = vunpack.c.h.b16 %v1591
      %v1838 = vunpack.c.l.b16 %v1592
      %v1839 = vunpack.c.h.b16 %v1592
      %v1840 = vunpack.c.l.b16 %v1593
      %v1841 = vunpack.c.h.b16 %v1593
      %v1842 = vunpack.c.l.b16 %v1594
      %v1843 = vunpack.c.h.b16 %v1594
      %v1844 = vunpack.c.l.b16 %v1595
      %v1845 = vunpack.c.h.b16 %v1595
      %v1846 = vunpack.c.l.b16 %v1596
      %v1847 = vunpack.c.h.b16 %v1596
      %v1848 = vunpack.c.l.b16 %v1597
      %v1849 = vunpack.c.h.b16 %v1597
      %v1850 = vunpack.c.l.b16 %v1598
      %v1851 = vunpack.c.h.b16 %v1598
      %v1852 = vunpack.c.l.b16 %v1599
      %v1853 = vunpack.c.h.b16 %v1599
      %v1854 = vunpack.c.l.b16 %v1600
      %v1855 = vunpack.c.h.b16 %v1600
      %v1856 = vunpack.c.l.b16 %v1601
      %v1857 = vunpack.c.h.b16 %v1601
      %v1858 = vunpack.c.l.b16 %v1602
      %v1859 = vunpack.c.h.b16 %v1602
      %v1860 = vunpack.c.l.b16 %v1603
      %v1861 = vunpack.c.h.b16 %v1603
      %v1862 = vunpack.c.l.b16 %v1604
      %v1863 = vunpack.c.h.b16 %v1604
      %v1864 = vunpack.c.l.b16 %v1605
      %v1865 = vunpack.c.h.b16 %v1605
      %v1866 = vunpack.c.l.b16 %v1606
      %v1867 = vunpack.c.h.b16 %v1606
      %v1868 = vunpack.c.l.b16 %v1607
      %v1869 = vunpack.c.h.b16 %v1607
      %v1870 = vpack.c.b16 %v1714, %v1710
      %v1871 = vpack.c.b16 %v1715, %v1711
      %v1872 = vpack.c.b16 %v1716, %v1712
      %v1873 = vpack.c.b16 %v1717, %v1713
      %v1874 = vpack.c.b16 %v1722, %v1718
      %v1875 = vpack.c.b16 %v1723, %v1719
      %v1876 = vpack.c.b16 %v1724, %v1720
      %v1877 = vpack.c.b16 %v1725, %v1721
      %v1878 = vpack.c.b16 %v1730, %v1726
      %v1879 = vpack.c.b16 %v1731, %v1727
      %v1880 = vpack.c.b16 %v1732, %v1728
      %v1881 = vpack.c.b16 %v1733, %v1729
      %v1882 = vpack.c.b16 %v1738, %v1734
      %v1883 = vpack.c.b16 %v1739, %v1735
      %v1884 = vpack.c.b16 %v1740, %v1736
      %v1885 = vpack.c.b16 %v1741, %v1737
      %v1886 = vpack.c.b16 %v1746, %v1742
      %v1887 = vpack.c.b16 %v1747, %v1743
      %v1888 = vpack.c.b16 %v1748, %v1744
      %v1889 = vpack.c.b16 %v1749, %v1745
      %v1890 = vpack.c.b16 %v1754, %v1750
      %v1891 = vpack.c.b16 %v1755, %v1751
      %v1892 = vpack.c.b16 %v1756, %v1752
      %v1893 = vpack.c.b16 %v1757, %v1753
      %v1894 = vpack.c.b16 %v1762, %v1758
      %v1895 = vpack.c.b16 %v1763, %v1759
      %v1896 = vpack.c.b16 %v1764, %v1760
      %v1897 = vpack.c.b16 %v1765, %v1761
      %v1898 = vpack.c.b16 %v1770, %v1766
      %v1899 = vpack.c.b16 %v1771, %v1767
      %v1900 = vpack.c.b16 %v1772, %v1768
      %v1901 = vpack.c.b16 %v1773, %v1769
      %v1902 = vpack.c.b16 %v1778, %v1774
      %v1903 = vpack.c.b16 %v1779, %v1775
      %v1904 = vpack.c.b16 %v1780, %v1776
      %v1905 = vpack.c.b16 %v1781, %v1777
      %v1906 = vpack.c.b16 %v1786, %v1782
      %v1907 = vpack.c.b16 %v1787, %v1783
      %v1908 = vpack.c.b16 %v1788, %v1784
      %v1909 = vpack.c.b16 %v1789, %v1785
      %v1910 = vpack.c.b16 %v1794, %v1790
      %v1911 = vpack.c.b16 %v1795, %v1791
      %v1912 = vpack.c.b16 %v1796, %v1792
      %v1913 = vpack.c.b16 %v1797, %v1793
      %v1914 = vpack.c.b16 %v1802, %v1798
      %v1915 = vpack.c.b16 %v1803, %v1799
      %v1916 = vpack.c.b16 %v1804, %v1800
      %v1917 = vpack.c.b16 %v1805, %v1801
      %v1918 = vpack.c.b16 %v1810, %v1806
      %v1919 = vpack.c.b16 %v1811, %v1807
      %v1920 = vpack.c.b16 %v1812, %v1808
      %v1921 = vpack.c.b16 %v1813, %v1809
      %v1922 = vpack.c.b16 %v1818, %v1814
      %v1923 = vpack.c.b16 %v1819, %v1815
      %v1924 = vpack.c.b16 %v1820, %v1816
      %v1925 = vpack.c.b16 %v1821, %v1817
      %v1926 = vpack.c.b16 %v1826, %v1822
      %v1927 = vpack.c.b16 %v1827, %v1823
      %v1928 = vpack.c.b16 %v1828, %v1824
      %v1929 = vpack.c.b16 %v1829, %v1825
      %v1930 = vpack.c.b16 %v1834, %v1830
      %v1931 = vpack.c.b16 %v1835, %v1831
      %v1932 = vpack.c.b16 %v1836, %v1832
      %v1933 = vpack.c.b16 %v1837, %v1833
      %v1934 = vpack.c.b16 %v1842, %v1838
      %v1935 = vpack.c.b16 %v1843, %v1839
      %v1936 = vpack.c.b16 %v1844, %v1840
      %v1937 = vpack.c.b16 %v1845, %v1841
      %v1938 = vpack.c.b16 %v1850, %v1846
      %v1939 = vpack.c.b16 %v1851, %v1847
      %v1940 = vpack.c.b16 %v1852, %v1848
      %v1941 = vpack.c.b16 %v1853, %v1849
      %v1942 = vpack.c.b16 %v1858, %v1854
      %v1943 = vpack.c.b16 %v1859, %v1855
      %v1944 = vpack.c.b16 %v1860, %v1856
      %v1945 = vpack.c.b16 %v1861, %v1857
      %v1946 = vpack.c.b16 %v1866, %v1862
      %v1947 = vpack.c.b16 %v1867, %v1863
      %v1948 = vpack.c.b16 %v1868, %v1864
      %v1949 = vpack.c.b16 %v1869, %v1865
      %v2031 = vsel %vm792, %v1627, 0
      %2033 = vmatprep.subr.bf16.mxu0 %v1871
      %2034 = vmatpush1.bf16.msra.mxu0 %v1870
      %2035 = vmatprep.subr.bf16.mxu0 %v1875
      %2036 = vmatpush1.bf16.msra.mxu0 %v1874
      %2037 = vmatprep.subr.bf16.mxu0 %v1879
      %2038 = vmatpush1.bf16.msra.mxu0 %v1878
      %2039 = vmatprep.subr.bf16.mxu0 %v1883
      %2040 = vmatpush1.bf16.msra.mxu0 %v1882
      %2041 = vmatprep.subr.bf16.mxu0 %v1887
      %2042 = vmatpush1.bf16.msra.mxu0 %v1886
      %2043 = vmatprep.subr.bf16.mxu0 %v1891
      %2044 = vmatpush1.bf16.msra.mxu0 %v1890
      %2045 = vmatprep.subr.bf16.mxu0 %v1895
      %2046 = vmatpush1.bf16.msra.mxu0 %v1894
      %2047 = vmatprep.subr.bf16.mxu0 %v1899
      %2048 = vmatpush1.bf16.msra.mxu0 %v1898
      %2049 = vmatprep.subr.bf16.mxu0 %v1903
      %2050 = vmatpush1.bf16.msra.mxu0 %v1902
      %2051 = vmatprep.subr.bf16.mxu0 %v1907
      %2052 = vmatpush1.bf16.msra.mxu0 %v1906
      %2053 = vmatprep.subr.bf16.mxu0 %v1911
      %2054 = vmatpush1.bf16.msra.mxu0 %v1910
      %2055 = vmatprep.subr.bf16.mxu0 %v1915
      %2056 = vmatpush1.bf16.msra.mxu0 %v1914
      %2057 = vmatprep.subr.bf16.mxu0 %v1919
      %2058 = vmatpush1.bf16.msra.mxu0 %v1918
      %2059 = vmatprep.subr.bf16.mxu0 %v1923
      %2060 = vmatpush1.bf16.msra.mxu0 %v1922
      %2061 = vmatprep.subr.bf16.mxu0 %v1927
      %2062 = vmatpush1.bf16.msra.mxu0 %v1926
      %2063 = vmatprep.subr.bf16.mxu0 %v1931
      %2064 = vmatpush1.bf16.msra.mxu0 %v1930
      %2065 = vmatprep.mubr.bf16.mxu0 %v1621
      %2066 = vmatmul.mubr.bf16.gmra.mrb[0].mxu0 %v1614
      %v2067 = vpop.f32.mrb[0].mxu0
      %v2068 = vadd.f32 0.0, %v2067
      %v2069 = vpop.f32.mrb[0].mxu0
      %v2070 = vadd.f32 0.0, %v2069
      %v2071 = vpop.f32.mrb[0].mxu0
      %v2072 = vpop.f32.mrb[0].mxu0
      %2073 = vdwg.mxu0
      %2074 = vmatprep.subr.bf16.mxu0 %v1935
      %2075 = vmatpush1.bf16.msra.mxu0 %v1934
      %2076 = vmatprep.subr.bf16.mxu0 %v1939
      %2077 = vmatpush1.bf16.msra.mxu0 %v1938
      %2078 = vmatprep.subr.bf16.mxu0 %v1943
      %2079 = vmatpush1.bf16.msra.mxu0 %v1942
      %2080 = vmatprep.subr.bf16.mxu0 %v1947
      %2081 = vmatpush1.bf16.msra.mxu0 %v1946
      %2082 = vmatprep.subr.bf16.mxu0 0
      %2083 = vmatpush1.bf16.msra.mxu0 0
      %2084 = vmatprep.subr.bf16.mxu0 0
      %2085 = vmatpush1.bf16.msra.mxu0 0
      %2086 = vmatprep.subr.bf16.mxu0 0
      %2087 = vmatpush1.bf16.msra.mxu0 0
      %2088 = vmatprep.subr.bf16.mxu0 0
      %2089 = vmatpush1.bf16.msra.mxu0 0
      %2090 = vmatprep.subr.bf16.mxu0 0
      %2091 = vmatpush1.bf16.msra.mxu0 0
      %2092 = vmatprep.subr.bf16.mxu0 0
      %2093 = vmatpush1.bf16.msra.mxu0 0
      %2094 = vmatprep.subr.bf16.mxu0 0
      %2095 = vmatpush1.bf16.msra.mxu0 0
      %2096 = vmatprep.subr.bf16.mxu0 0
      %2097 = vmatpush1.bf16.msra.mxu0 0
      %2098 = vmatprep.subr.bf16.mxu0 0
      %2099 = vmatpush1.bf16.msra.mxu0 0
      %2100 = vmatprep.subr.bf16.mxu0 0
      %2101 = vmatpush1.bf16.msra.mxu0 0
      %2102 = vmatprep.subr.bf16.mxu0 0
      %2103 = vmatpush1.bf16.msra.mxu0 0
      %2104 = vmatprep.subr.bf16.mxu0 0
      %2105 = vmatpush1.bf16.msra.mxu0 0
      %2106 = vmatprep.mubr.bf16.mxu0 0
      %2107 = vmatmul.mubr.bf16.gmra.mrb[0].mxu0 %v2031
      %v2108 = vpop.f32.mrb[0].mxu0
      %v2109 = vadd.f32 %v2068, %v2108
      %v2110 = vpop.f32.mrb[0].mxu0
      %v2111 = vadd.f32 %v2070, %v2110
      %v2112 = vpop.f32.mrb[0].mxu0
      %v2113 = vpop.f32.mrb[0].mxu0
      %2114 = vdwg.mxu0
      %2115 = vmatprep.subr.bf16.mxu0 %v1873
      %2116 = vmatpush1.bf16.msra.mxu0 %v1872
      %2117 = vmatprep.subr.bf16.mxu0 %v1877
      %2118 = vmatpush1.bf16.msra.mxu0 %v1876
      %2119 = vmatprep.subr.bf16.mxu0 %v1881
      %2120 = vmatpush1.bf16.msra.mxu0 %v1880
      %2121 = vmatprep.subr.bf16.mxu0 %v1885
      %2122 = vmatpush1.bf16.msra.mxu0 %v1884
      %2123 = vmatprep.subr.bf16.mxu0 %v1889
      %2124 = vmatpush1.bf16.msra.mxu0 %v1888
      %2125 = vmatprep.subr.bf16.mxu0 %v1893
      %2126 = vmatpush1.bf16.msra.mxu0 %v1892
      %2127 = vmatprep.subr.bf16.mxu0 %v1897
      %2128 = vmatpush1.bf16.msra.mxu0 %v1896
      %2129 = vmatprep.subr.bf16.mxu0 %v1901
      %2130 = vmatpush1.bf16.msra.mxu0 %v1900
      %2131 = vmatprep.subr.bf16.mxu0 %v1905
      %2132 = vmatpush1.bf16.msra.mxu0 %v1904
      %2133 = vmatprep.subr.bf16.mxu0 %v1909
      %2134 = vmatpush1.bf16.msra.mxu0 %v1908
      %2135 = vmatprep.subr.bf16.mxu0 %v1913
      %2136 = vmatpush1.bf16.msra.mxu0 %v1912
      %2137 = vmatprep.subr.bf16.mxu0 %v1917
      %2138 = vmatpush1.bf16.msra.mxu0 %v1916
      %2139 = vmatprep.subr.bf16.mxu0 %v1921
      %2140 = vmatpush1.bf16.msra.mxu0 %v1920
      %2141 = vmatprep.subr.bf16.mxu0 %v1925
      %2142 = vmatpush1.bf16.msra.mxu0 %v1924
      %2143 = vmatprep.subr.bf16.mxu0 %v1929
      %2144 = vmatpush1.bf16.msra.mxu0 %v1928
      %2145 = vmatprep.subr.bf16.mxu0 %v1933
      %2146 = vmatpush1.bf16.msra.mxu0 %v1932
      %2147 = vmatprep.mubr.bf16.mxu0 %v1621
      %2148 = vmatmul.mubr.bf16.gmra.mrb[0].mxu0 %v1614
      %v2149 = vpop.f32.mrb[0].mxu0
      %v2150 = vadd.f32 0.0, %v2149
      %v2151 = vpop.f32.mrb[0].mxu0
      %v2152 = vadd.f32 0.0, %v2151
      %v2153 = vpop.f32.mrb[0].mxu0
      %v2154 = vpop.f32.mrb[0].mxu0
      %2155 = vdwg.mxu0
      %2156 = vmatprep.subr.bf16.mxu0 %v1937
      %2157 = vmatpush1.bf16.msra.mxu0 %v1936
      %2158 = vmatprep.subr.bf16.mxu0 %v1941
      %2159 = vmatpush1.bf16.msra.mxu0 %v1940
      %2160 = vmatprep.subr.bf16.mxu0 %v1945
      %2161 = vmatpush1.bf16.msra.mxu0 %v1944
      %2162 = vmatprep.subr.bf16.mxu0 %v1949
      %2163 = vmatpush1.bf16.msra.mxu0 %v1948
      %2164 = vmatprep.subr.bf16.mxu0 0
      %2165 = vmatpush1.bf16.msra.mxu0 0
      %2166 = vmatprep.subr.bf16.mxu0 0
      %2167 = vmatpush1.bf16.msra.mxu0 0
      %2168 = vmatprep.subr.bf16.mxu0 0
      %2169 = vmatpush1.bf16.msra.mxu0 0
      %2170 = vmatprep.subr.bf16.mxu0 0
      %2171 = vmatpush1.bf16.msra.mxu0 0
      %2172 = vmatprep.subr.bf16.mxu0 0
      %2173 = vmatpush1.bf16.msra.mxu0 0
      %2174 = vmatprep.subr.bf16.mxu0 0
      %2175 = vmatpush1.bf16.msra.mxu0 0
      %2176 = vmatprep.subr.bf16.mxu0 0
      %2177 = vmatpush1.bf16.msra.mxu0 0
      %2178 = vmatprep.subr.bf16.mxu0 0
      %2179 = vmatpush1.bf16.msra.mxu0 0
      %2180 = vmatprep.subr.bf16.mxu0 0
      %2181 = vmatpush1.bf16.msra.mxu0 0
      %2182 = vmatprep.subr.bf16.mxu0 0
      %2183 = vmatpush1.bf16.msra.mxu0 0
      %2184 = vmatprep.subr.bf16.mxu0 0
      %2185 = vmatpush1.bf16.msra.mxu0 0
      %2186 = vmatprep.subr.bf16.mxu0 0
      %2187 = vmatpush1.bf16.msra.mxu0 0
      %2188 = vmatprep.mubr.bf16.mxu0 0
      %2189 = vmatmul.mubr.bf16.gmra.mrb[0].mxu0 %v2031
      %v2190 = vpop.f32.mrb[0].mxu0
      %v2191 = vadd.f32 %v2150, %v2190
      %v2192 = vpop.f32.mrb[0].mxu0
      %v2193 = vadd.f32 %v2152, %v2192
      %v2194 = vpop.f32.mrb[0].mxu0
      %v2195 = vpop.f32.mrb[0].mxu0
      %2196 = vdwg.mxu0
      %v2197 = vadd.f32 %v1439, %v2109
      %v2198 = vadd.f32 %v1441, %v2111
      %v2199 = vadd.f32 %v1521, %v2191
      %v2200 = vadd.f32 %v1523, %v2193
      %2201 = vmatprep.subr.bf16.mxu0 %v633
      %2202 = vmatpush1.bf16.msra.mxu0 %v632
      %2203 = vmatprep.subr.bf16.mxu0 %v637
      %2204 = vmatpush1.bf16.msra.mxu0 %v636
      %2205 = vmatprep.subr.bf16.mxu0 %v641
      %2206 = vmatpush1.bf16.msra.mxu0 %v640
      %2207 = vmatprep.subr.bf16.mxu0 %v645
      %2208 = vmatpush1.bf16.msra.mxu0 %v644
      %2209 = vmatprep.subr.bf16.mxu0 %v649
      %2210 = vmatpush1.bf16.msra.mxu0 %v648
      %2211 = vmatprep.subr.bf16.mxu0 %v653
      %2212 = vmatpush1.bf16.msra.mxu0 %v652
      %2213 = vmatprep.subr.bf16.mxu0 %v657
      %2214 = vmatpush1.bf16.msra.mxu0 %v656
      %2215 = vmatprep.subr.bf16.mxu0 %v661
      %2216 = vmatpush1.bf16.msra.mxu0 %v660
      %2217 = vmatprep.subr.bf16.mxu0 %v665
      %2218 = vmatpush1.bf16.msra.mxu0 %v664
      %2219 = vmatprep.subr.bf16.mxu0 %v669
      %2220 = vmatpush1.bf16.msra.mxu0 %v668
      %2221 = vmatprep.subr.bf16.mxu0 %v673
      %2222 = vmatpush1.bf16.msra.mxu0 %v672
      %2223 = vmatprep.subr.bf16.mxu0 %v677
      %2224 = vmatpush1.bf16.msra.mxu0 %v676
      %2225 = vmatprep.subr.bf16.mxu0 %v681
      %2226 = vmatpush1.bf16.msra.mxu0 %v680
      %2227 = vmatprep.subr.bf16.mxu0 %v685
      %2228 = vmatpush1.bf16.msra.mxu0 %v684
      %2229 = vmatprep.subr.bf16.mxu0 %v689
      %2230 = vmatpush1.bf16.msra.mxu0 %v688
      %2231 = vmatprep.subr.bf16.mxu0 %v693
      %2232 = vmatpush1.bf16.msra.mxu0 %v692
      %2233 = vmatprep.mubr.bf16.mxu0 %v1621
      %2234 = vmatmul.mubr.bf16.gmra.mrb[0].mxu0 %v1614
      %v2235 = vpop.f32.mrb[0].mxu0
      %v2236 = vadd.f32 0.0, %v2235
      %v2237 = vpop.f32.mrb[0].mxu0
      %v2238 = vadd.f32 0.0, %v2237
      %v2239 = vpop.f32.mrb[0].mxu0
      %v2240 = vpop.f32.mrb[0].mxu0
      %2241 = vdwg.mxu0
      %2242 = vmatprep.subr.bf16.mxu0 %v697
      %2243 = vmatpush1.bf16.msra.mxu0 %v696
      %2244 = vmatprep.subr.bf16.mxu0 %v701
      %2245 = vmatpush1.bf16.msra.mxu0 %v700
      %2246 = vmatprep.subr.bf16.mxu0 %v705
      %2247 = vmatpush1.bf16.msra.mxu0 %v704
      %2248 = vmatprep.subr.bf16.mxu0 %v709
      %2249 = vmatpush1.bf16.msra.mxu0 %v708
      %2250 = vmatprep.subr.bf16.mxu0 0
      %2251 = vmatpush1.bf16.msra.mxu0 0
      %2252 = vmatprep.subr.bf16.mxu0 0
      %2253 = vmatpush1.bf16.msra.mxu0 0
      %2254 = vmatprep.subr.bf16.mxu0 0
      %2255 = vmatpush1.bf16.msra.mxu0 0
      %2256 = vmatprep.subr.bf16.mxu0 0
      %2257 = vmatpush1.bf16.msra.mxu0 0
      %2258 = vmatprep.subr.bf16.mxu0 0
      %2259 = vmatpush1.bf16.msra.mxu0 0
      %2260 = vmatprep.subr.bf16.mxu0 0
      %2261 = vmatpush1.bf16.msra.mxu0 0
      %2262 = vmatprep.subr.bf16.mxu0 0
      %2263 = vmatpush1.bf16.msra.mxu0 0
      %2264 = vmatprep.subr.bf16.mxu0 0
      %2265 = vmatpush1.bf16.msra.mxu0 0
      %2266 = vmatprep.subr.bf16.mxu0 0
      %2267 = vmatpush1.bf16.msra.mxu0 0
      %2268 = vmatprep.subr.bf16.mxu0 0
      %2269 = vmatpush1.bf16.msra.mxu0 0
      %2270 = vmatprep.subr.bf16.mxu0 0
      %2271 = vmatpush1.bf16.msra.mxu0 0
      %2272 = vmatprep.subr.bf16.mxu0 0
      %2273 = vmatpush1.bf16.msra.mxu0 0
      %2274 = vmatprep.mubr.bf16.mxu0 0
      %2275 = vmatmul.mubr.bf16.gmra.mrb[0].mxu0 %v2031
      %v2276 = vpop.f32.mrb[0].mxu0
      %v2277 = vadd.f32 %v2236, %v2276
      %v2278 = vpop.f32.mrb[0].mxu0
      %v2279 = vadd.f32 %v2238, %v2278
      %v2280 = vpop.f32.mrb[0].mxu0
      %v2281 = vpop.f32.mrb[0].mxu0
      %2282 = vdwg.mxu0
      %2283 = vmatprep.subr.bf16.mxu0 %v635
      %2284 = vmatpush1.bf16.msra.mxu0 %v634
      %2285 = vmatprep.subr.bf16.mxu0 %v639
      %2286 = vmatpush1.bf16.msra.mxu0 %v638
      %2287 = vmatprep.subr.bf16.mxu0 %v643
      %2288 = vmatpush1.bf16.msra.mxu0 %v642
      %2289 = vmatprep.subr.bf16.mxu0 %v647
      %2290 = vmatpush1.bf16.msra.mxu0 %v646
      %2291 = vmatprep.subr.bf16.mxu0 %v651
      %2292 = vmatpush1.bf16.msra.mxu0 %v650
      %2293 = vmatprep.subr.bf16.mxu0 %v655
      %2294 = vmatpush1.bf16.msra.mxu0 %v654
      %2295 = vmatprep.subr.bf16.mxu0 %v659
      %2296 = vmatpush1.bf16.msra.mxu0 %v658
      %2297 = vmatprep.subr.bf16.mxu0 %v663
      %2298 = vmatpush1.bf16.msra.mxu0 %v662
      %2299 = vmatprep.subr.bf16.mxu0 %v667
      %2300 = vmatpush1.bf16.msra.mxu0 %v666
      %2301 = vmatprep.subr.bf16.mxu0 %v671
      %2302 = vmatpush1.bf16.msra.mxu0 %v670
      %2303 = vmatprep.subr.bf16.mxu0 %v675
      %2304 = vmatpush1.bf16.msra.mxu0 %v674
      %2305 = vmatprep.subr.bf16.mxu0 %v679
      %2306 = vmatpush1.bf16.msra.mxu0 %v678
      %2307 = vmatprep.subr.bf16.mxu0 %v683
      %2308 = vmatpush1.bf16.msra.mxu0 %v682
      %2309 = vmatprep.subr.bf16.mxu0 %v687
      %2310 = vmatpush1.bf16.msra.mxu0 %v686
      %2311 = vmatprep.subr.bf16.mxu0 %v691
      %2312 = vmatpush1.bf16.msra.mxu0 %v690
      %2313 = vmatprep.subr.bf16.mxu0 %v695
      %2314 = vmatpush1.bf16.msra.mxu0 %v694
      %2315 = vmatprep.mubr.bf16.mxu0 %v1621
      %2316 = vmatmul.mubr.bf16.gmra.mrb[0].mxu0 %v1614
      %v2317 = vpop.f32.mrb[0].mxu0
      %v2318 = vadd.f32 0.0, %v2317
      %v2319 = vpop.f32.mrb[0].mxu0
      %v2320 = vadd.f32 0.0, %v2319
      %v2321 = vpop.f32.mrb[0].mxu0
      %v2322 = vpop.f32.mrb[0].mxu0
      %2323 = vdwg.mxu0
      %2324 = vmatprep.subr.bf16.mxu0 %v699
      %2325 = vmatpush1.bf16.msra.mxu0 %v698
      %2326 = vmatprep.subr.bf16.mxu0 %v703
      %2327 = vmatpush1.bf16.msra.mxu0 %v702
      %2328 = vmatprep.subr.bf16.mxu0 %v707
      %2329 = vmatpush1.bf16.msra.mxu0 %v706
      %2330 = vmatprep.subr.bf16.mxu0 %v711
      %2331 = vmatpush1.bf16.msra.mxu0 %v710
      %2332 = vmatprep.subr.bf16.mxu0 0
      %2333 = vmatpush1.bf16.msra.mxu0 0
      %2334 = vmatprep.subr.bf16.mxu0 0
      %2335 = vmatpush1.bf16.msra.mxu0 0
      %2336 = vmatprep.subr.bf16.mxu0 0
      %2337 = vmatpush1.bf16.msra.mxu0 0
      %2338 = vmatprep.subr.bf16.mxu0 0
      %2339 = vmatpush1.bf16.msra.mxu0 0
      %2340 = vmatprep.subr.bf16.mxu0 0
      %2341 = vmatpush1.bf16.msra.mxu0 0
      %2342 = vmatprep.subr.bf16.mxu0 0
      %2343 = vmatpush1.bf16.msra.mxu0 0
      %2344 = vmatprep.subr.bf16.mxu0 0
      %2345 = vmatpush1.bf16.msra.mxu0 0
      %2346 = vmatprep.subr.bf16.mxu0 0
      %2347 = vmatpush1.bf16.msra.mxu0 0
      %2348 = vmatprep.subr.bf16.mxu0 0
      %2349 = vmatpush1.bf16.msra.mxu0 0
      %2350 = vmatprep.subr.bf16.mxu0 0
      %2351 = vmatpush1.bf16.msra.mxu0 0
      %2352 = vmatprep.subr.bf16.mxu0 0
      %2353 = vmatpush1.bf16.msra.mxu0 0
      %2354 = vmatprep.subr.bf16.mxu0 0
      %2355 = vmatpush1.bf16.msra.mxu0 0
      %2356 = vmatprep.mubr.bf16.mxu0 0
      %2357 = vmatmul.mubr.bf16.gmra.mrb[0].mxu0 %v2031
      %v2358 = vpop.f32.mrb[0].mxu0
      %v2359 = vadd.f32 %v2318, %v2358
      %v2360 = vpop.f32.mrb[0].mxu0
      %v2361 = vadd.f32 %v2320, %v2360
      %v2362 = vpop.f32.mrb[0].mxu0
      %v2363 = vpop.f32.mrb[0].mxu0
      %2364 = vdwg.mxu0
      %2365 = vmatprep.subr.bf16.mxu0 %v1201
      %2366 = vmatpush1.bf16.msra.mxu0 %v1200
      %2367 = vmatprep.subr.bf16.mxu0 %v1205
      %2368 = vmatpush1.bf16.msra.mxu0 %v1204
      %2369 = vmatprep.subr.bf16.mxu0 %v1209
      %2370 = vmatpush1.bf16.msra.mxu0 %v1208
      %2371 = vmatprep.subr.bf16.mxu0 %v1213
      %2372 = vmatpush1.bf16.msra.mxu0 %v1212
      %2373 = vmatprep.subr.bf16.mxu0 %v1217
      %2374 = vmatpush1.bf16.msra.mxu0 %v1216
      %2375 = vmatprep.subr.bf16.mxu0 %v1221
      %2376 = vmatpush1.bf16.msra.mxu0 %v1220
      %2377 = vmatprep.subr.bf16.mxu0 %v1225
      %2378 = vmatpush1.bf16.msra.mxu0 %v1224
      %2379 = vmatprep.subr.bf16.mxu0 %v1229
      %2380 = vmatpush1.bf16.msra.mxu0 %v1228
      %2381 = vmatprep.subr.bf16.mxu0 %v1233
      %2382 = vmatpush1.bf16.msra.mxu0 %v1232
      %2383 = vmatprep.subr.bf16.mxu0 %v1237
      %2384 = vmatpush1.bf16.msra.mxu0 %v1236
      %2385 = vmatprep.subr.bf16.mxu0 %v1241
      %2386 = vmatpush1.bf16.msra.mxu0 %v1240
      %2387 = vmatprep.subr.bf16.mxu0 %v1245
      %2388 = vmatpush1.bf16.msra.mxu0 %v1244
      %2389 = vmatprep.subr.bf16.mxu0 %v1249
      %2390 = vmatpush1.bf16.msra.mxu0 %v1248
      %2391 = vmatprep.subr.bf16.mxu0 %v1253
      %2392 = vmatpush1.bf16.msra.mxu0 %v1252
      %2393 = vmatprep.subr.bf16.mxu0 %v1257
      %2394 = vmatpush1.bf16.msra.mxu0 %v1256
      %2395 = vmatprep.subr.bf16.mxu0 %v1261
      %2396 = vmatpush1.bf16.msra.mxu0 %v1260
      %2397 = vmatprep.mubr.bf16.mxu0 %v229
      %2398 = vmatmul.mubr.bf16.gmra.mrb[0].mxu0 %v228
      %v2399 = vpop.f32.mrb[0].mxu0
      %v2400 = vadd.f32 %v2277, %v2399
      %v2401 = vpop.f32.mrb[0].mxu0
      %v2402 = vadd.f32 %v2279, %v2401
      %v2403 = vpop.f32.mrb[0].mxu0
      %v2404 = vpop.f32.mrb[0].mxu0
      %2405 = vdwg.mxu0
      %2406 = vmatprep.subr.bf16.mxu0 %v1265
      %2407 = vmatpush1.bf16.msra.mxu0 %v1264
      %2408 = vmatprep.subr.bf16.mxu0 %v1269
      %2409 = vmatpush1.bf16.msra.mxu0 %v1268
      %2410 = vmatprep.subr.bf16.mxu0 %v1273
      %2411 = vmatpush1.bf16.msra.mxu0 %v1272
      %2412 = vmatprep.subr.bf16.mxu0 %v1277
      %2413 = vmatpush1.bf16.msra.mxu0 %v1276
      %2414 = vmatprep.subr.bf16.mxu0 0
      %2415 = vmatpush1.bf16.msra.mxu0 0
      %2416 = vmatprep.subr.bf16.mxu0 0
      %2417 = vmatpush1.bf16.msra.mxu0 0
      %2418 = vmatprep.subr.bf16.mxu0 0
      %2419 = vmatpush1.bf16.msra.mxu0 0
      %2420 = vmatprep.subr.bf16.mxu0 0
      %2421 = vmatpush1.bf16.msra.mxu0 0
      %2422 = vmatprep.subr.bf16.mxu0 0
      %2423 = vmatpush1.bf16.msra.mxu0 0
      %2424 = vmatprep.subr.bf16.mxu0 0
      %2425 = vmatpush1.bf16.msra.mxu0 0
      %2426 = vmatprep.subr.bf16.mxu0 0
      %2427 = vmatpush1.bf16.msra.mxu0 0
      %2428 = vmatprep.subr.bf16.mxu0 0
      %2429 = vmatpush1.bf16.msra.mxu0 0
      %2430 = vmatprep.subr.bf16.mxu0 0
      %2431 = vmatpush1.bf16.msra.mxu0 0
      %2432 = vmatprep.subr.bf16.mxu0 0
      %2433 = vmatpush1.bf16.msra.mxu0 0
      %2434 = vmatprep.subr.bf16.mxu0 0
      %2435 = vmatpush1.bf16.msra.mxu0 0
      %2436 = vmatprep.subr.bf16.mxu0 0
      %2437 = vmatpush1.bf16.msra.mxu0 0
      %2438 = vmatprep.mubr.bf16.mxu0 0
      %2439 = vmatmul.mubr.bf16.gmra.mrb[0].mxu0 %v794
      %v2440 = vpop.f32.mrb[0].mxu0
      %v2441 = vadd.f32 %v2400, %v2440
      %v2442 = vpop.f32.mrb[0].mxu0
      %v2443 = vadd.f32 %v2402, %v2442
      %v2444 = vpop.f32.mrb[0].mxu0
      %v2445 = vpop.f32.mrb[0].mxu0
      %2446 = vdwg.mxu0
      %2447 = vmatprep.subr.bf16.mxu0 %v1203
      %2448 = vmatpush1.bf16.msra.mxu0 %v1202
      %2449 = vmatprep.subr.bf16.mxu0 %v1207
      %2450 = vmatpush1.bf16.msra.mxu0 %v1206
      %2451 = vmatprep.subr.bf16.mxu0 %v1211
      %2452 = vmatpush1.bf16.msra.mxu0 %v1210
      %2453 = vmatprep.subr.bf16.mxu0 %v1215
      %2454 = vmatpush1.bf16.msra.mxu0 %v1214
      %2455 = vmatprep.subr.bf16.mxu0 %v1219
      %2456 = vmatpush1.bf16.msra.mxu0 %v1218
      %2457 = vmatprep.subr.bf16.mxu0 %v1223
      %2458 = vmatpush1.bf16.msra.mxu0 %v1222
      %2459 = vmatprep.subr.bf16.mxu0 %v1227
      %2460 = vmatpush1.bf16.msra.mxu0 %v1226
      %2461 = vmatprep.subr.bf16.mxu0 %v1231
      %2462 = vmatpush1.bf16.msra.mxu0 %v1230
      %2463 = vmatprep.subr.bf16.mxu0 %v1235
      %2464 = vmatpush1.bf16.msra.mxu0 %v1234
      %2465 = vmatprep.subr.bf16.mxu0 %v1239
      %2466 = vmatpush1.bf16.msra.mxu0 %v1238
      %2467 = vmatprep.subr.bf16.mxu0 %v1243
      %2468 = vmatpush1.bf16.msra.mxu0 %v1242
      %2469 = vmatprep.subr.bf16.mxu0 %v1247
      %2470 = vmatpush1.bf16.msra.mxu0 %v1246
      %2471 = vmatprep.subr.bf16.mxu0 %v1251
      %2472 = vmatpush1.bf16.msra.mxu0 %v1250
      %2473 = vmatprep.subr.bf16.mxu0 %v1255
      %2474 = vmatpush1.bf16.msra.mxu0 %v1254
      %2475 = vmatprep.subr.bf16.mxu0 %v1259
      %2476 = vmatpush1.bf16.msra.mxu0 %v1258
      %2477 = vmatprep.subr.bf16.mxu0 %v1263
      %2478 = vmatpush1.bf16.msra.mxu0 %v1262
      %2479 = vmatprep.mubr.bf16.mxu0 %v229
      %2480 = vmatmul.mubr.bf16.gmra.mrb[0].mxu0 %v228
      %v2481 = vpop.f32.mrb[0].mxu0
      %v2482 = vadd.f32 %v2359, %v2481
      %v2483 = vpop.f32.mrb[0].mxu0
      %v2484 = vadd.f32 %v2361, %v2483
      %v2485 = vpop.f32.mrb[0].mxu0
      %v2486 = vpop.f32.mrb[0].mxu0
      %2487 = vdwg.mxu0
      %2488 = vmatprep.subr.bf16.mxu0 %v1267
      %2489 = vmatpush1.bf16.msra.mxu0 %v1266
      %2490 = vmatprep.subr.bf16.mxu0 %v1271
      %2491 = vmatpush1.bf16.msra.mxu0 %v1270
      %2492 = vmatprep.subr.bf16.mxu0 %v1275
      %2493 = vmatpush1.bf16.msra.mxu0 %v1274
      %2494 = vmatprep.subr.bf16.mxu0 %v1279
      %2495 = vmatpush1.bf16.msra.mxu0 %v1278
      %2496 = vmatprep.subr.bf16.mxu0 0
      %2497 = vmatpush1.bf16.msra.mxu0 0
      %2498 = vmatprep.subr.bf16.mxu0 0
      %2499 = vmatpush1.bf16.msra.mxu0 0
      %2500 = vmatprep.subr.bf16.mxu0 0
      %2501 = vmatpush1.bf16.msra.mxu0 0
      %2502 = vmatprep.subr.bf16.mxu0 0
      %2503 = vmatpush1.bf16.msra.mxu0 0
      %2504 = vmatprep.subr.bf16.mxu0 0
      %2505 = vmatpush1.bf16.msra.mxu0 0
      %2506 = vmatprep.subr.bf16.mxu0 0
      %2507 = vmatpush1.bf16.msra.mxu0 0
      %2508 = vmatprep.subr.bf16.mxu0 0
      %2509 = vmatpush1.bf16.msra.mxu0 0
      %2510 = vmatprep.subr.bf16.mxu0 0
      %2511 = vmatpush1.bf16.msra.mxu0 0
      %2512 = vmatprep.subr.bf16.mxu0 0
      %2513 = vmatpush1.bf16.msra.mxu0 0
      %2514 = vmatprep.subr.bf16.mxu0 0
      %2515 = vmatpush1.bf16.msra.mxu0 0
      %2516 = vmatprep.subr.bf16.mxu0 0
      %2517 = vmatpush1.bf16.msra.mxu0 0
      %2518 = vmatprep.subr.bf16.mxu0 0
      %2519 = vmatpush1.bf16.msra.mxu0 0
      %2520 = vmatprep.mubr.bf16.mxu0 0
      %2521 = vmatmul.mubr.bf16.gmra.mrb[0].mxu0 %v794
      %v2522 = vpop.f32.mrb[0].mxu0
      %v2523 = vadd.f32 %v2482, %v2522
      %v2524 = vpop.f32.mrb[0].mxu0
      %v2525 = vadd.f32 %v2484, %v2524
      %v2526 = vpop.f32.mrb[0].mxu0
      %v2527 = vpop.f32.mrb[0].mxu0
      %2528 = vdwg.mxu0
      %v2530 = vshrl.u32 %v228, 16
      %v2532 = vshll.u32 %v228, 16
      %v2534 = vrot.slane %v2532, 1
      %v2535 = vor.u32 %v2530, %v2534
      %v2537 = vshrl.u32 %v229, 16
      %v2539 = vshll.u32 %v229, 16
      %v2541 = vrot.slane %v2539, 1
      %v2542 = vor.u32 %v2537, %v2541
      %v2543 = vshrl.u32 %v230, 16
      %v2545 = vshll.u32 %v230, 16
      %v2547 = vrot.slane %v2545, 1
      %v2548 = vor.u32 %v2543, %v2547
      %v2552 = vsel %vm792, %v2548, 0
      %2554 = vmatprep.subr.bf16.mxu0 %v1871
      %2555 = vmatpush1.bf16.msra.mxu0 %v1870
      %2556 = vmatprep.subr.bf16.mxu0 %v1875
      %2557 = vmatpush1.bf16.msra.mxu0 %v1874
      %2558 = vmatprep.subr.bf16.mxu0 %v1879
      %2559 = vmatpush1.bf16.msra.mxu0 %v1878
      %2560 = vmatprep.subr.bf16.mxu0 %v1883
      %2561 = vmatpush1.bf16.msra.mxu0 %v1882
      %2562 = vmatprep.subr.bf16.mxu0 %v1887
      %2563 = vmatpush1.bf16.msra.mxu0 %v1886
      %2564 = vmatprep.subr.bf16.mxu0 %v1891
      %2565 = vmatpush1.bf16.msra.mxu0 %v1890
      %2566 = vmatprep.subr.bf16.mxu0 %v1895
      %2567 = vmatpush1.bf16.msra.mxu0 %v1894
      %2568 = vmatprep.subr.bf16.mxu0 %v1899
      %2569 = vmatpush1.bf16.msra.mxu0 %v1898
      %2570 = vmatprep.subr.bf16.mxu0 %v1903
      %2571 = vmatpush1.bf16.msra.mxu0 %v1902
      %2572 = vmatprep.subr.bf16.mxu0 %v1907
      %2573 = vmatpush1.bf16.msra.mxu0 %v1906
      %2574 = vmatprep.subr.bf16.mxu0 %v1911
      %2575 = vmatpush1.bf16.msra.mxu0 %v1910
      %2576 = vmatprep.subr.bf16.mxu0 %v1915
      %2577 = vmatpush1.bf16.msra.mxu0 %v1914
      %2578 = vmatprep.subr.bf16.mxu0 %v1919
      %2579 = vmatpush1.bf16.msra.mxu0 %v1918
      %2580 = vmatprep.subr.bf16.mxu0 %v1923
      %2581 = vmatpush1.bf16.msra.mxu0 %v1922
      %2582 = vmatprep.subr.bf16.mxu0 %v1927
      %2583 = vmatpush1.bf16.msra.mxu0 %v1926
      %2584 = vmatprep.subr.bf16.mxu0 %v1931
      %2585 = vmatpush1.bf16.msra.mxu0 %v1930
      %2586 = vmatprep.mubr.bf16.mxu0 %v2542
      %2587 = vmatmul.mubr.bf16.gmra.mrb[0].mxu0 %v2535
      %v2588 = vpop.f32.mrb[0].mxu0
      %v2589 = vadd.f32 0.0, %v2588
      %v2590 = vpop.f32.mrb[0].mxu0
      %v2591 = vadd.f32 0.0, %v2590
      %v2592 = vpop.f32.mrb[0].mxu0
      %v2593 = vpop.f32.mrb[0].mxu0
      %2594 = vdwg.mxu0
      %2595 = vmatprep.subr.bf16.mxu0 %v1935
      %2596 = vmatpush1.bf16.msra.mxu0 %v1934
      %2597 = vmatprep.subr.bf16.mxu0 %v1939
      %2598 = vmatpush1.bf16.msra.mxu0 %v1938
      %2599 = vmatprep.subr.bf16.mxu0 %v1943
      %2600 = vmatpush1.bf16.msra.mxu0 %v1942
      %2601 = vmatprep.subr.bf16.mxu0 %v1947
      %2602 = vmatpush1.bf16.msra.mxu0 %v1946
      %2603 = vmatprep.subr.bf16.mxu0 0
      %2604 = vmatpush1.bf16.msra.mxu0 0
      %2605 = vmatprep.subr.bf16.mxu0 0
      %2606 = vmatpush1.bf16.msra.mxu0 0
      %2607 = vmatprep.subr.bf16.mxu0 0
      %2608 = vmatpush1.bf16.msra.mxu0 0
      %2609 = vmatprep.subr.bf16.mxu0 0
      %2610 = vmatpush1.bf16.msra.mxu0 0
      %2611 = vmatprep.subr.bf16.mxu0 0
      %2612 = vmatpush1.bf16.msra.mxu0 0
      %2613 = vmatprep.subr.bf16.mxu0 0
      %2614 = vmatpush1.bf16.msra.mxu0 0
      %2615 = vmatprep.subr.bf16.mxu0 0
      %2616 = vmatpush1.bf16.msra.mxu0 0
      %2617 = vmatprep.subr.bf16.mxu0 0
      %2618 = vmatpush1.bf16.msra.mxu0 0
      %2619 = vmatprep.subr.bf16.mxu0 0
      %2620 = vmatpush1.bf16.msra.mxu0 0
      %2621 = vmatprep.subr.bf16.mxu0 0
      %2622 = vmatpush1.bf16.msra.mxu0 0
      %2623 = vmatprep.subr.bf16.mxu0 0
      %2624 = vmatpush1.bf16.msra.mxu0 0
      %2625 = vmatprep.subr.bf16.mxu0 0
      %2626 = vmatpush1.bf16.msra.mxu0 0
      %2627 = vmatprep.mubr.bf16.mxu0 0
      %2628 = vmatmul.mubr.bf16.gmra.mrb[0].mxu0 %v2552
      %v2629 = vpop.f32.mrb[0].mxu0
      %v2630 = vadd.f32 %v2589, %v2629
      %v2631 = vpop.f32.mrb[0].mxu0
      %v2632 = vadd.f32 %v2591, %v2631
      %v2633 = vpop.f32.mrb[0].mxu0
      %v2634 = vpop.f32.mrb[0].mxu0
      %2635 = vdwg.mxu0
      %2636 = vmatprep.subr.bf16.mxu0 %v1873
      %2637 = vmatpush1.bf16.msra.mxu0 %v1872
      %2638 = vmatprep.subr.bf16.mxu0 %v1877
      %2639 = vmatpush1.bf16.msra.mxu0 %v1876
      %2640 = vmatprep.subr.bf16.mxu0 %v1881
      %2641 = vmatpush1.bf16.msra.mxu0 %v1880
      %2642 = vmatprep.subr.bf16.mxu0 %v1885
      %2643 = vmatpush1.bf16.msra.mxu0 %v1884
      %2644 = vmatprep.subr.bf16.mxu0 %v1889
      %2645 = vmatpush1.bf16.msra.mxu0 %v1888
      %2646 = vmatprep.subr.bf16.mxu0 %v1893
      %2647 = vmatpush1.bf16.msra.mxu0 %v1892
      %2648 = vmatprep.subr.bf16.mxu0 %v1897
      %2649 = vmatpush1.bf16.msra.mxu0 %v1896
      %2650 = vmatprep.subr.bf16.mxu0 %v1901
      %2651 = vmatpush1.bf16.msra.mxu0 %v1900
      %2652 = vmatprep.subr.bf16.mxu0 %v1905
      %2653 = vmatpush1.bf16.msra.mxu0 %v1904
      %2654 = vmatprep.subr.bf16.mxu0 %v1909
      %2655 = vmatpush1.bf16.msra.mxu0 %v1908
      %2656 = vmatprep.subr.bf16.mxu0 %v1913
      %2657 = vmatpush1.bf16.msra.mxu0 %v1912
      %2658 = vmatprep.subr.bf16.mxu0 %v1917
      %2659 = vmatpush1.bf16.msra.mxu0 %v1916
      %2660 = vmatprep.subr.bf16.mxu0 %v1921
      %2661 = vmatpush1.bf16.msra.mxu0 %v1920
      %2662 = vmatprep.subr.bf16.mxu0 %v1925
      %2663 = vmatpush1.bf16.msra.mxu0 %v1924
      %2664 = vmatprep.subr.bf16.mxu0 %v1929
      %2665 = vmatpush1.bf16.msra.mxu0 %v1928
      %2666 = vmatprep.subr.bf16.mxu0 %v1933
      %2667 = vmatpush1.bf16.msra.mxu0 %v1932
      %2668 = vmatprep.mubr.bf16.mxu0 %v2542
      %2669 = vmatmul.mubr.bf16.gmra.mrb[0].mxu0 %v2535
      %v2670 = vpop.f32.mrb[0].mxu0
      %v2671 = vadd.f32 0.0, %v2670
      %v2672 = vpop.f32.mrb[0].mxu0
      %v2673 = vadd.f32 0.0, %v2672
      %v2674 = vpop.f32.mrb[0].mxu0
      %v2675 = vpop.f32.mrb[0].mxu0
      %2676 = vdwg.mxu0
      %2677 = vmatprep.subr.bf16.mxu0 %v1937
      %2678 = vmatpush1.bf16.msra.mxu0 %v1936
      %2679 = vmatprep.subr.bf16.mxu0 %v1941
      %2680 = vmatpush1.bf16.msra.mxu0 %v1940
      %2681 = vmatprep.subr.bf16.mxu0 %v1945
      %2682 = vmatpush1.bf16.msra.mxu0 %v1944
      %2683 = vmatprep.subr.bf16.mxu0 %v1949
      %2684 = vmatpush1.bf16.msra.mxu0 %v1948
      %2685 = vmatprep.subr.bf16.mxu0 0
      %2686 = vmatpush1.bf16.msra.mxu0 0
      %2687 = vmatprep.subr.bf16.mxu0 0
      %2688 = vmatpush1.bf16.msra.mxu0 0
      %2689 = vmatprep.subr.bf16.mxu0 0
      %2690 = vmatpush1.bf16.msra.mxu0 0
      %2691 = vmatprep.subr.bf16.mxu0 0
      %2692 = vmatpush1.bf16.msra.mxu0 0
      %2693 = vmatprep.subr.bf16.mxu0 0
      %2694 = vmatpush1.bf16.msra.mxu0 0
      %2695 = vmatprep.subr.bf16.mxu0 0
      %2696 = vmatpush1.bf16.msra.mxu0 0
      %2697 = vmatprep.subr.bf16.mxu0 0
      %2698 = vmatpush1.bf16.msra.mxu0 0
      %2699 = vmatprep.subr.bf16.mxu0 0
      %2700 = vmatpush1.bf16.msra.mxu0 0
      %2701 = vmatprep.subr.bf16.mxu0 0
      %2702 = vmatpush1.bf16.msra.mxu0 0
      %2703 = vmatprep.subr.bf16.mxu0 0
      %2704 = vmatpush1.bf16.msra.mxu0 0
      %2705 = vmatprep.subr.bf16.mxu0 0
      %2706 = vmatpush1.bf16.msra.mxu0 0
      %2707 = vmatprep.subr.bf16.mxu0 0
      %2708 = vmatpush1.bf16.msra.mxu0 0
      %2709 = vmatprep.mubr.bf16.mxu0 0
      %2710 = vmatmul.mubr.bf16.gmra.mrb[0].mxu0 %v2552
      %v2711 = vpop.f32.mrb[0].mxu0
      %v2712 = vadd.f32 %v2671, %v2711
      %v2713 = vpop.f32.mrb[0].mxu0
      %v2714 = vadd.f32 %v2673, %v2713
      %v2715 = vpop.f32.mrb[0].mxu0
      %v2716 = vpop.f32.mrb[0].mxu0
      %2717 = vdwg.mxu0
      %v2718 = vadd.f32 %v2441, %v2630
      %v2719 = vadd.f32 %v2443, %v2632
      %v2720 = vadd.f32 %v2523, %v2712
      %v2721 = vadd.f32 %v2525, %v2714
      %v2722 = vld [vmem:[%s3] sm:$0xf]
      %v2724 = vlaneseq
      %v2725 = vshrl.u32 %v2724, 7
      %v2726 = vsub.s32 0, %v2725
      %v2727 = vrot.slane %v2722, %v2726
      %v2728 = vlaneseq
      %v2729 = vshrl.u32 %v2728, 7
      %v2730 = vsub.s32 1, %v2729
      %v2731 = vrot.slane %v2722, %v2730
      %v2732 = vlaneseq
      %v2733 = vshrl.u32 %v2732, 7
      %v2734 = vsub.s32 2, %v2733
      %v2735 = vrot.slane %v2722, %v2734
      %v2736 = vlaneseq
      %v2737 = vshrl.u32 %v2736, 7
      %v2738 = vsub.s32 3, %v2737
      %v2739 = vrot.slane %v2722, %v2738
      %v2744 = vadd.f32 %v2197, %v2727
      %v2745 = vadd.f32 %v2198, %v2731
      %v2746 = vadd.f32 %v2199, %v2735
      %v2747 = vadd.f32 %v2200, %v2739
      %v2748 = vmax.f32 %v2744, 0.0
      %v2749 = vmax.f32 %v2745, 0.0
      %v2750 = vmax.f32 %v2746, 0.0
      %v2751 = vmax.f32 %v2747, 0.0
      %v2752 = vadd.f32 %v2718, %v2727
      %v2753 = vadd.f32 %v2719, %v2731
      %v2754 = vadd.f32 %v2720, %v2735
      %v2755 = vadd.f32 %v2721, %v2739
      %v2756 = vmax.f32 %v2752, 0.0
      %v2757 = vmax.f32 %v2753, 0.0
      %v2758 = vmax.f32 %v2754, 0.0
      %v2759 = vmax.f32 %v2755, 0.0
      %v2760 = vmax.f32 %v2748, %v2750
      %v2761 = vmax.f32 %v2749, %v2751
      %v2762 = vmax.f32 %v2756, %v2758
      %v2763 = vmax.f32 %v2757, %v2759
      %v2764 = vmax.f32 %v2760, %v2762
      %v2765 = vmax.f32 %v2761, %v2763
      %v2768 = vcombine.low %v2764, %v2765
      %2770 = vst [vmem:[%s217] sm:$0xff] %v2768
      %p2771 = scmp.lt.s32.totalorder %s15, 1
      %s2772 = scalar_select %p2771, %s15, 1
      %s2773 = smul.addr %s2772, 2
      %s2774 = smul.addr %s2773, 4
      %s2775 = scalar_lea.vmem %s4, %s2774
      // Predicated region
      $region37: #{simple_cnn_forward.4} parent=35 // pred_check
        %p2776 = pneg %p127
      $region38: #{simple_cnn_forward.4} parent=35 // pred_check_branch
        %2778 = sbr.rel (%p2776) target = $region40
      $region39: #{simple_cnn_forward.4} parent=35 // pred_region
        _
      $region40: #{simple_cnn_forward.4} parent=35 // pred_fallthru
        _
    $region36: #{simple_cnn_forward.4} parent=5 // pred_fallthru
      _
    %p2779 = scmp.le.s32.totalorder 2, %s10
    // Predicated region
    $region41: #{simple_cnn_forward.4} parent=5 // pred_check
      %p2780 = pneg %p2779
    $region42: #{simple_cnn_forward.4} parent=5 // pred_check_branch
      %2782 = sbr.rel (%p2780) target = $region44
    $region43: #{simple_cnn_forward.4} parent=5 // pred_region
      %s2783 = ssub.s32 %s10, 2
      // Predicated region
      $region45: #{simple_cnn_forward.4} parent=43 // pred_check
        %p2784 = pneg %p133
      $region46: #{simple_cnn_forward.4} parent=43 // pred_check_branch
        %2786 = sbr.rel (%p2784) target = $region48
      $region47: #{simple_cnn_forward.4} parent=43 // pred_region
        %p2787 = scmp.lt.s32.totalorder %s16, 1
        %s2788 = scalar_select %p2787, %s16, 1
        %s2789 = smul.addr %s2788, 2
        %s2790 = smul.addr %s2789, 4
        %s2791 = scalar_lea.vmem %s4, %s2790
      $region48: #{simple_cnn_forward.4} parent=43 // pred_fallthru
        _
    $region44: #{simple_cnn_forward.4} parent=5 // pred_fallthru
      _
  $region6: #{simple_cnn_forward.4} parent=0 // loop_footer
    %s14 = sadd.s32 1, %s10
  $region7: #{simple_cnn_forward.4} parent=0 // loop_footer_branch
    %9 = sbr.rel target = $region3
  $region8: #{simple_cnn_forward.4} parent=0 // loop_exit
    _

</llo_original>
